<compile_context>
chip_gen: v7x
topology: tpu7x:2x2x1
jax: 0.10.0
libtpu: 0.0.40
codegen_flags: <defaults>
</compile_context>

<pallas_src>
import functools

import jax
import jax.numpy as jnp
from jax.experimental import pallas as pl
from jax.experimental.pallas import tpu as pltpu


# ----------------------------- Pallas kernels ------------------------------


def _conv_tap_kernel(a_ref, w_ref, b_ref, o_ref, acc_ref, *, slope):
    """One reduction step of a tap-decomposed conv matmul.

    Grid = (M_tiles, n_taps); tap axis is the innermost ("arbitrary") reduction axis.
    a_ref: (1, tm, Cin) bf16   w_ref: (1, Cin, Cout) bf16   b_ref: (1, Cout) f32
    o_ref: (tm, Cout) f32      acc_ref: (tm, Cout) f32 VMEM scratch
    """
    t = pl.program_id(1)

    @pl.when(t == 0)
    def _():
        acc_ref[...] = jnp.zeros_like(acc_ref)

    # bf16 operands, f32 accumulation on the MXU.
    acc_ref[...] += jnp.dot(a_ref[0], w_ref[0], preferred_element_type=jnp.float32)

    @pl.when(t == pl.num_programs(1) - 1)
    def _():
        y = acc_ref[...] + b_ref[...]
        if slope is not None:  # LeakyReLU(negative_slope=slope)
            y = jnp.where(y >= 0, y, slope * y)
        o_ref[...] = y.astype(o_ref.dtype)


def _fused_conv01_kernel(a0_ref, a1_ref, w0_ref, w1_ref, b_ref, o_ref):
    """conv0(map)+conv1(feature): two dots into one accumulator, no HBM concat."""
    acc = jnp.dot(a0_ref[...], w0_ref[...], preferred_element_type=jnp.float32)
    acc = acc + jnp.dot(a1_ref[...], w1_ref[...], preferred_element_type=jnp.float32)
    o_ref[...] = (acc + b_ref[...]).astype(o_ref.dtype)


def _avgpool7_kernel(x_ref, o_ref, *, pw):
    """x_ref: (1, 7, W, C) row strip -> o_ref: (1, 1, pw, C) window means."""
    x = x_ref[0]  # (7, W, C)
    for j in range(pw):
        win = x[:, 7 * j:7 * j + 7, :]                       # (7, 7, C)
        s = jnp.sum(win, axis=(0, 1), keepdims=True)          # (1, 1, C)
        o_ref[0, 0, j:j + 1, :] = (s[0] * (1.0 / 49.0)).astype(o_ref.dtype)


# ------------------------------ helpers / glue ------------------------------


def _round_up(x, m):
    return ((x + m - 1) // m) * m


def _pick_tm(m):
    """Lane-dense, large M tiles; pad M up rather than shrinking tm."""
    if m >= 8192:
        return 1024
    if m >= 512:
        return 512
    return _round_up(m, 8)


def _build_taps_nhwc(x, k=3, stride=2, pad=1, dtype=jnp.bfloat16):
    """NHWC activation -> (9, M, Cin) bf16 stacked taps (no concat along K)."""
    n, h, w, c = x.shape
    ho = (h + 2 * pad - k) // stride + 1
    wo = (w + 2 * pad - k) // stride + 1
    xp = jnp.pad(x, ((0, 0), (pad, pad), (pad, pad), (0, 0)))
    taps = []
    for kh in range(k):
        for kw in range(k):
            t = xp[:, kh:kh + stride * (ho - 1) + 1:stride,
                      kw:kw + stride * (wo - 1) + 1:stride, :]
            taps.append(t.reshape(n * ho * wo, c))
    return jnp.stack(taps, axis=0).astype(dtype), (n, ho, wo)
    # TODO(synk): option (a) of the review -- DMA NHWC row slabs per grid step and do
    # the 9 shifted dots in-kernel -- would remove this 9x HBM tap materialization.


def _im2col_from_nchw(x_nchw, k=3, stride=2, pad=1, dtype=jnp.bfloat16):
    """NCHW input -> (M, k*k*C) bf16 patches; layout transpose + cast folded in."""
    n, c, h, w = x_nchw.shape
    ho = (h + 2 * pad - k) // stride + 1
    wo = (w + 2 * pad - k) // stride + 1
    xp = jnp.pad(x_nchw, ((0, 0), (0, 0), (pad, pad), (pad, pad)))
    cols = []
    for kh in range(k):
        for kw in range(k):
            t = xp[:, :, kh:kh + stride * (ho - 1) + 1:stride,
                         kw:kw + stride * (wo - 1) + 1:stride]      # (N,C,Ho,Wo)
            cols.append(jnp.transpose(t, (0, 2, 3, 1)))             # (N,Ho,Wo,C)
    patches = jnp.concatenate(cols, axis=-1)                         # (N,Ho,Wo,9C)
    return patches.reshape(n * ho * wo, k * k * c).astype(dtype), (n, ho, wo)


def _wmat(w_oihw):
    """torch conv weight (Cout,Cin,3,3) -> (9*Cin, Cout), (kh,kw,cin) K-order."""
    cout = w_oihw.shape[0]
    return jnp.transpose(w_oihw, (2, 3, 1, 0)).reshape(-1, cout)


def _wtaps(w_oihw):
    """torch conv weight (Cout,Cin,3,3) -> (9, Cin, Cout) bf16 taps."""
    cout, cin = w_oihw.shape[0], w_oihw.shape[1]
    return jnp.transpose(w_oihw, (2, 3, 1, 0)).reshape(9, cin, cout).astype(jnp.bfloat16)


# ----------------------------- Pallas wrappers -----------------------------

_MOSAIC_PARAMS = dict(vmem_limit_bytes=32 * 1024 * 1024)  # headroom on v7x's 64 MiB


def conv_taps_matmul(taps, w_taps, bias, *, slope):
    """taps:(T,M,Cin) bf16, w_taps:(T,Cin,Cout) bf16 -> act(sum_t taps[t]@w[t] + b)."""
    t, m, cin = taps.shape
    cout = w_taps.shape[2]
    tm = _pick_tm(m)
    mp = _round_up(m, tm)
    if mp != m:
        taps = jnp.pad(taps, ((0, 0), (0, mp - m), (0, 0)))

    kernel = functools.partial(_conv_tap_kernel, slope=slope)
    out = pl.pallas_call(
        kernel,
        out_shape=jax.ShapeDtypeStruct((mp, cout), jnp.float32),
        grid_spec=pltpu.PrefetchScalarGridSpec(
            num_scalar_prefetch=0,
            grid=(mp // tm, t),                                   # (M tiles, taps=K)
            in_specs=[
                pl.BlockSpec((1, tm, cin), lambda i, k: (k, i, 0)),
                pl.BlockSpec((1, cin, cout), lambda i, k: (k, 0, 0)),
                pl.BlockSpec((1, cout), lambda i, k: (0, 0)),
            ],
            out_specs=pl.BlockSpec((tm, cout), lambda i, k: (i, 0)),
            scratch_shapes=[pltpu.VMEM((tm, cout), jnp.float32)],
        ),
        compiler_params=pltpu.CompilerParams(
            dimension_semantics=("parallel", "arbitrary"), **_MOSAIC_PARAMS),
    )(taps, w_taps, bias.reshape(1, cout).astype(jnp.float32))
    return out[:m]


def conv2d_s2(x_nhwc, w_oihw, b, *, slope):
    """3x3 / stride 2 / pad 1 conv (NHWC) via tap-decomposed Pallas matmul."""
    cout = w_oihw.shape[0]
    taps, (n, ho, wo) = _build_taps_nhwc(x_nhwc)
    y = conv_taps_matmul(taps, _wtaps(w_oihw), b, slope=slope)
    return y.reshape(n, ho, wo, cout)


def fused_conv0_conv1(map_nchw, feat_nchw, w0, b0, w1, b1):
    """conv0(map) + conv1(feature): two A refs + two W refs, one Pallas call."""
    p0, (n, ho, wo) = _im2col_from_nchw(map_nchw)
    p1, _ = _im2col_from_nchw(feat_nchw)
    cout = w0.shape[0]
    k0, k1 = p0.shape[1], p1.shape[1]
    m = n * ho * wo
    tm = _pick_tm(m)
    mp = _round_up(m, tm)
    if mp != m:
        p0 = jnp.pad(p0, ((0, mp - m), (0, 0)))
        p1 = jnp.pad(p1, ((0, mp - m), (0, 0)))

    out = pl.pallas_call(
        _fused_conv01_kernel,
        out_shape=jax.ShapeDtypeStruct((mp, cout), jnp.float32),
        grid_spec=pltpu.PrefetchScalarGridSpec(
            num_scalar_prefetch=0,
            grid=(mp // tm,),
            in_specs=[
                pl.BlockSpec((tm, k0), lambda i: (i, 0)),
                pl.BlockSpec((tm, k1), lambda i: (i, 0)),
                pl.BlockSpec((k0, cout), lambda i: (0, 0)),
                pl.BlockSpec((k1, cout), lambda i: (0, 0)),
                pl.BlockSpec((1, cout), lambda i: (0, 0)),
            ],
            out_specs=pl.BlockSpec((tm, cout), lambda i: (i, 0)),
        ),
        compiler_params=pltpu.CompilerParams(
            dimension_semantics=("parallel",), **_MOSAIC_PARAMS),
    )(p0, p1, _wmat(w0).astype(jnp.bfloat16), _wmat(w1).astype(jnp.bfloat16),
      (b0 + b1).reshape(1, cout).astype(jnp.float32))
    return out[:m].reshape(n, ho, wo, cout)


def avgpool_7x7(x_nhwc):
    """AvgPool2d((7,7)), stride 7, floor mode; reads (7, W, C) strips directly."""
    n, h, w, c = x_nhwc.shape
    ph, pw = h // 7, w // 7
    kernel = functools.partial(_avgpool7_kernel, pw=pw)
    return pl.pallas_call(
        kernel,
        out_shape=jax.ShapeDtypeStruct((n, ph, pw, c), jnp.float32),
        grid=(n, ph),
        in_specs=[pl.BlockSpec((1, 7, w, c), lambda i, j: (i, j, 0, 0))],
        out_specs=pl.BlockSpec((1, 1, pw, c), lambda i, j: (i, j, 0, 0)),
        compiler_params=pltpu.CompilerParams(
            dimension_semantics=("parallel", "parallel"), **_MOSAIC_PARAMS),
    )(x_nhwc)


# ------------------------------ model forward -------------------------------


@jax.jit
def fc_discriminator_forward(params, map_nchw, feat_nchw):
    # conv0(map) + conv1(feature), fused; output is NHWC f32.
    x = fused_conv0_conv1(map_nchw, feat_nchw,
                          params["w0"], params["b0"], params["w1"], params["b1"])
    x = conv2d_s2(x, params["w2"], params["b2"], slope=0.2)
    # Dropout2d(0.5): identity at inference.
    # TODO(synk): training-mode channel dropout (with PRNG) not implemented.
    x = conv2d_s2(x, params["w3"], params["b3"], slope=0.2)
    # Dropout2d(0.5): identity at inference.
    x = conv2d_s2(x, params["w4"], params["b4"], slope=0.2)

    pooled = avgpool_7x7(x)                                  # (N, ph, pw, C)

    # torch x.view(N, -1) flattens NCHW order -> (N, C*ph*pw).
    n, ph, pw, c = pooled.shape
    flat = jnp.transpose(pooled, (0, 3, 1, 2)).reshape(n, c * ph * pw)
    # Classifier (M=batch, N=1): plain JAX per perf review (Pallas adds only overhead).
    out = flat @ params["wc"] + params["bc"]
    return out  # (N, 1); nn.Sigmoid is defined but not applied in forward()


# --------------------------------- params -----------------------------------


def init_params(key, in_channels, num_classes, ndf, fc_in):
    ks = jax.random.split(key, 12)

    def conv(kw_, kb_, cout, cin):
        fan = cin * 9
        lim = 1.0 / (fan ** 0.5)
        w = jax.random.uniform(kw_, (cout, cin, 3, 3), jnp.float32, -lim, lim)
        b = jax.random.uniform(kb_, (cout,), jnp.float32, -lim, lim)
        return w, b

    p = {}
    p["w0"], p["b0"] = conv(ks[0], ks[1], ndf, num_classes)
    p["w1"], p["b1"] = conv(ks[2], ks[3], ndf, in_channels)
    p["w2"], p["b2"] = conv(ks[4], ks[5], ndf * 2, ndf)
    p["w3"], p["b3"] = conv(ks[6], ks[7], ndf * 4, ndf * 2)
    p["w4"], p["b4"] = conv(ks[8], ks[9], ndf * 8, ndf * 4)
    lim = 1.0 / (fc_in ** 0.5)
    p["wc"] = jax.random.uniform(ks[10], (fc_in, 1), jnp.float32, -lim, lim)
    p["bc"] = jax.random.uniform(ks[11], (1,), jnp.float32, -lim, lim)
    return p


# -------------------------- pure-JAX reference ------------------------------


def reference_forward(params, map_nchw, feat_nchw):
    def conv(x, w, b):
        y = jax.lax.conv_general_dilated(
            x, jnp.transpose(w, (2, 3, 1, 0)), (2, 2), [(1, 1), (1, 1)],
            dimension_numbers=("NHWC", "HWIO", "NHWC"),
            precision=jax.lax.Precision.HIGHEST)
        return y + b

    lrelu = lambda v: jnp.where(v >= 0, v, 0.2 * v)
    m = jnp.transpose(map_nchw, (0, 2, 3, 1))
    f = jnp.transpose(feat_nchw, (0, 2, 3, 1))
    x = conv(m, params["w0"], params["b0"]) + conv(f, params["w1"], params["b1"])
    x = lrelu(conv(x, params["w2"], params["b2"]))
    x = lrelu(conv(x, params["w3"], params["b3"]))
    x = lrelu(conv(x, params["w4"], params["b4"]))
    n, h, w, c = x.shape
    ph, pw = h // 7, w // 7
    x = x[:, :ph * 7, :pw * 7, :].reshape(n, ph, 7, pw, 7, c).mean(axis=(2, 4))
    x = jnp.transpose(x, (0, 3, 1, 2)).reshape(n, -1)
    return x @ params["wc"] + params["bc"]


# ----------------------------------- main ------------------------------------


if __name__ == "__main__":
    key = jax.random.PRNGKey(0)
    k_map, k_feat, k_params = jax.random.split(key, 3)

    # Small, shape-consistent config (original: ndf=64, 512x512 input -> fc_in=512*4*4).
    batch, in_channels, num_classes, ndf, hw = 2, 3, 2, 8, 112
    map_x = jax.random.normal(k_map, (batch, num_classes, hw, hw), jnp.float32)
    feat_x = jax.random.normal(k_feat, (batch, in_channels, hw, hw), jnp.float32)

    h4 = hw // 16              # spatial after the 4 stride-2 convs
    ph = h4 // 7               # AvgPool2d((7,7)) output spatial
    fc_in = ndf * 8 * ph * ph  # classifier in_features (512*4*4 in the original)
    params = init_params(k_params, in_channels, num_classes, ndf, fc_in)

    out = jax.block_until_ready(fc_discriminator_forward(params, map_x, feat_x))
    ref = reference_forward(params, map_x, feat_x)

    assert out.shape == (batch, 1), out.shape
    assert jnp.allclose(out, ref, rtol=2e-2, atol=2e-2), (out, ref)
    print("KERNEL_OK")
</pallas_src>

<mosaic_0001>
module attributes {stable_mosaic.version = 11 : i64} {
  func.func @_fused_conv01_kernel(%arg0: i32, %arg1: memref<512x18xbf16, #tpu.memory_space<vmem>>, %arg2: memref<512x27xbf16, #tpu.memory_space<vmem>>, %arg3: memref<18x8xbf16, #tpu.memory_space<vmem>>, %arg4: memref<27x8xbf16, #tpu.memory_space<vmem>>, %arg5: memref<1x8xf32, #tpu.memory_space<vmem>>, %arg6: memref<512x8xf32, #tpu.memory_space<vmem>>) attributes {dimension_semantics = [#tpu.dimension_semantics<parallel>], iteration_bounds = array<i64: 13>, scalar_prefetch = 0 : i64, scratch_operands = 0 : i64, tpu.core_type = #tpu.core_type<tc>, window_params = [{transform_indices = @transform_0, window_bounds = array<i64: 512, 18>}, {transform_indices = @transform_1, window_bounds = array<i64: 512, 27>}, {pipeline_mode = #tpu.pipeline_mode<synchronous>, transform_indices = @transform_2, window_bounds = array<i64: 18, 8>}, {pipeline_mode = #tpu.pipeline_mode<synchronous>, transform_indices = @transform_3, window_bounds = array<i64: 27, 8>}, {pipeline_mode = #tpu.pipeline_mode<synchronous>, transform_indices = @transform_4, window_bounds = array<i64: 1, 8>}, {transform_indices = @transform_5, window_bounds = array<i64: 512, 8>}]} {
    %c0 = arith.constant 0 : index
    %c0_0 = arith.constant 0 : index
    %0 = vector.load %arg1[%c0, %c0_0] : memref<512x18xbf16, #tpu.memory_space<vmem>>, vector<512x18xbf16>
    %c0_1 = arith.constant 0 : index
    %c0_2 = arith.constant 0 : index
    %1 = vector.load %arg3[%c0_1, %c0_2] : memref<18x8xbf16, #tpu.memory_space<vmem>>, vector<18x8xbf16>
    %cst = arith.constant dense<0.000000e+00> : vector<512x8xf32>
    %2 = tpu.matmul %0, %1, %cst {dimension_numbers = #tpu.dot_dimension_numbers<[1], [0], [0], [1], [0, 0, 1, 1], [], []>} : vector<512x18xbf16>, vector<18x8xbf16>, vector<512x8xf32> -> vector<512x8xf32>
    %c0_3 = arith.constant 0 : index
    %c0_4 = arith.constant 0 : index
    %3 = vector.load %arg2[%c0_3, %c0_4] : memref<512x27xbf16, #tpu.memory_space<vmem>>, vector<512x27xbf16>
    %c0_5 = arith.constant 0 : index
    %c0_6 = arith.constant 0 : index
    %4 = vector.load %arg4[%c0_5, %c0_6] : memref<27x8xbf16, #tpu.memory_space<vmem>>, vector<27x8xbf16>
    %cst_7 = arith.constant dense<0.000000e+00> : vector<512x8xf32>
    %5 = tpu.matmul %3, %4, %cst_7 {dimension_numbers = #tpu.dot_dimension_numbers<[1], [0], [0], [1], [0, 0, 1, 1], [], []>} : vector<512x27xbf16>, vector<27x8xbf16>, vector<512x8xf32> -> vector<512x8xf32>
    %6 = arith.addf %2, %5 : vector<512x8xf32>
    %c0_8 = arith.constant 0 : index
    %c0_9 = arith.constant 0 : index
    %7 = vector.load %arg5[%c0_8, %c0_9] : memref<1x8xf32, #tpu.memory_space<vmem>>, vector<1x8xf32>
    %8 = vector.broadcast %7 : vector<1x8xf32> to vector<512x8xf32>
    %9 = arith.addf %6, %8 : vector<512x8xf32>
    %c0_10 = arith.constant 0 : index
    %c0_11 = arith.constant 0 : index
    %10 = vector.load %arg6[%c0_10, %c0_11] : memref<512x8xf32, #tpu.memory_space<vmem>>, vector<512x8xf32>
    tpu.vector_store %arg6[%c0_10, %c0_11], %9 {strides = array<i32>} : memref<512x8xf32, #tpu.memory_space<vmem>>, vector<512x8xf32>,
    return
  }
  func.func @transform_0(%arg0: i32) -> (i32, i32) {
    %c0_i32 = arith.constant 0 : i32
    %c0_i32_0 = arith.constant 0 : i32
    return %arg0, %c0_i32 : i32, i32
  }
  func.func @transform_1(%arg0: i32) -> (i32, i32) {
    %c0_i32 = arith.constant 0 : i32
    %c0_i32_0 = arith.constant 0 : i32
    return %arg0, %c0_i32 : i32, i32
  }
  func.func @transform_2(%arg0: i32) -> (i32, i32) {
    %c0_i32 = arith.constant 0 : i32
    %c0_i32_0 = arith.constant 0 : i32
    %c0_i32_1 = arith.constant 0 : i32
    return %c0_i32, %c0_i32_0 : i32, i32
  }
  func.func @transform_3(%arg0: i32) -> (i32, i32) {
    %c0_i32 = arith.constant 0 : i32
    %c0_i32_0 = arith.constant 0 : i32
    %c0_i32_1 = arith.constant 0 : i32
    return %c0_i32, %c0_i32_0 : i32, i32
  }
  func.func @transform_4(%arg0: i32) -> (i32, i32) {
    %c0_i32 = arith.constant 0 : i32
    %c0_i32_0 = arith.constant 0 : i32
    %c0_i32_1 = arith.constant 0 : i32
    return %c0_i32, %c0_i32_0 : i32, i32
  }
  func.func @transform_5(%arg0: i32) -> (i32, i32) {
    %c0_i32 = arith.constant 0 : i32
    %c0_i32_0 = arith.constant 0 : i32
    return %arg0, %c0_i32 : i32, i32
  }
}

module attributes {stable_mosaic.version = 11 : i64} {
  func.func @_conv_tap_kernel(%arg0: i32, %arg1: i32, %arg2: memref<1x512x8xbf16, #tpu.memory_space<vmem>>, %arg3: memref<1x8x16xbf16, #tpu.memory_space<vmem>>, %arg4: memref<1x16xf32, #tpu.memory_space<vmem>>, %arg5: memref<512x16xf32, #tpu.memory_space<vmem>>, %arg6: memref<512x16xf32, #tpu.memory_space<vmem>>) attributes {dimension_semantics = [#tpu.dimension_semantics<parallel>, #tpu.dimension_semantics<arbitrary>], iteration_bounds = array<i64: 4, 9>, scalar_prefetch = 0 : i64, scratch_operands = 1 : i64, tpu.core_type = #tpu.core_type<tc>, window_params = [{transform_indices = @transform_0, window_bounds = array<i64: 1, 512, 8>}, {transform_indices = @transform_1, window_bounds = array<i64: 1, 8, 16>}, {pipeline_mode = #tpu.pipeline_mode<synchronous>, transform_indices = @transform_2, window_bounds = array<i64: 1, 16>}, {transform_indices = @transform_3, window_bounds = array<i64: 512, 16>}]} {
    %c0_i32 = arith.constant 0 : i32
    %0 = arith.cmpi eq, %arg1, %c0_i32 : i32
    %1 = arith.extui %0 : i1 to i32
    %c0_i32_0 = arith.constant 0 : i32
    %2 = arith.cmpi ne, %1, %c0_i32_0 : i32
    scf.if %2 {
      %cst_11 = arith.constant 0.000000e+00 : f32
      %14 = vector.broadcast %cst_11 : f32 to vector<512x16xf32>
      %c0_12 = arith.constant 0 : index
      %c0_13 = arith.constant 0 : index
      %15 = vector.load %arg6[%c0_12, %c0_13] : memref<512x16xf32, #tpu.memory_space<vmem>>, vector<512x16xf32>
      tpu.vector_store %arg6[%c0_12, %c0_13], %14 {strides = array<i32>} : memref<512x16xf32, #tpu.memory_space<vmem>>, vector<512x16xf32>,
    } else {
    }
    %c0 = arith.constant 0 : index
    %c0_1 = arith.constant 0 : index
    %3 = vector.load %arg6[%c0, %c0_1] : memref<512x16xf32, #tpu.memory_space<vmem>>, vector<512x16xf32>
    %c0_2 = arith.constant 0 : index
    %c0_3 = arith.constant 0 : index
    %c0_4 = arith.constant 0 : index
    %4 = vector.load %arg2[%c0_2, %c0_3, %c0_4] : memref<1x512x8xbf16, #tpu.memory_space<vmem>>, vector<1x512x8xbf16>
    %5 = vector.shape_cast %4 : vector<1x512x8xbf16> to vector<512x8xbf16>
    %c0_5 = arith.constant 0 : index
    %c0_6 = arith.constant 0 : index
    %c0_7 = arith.constant 0 : index
    %6 = vector.load %arg3[%c0_5, %c0_6, %c0_7] : memref<1x8x16xbf16, #tpu.memory_space<vmem>>, vector<1x8x16xbf16>
    %7 = vector.shape_cast %6 : vector<1x8x16xbf16> to vector<8x16xbf16>
    %cst = arith.constant dense<0.000000e+00> : vector<512x16xf32>
    %8 = tpu.matmul %5, %7, %cst {dimension_numbers = #tpu.dot_dimension_numbers<[1], [0], [0], [1], [0, 0, 1, 1], [], []>} : vector<512x8xbf16>, vector<8x16xbf16>, vector<512x16xf32> -> vector<512x16xf32>
    %9 = arith.addf %3, %8 : vector<512x16xf32>
    %c0_8 = arith.constant 0 : index
    %c0_9 = arith.constant 0 : index
    %10 = vector.load %arg6[%c0_8, %c0_9] : memref<512x16xf32, #tpu.memory_space<vmem>>, vector<512x16xf32>
    tpu.vector_store %arg6[%c0_8, %c0_9], %9 {strides = array<i32>} : memref<512x16xf32, #tpu.memory_space<vmem>>, vector<512x16xf32>,
    %c8_i32 = arith.constant 8 : i32
    %11 = arith.cmpi eq, %arg1, %c8_i32 : i32
    %12 = arith.extui %11 : i1 to i32
    %c0_i32_10 = arith.constant 0 : i32
    %13 = arith.cmpi ne, %12, %c0_i32_10 : i32
    scf.if %13 {
      %c0_11 = arith.constant 0 : index
      %c0_12 = arith.constant 0 : index
      %14 = vector.load %arg6[%c0_11, %c0_12] : memref<512x16xf32, #tpu.memory_space<vmem>>, vector<512x16xf32>
      %c0_13 = arith.constant 0 : index
      %c0_14 = arith.constant 0 : index
      %15 = vector.load %arg4[%c0_13, %c0_14] : memref<1x16xf32, #tpu.memory_space<vmem>>, vector<1x16xf32>
      %16 = vector.broadcast %15 : vector<1x16xf32> to vector<512x16xf32>
      %17 = arith.addf %14, %16 : vector<512x16xf32>
      %cst_15 = arith.constant 0.000000e+00 : f32
      %18 = vector.broadcast %cst_15 : f32 to vector<512x16xf32>
      %19 = arith.cmpf oge, %17, %18 : vector<512x16xf32>
      %cst_16 = arith.constant 2.000000e-01 : f32
      %20 = vector.broadcast %cst_16 : f32 to vector<512x16xf32>
      %21 = arith.mulf %20, %17 : vector<512x16xf32>
      %22 = arith.select %19, %17, %21 : vector<512x16xi1>, vector<512x16xf32>
      %c0_17 = arith.constant 0 : index
      %c0_18 = arith.constant 0 : index
      %23 = vector.load %arg5[%c0_17, %c0_18] : memref<512x16xf32, #tpu.memory_space<vmem>>, vector<512x16xf32>
      tpu.vector_store %arg5[%c0_17, %c0_18], %22 {strides = array<i32>} : memref<512x16xf32, #tpu.memory_space<vmem>>, vector<512x16xf32>,
    } else {
    }
    return
  }
  func.func @transform_0(%arg0: i32, %arg1: i32) -> (i32, i32, i32) {
    %c0_i32 = arith.constant 0 : i32
    %c0_i32_0 = arith.constant 0 : i32
    return %arg1, %arg0, %c0_i32 : i32, i32, i32
  }
  func.func @transform_1(%arg0: i32, %arg1: i32) -> (i32, i32, i32) {
    %c0_i32 = arith.constant 0 : i32
    %c0_i32_0 = arith.constant 0 : i32
    %c0_i32_1 = arith.constant 0 : i32
    return %arg1, %c0_i32, %c0_i32_0 : i32, i32, i32
  }
  func.func @transform_2(%arg0: i32, %arg1: i32) -> (i32, i32) {
    %c0_i32 = arith.constant 0 : i32
    %c0_i32_0 = arith.constant 0 : i32
    %c0_i32_1 = arith.constant 0 : i32
    return %c0_i32, %c0_i32_0 : i32, i32
  }
  func.func @transform_3(%arg0: i32, %arg1: i32) -> (i32, i32) {
    %c0_i32 = arith.constant 0 : i32
    %c0_i32_0 = arith.constant 0 : i32
    return %arg0, %c0_i32 : i32, i32
  }
}

module attributes {stable_mosaic.version = 11 : i64} {
  func.func @_conv_tap_kernel(%arg0: i32, %arg1: i32, %arg2: memref<1x392x16xbf16, #tpu.memory_space<vmem>>, %arg3: memref<1x16x32xbf16, #tpu.memory_space<vmem>>, %arg4: memref<1x32xf32, #tpu.memory_space<vmem>>, %arg5: memref<392x32xf32, #tpu.memory_space<vmem>>, %arg6: memref<392x32xf32, #tpu.memory_space<vmem>>) attributes {dimension_semantics = [#tpu.dimension_semantics<parallel>, #tpu.dimension_semantics<arbitrary>], iteration_bounds = array<i64: 1, 9>, scalar_prefetch = 0 : i64, scratch_operands = 1 : i64, tpu.core_type = #tpu.core_type<tc>, window_params = [{transform_indices = @transform_0, window_bounds = array<i64: 1, 392, 16>}, {transform_indices = @transform_1, window_bounds = array<i64: 1, 16, 32>}, {pipeline_mode = #tpu.pipeline_mode<synchronous>, transform_indices = @transform_2, window_bounds = array<i64: 1, 32>}, {transform_indices = @transform_3, window_bounds = array<i64: 392, 32>}]} {
    %c0_i32 = arith.constant 0 : i32
    %0 = arith.cmpi eq, %arg1, %c0_i32 : i32
    %1 = arith.extui %0 : i1 to i32
    %c0_i32_0 = arith.constant 0 : i32
    %2 = arith.cmpi ne, %1, %c0_i32_0 : i32
    scf.if %2 {
      %cst_11 = arith.constant 0.000000e+00 : f32
      %14 = vector.broadcast %cst_11 : f32 to vector<392x32xf32>
      %c0_12 = arith.constant 0 : index
      %c0_13 = arith.constant 0 : index
      %15 = vector.load %arg6[%c0_12, %c0_13] : memref<392x32xf32, #tpu.memory_space<vmem>>, vector<392x32xf32>
      tpu.vector_store %arg6[%c0_12, %c0_13], %14 {strides = array<i32>} : memref<392x32xf32, #tpu.memory_space<vmem>>, vector<392x32xf32>,
    } else {
    }
    %c0 = arith.constant 0 : index
    %c0_1 = arith.constant 0 : index
    %3 = vector.load %arg6[%c0, %c0_1] : memref<392x32xf32, #tpu.memory_space<vmem>>, vector<392x32xf32>
    %c0_2 = arith.constant 0 : index
    %c0_3 = arith.constant 0 : index
    %c0_4 = arith.constant 0 : index
    %4 = vector.load %arg2[%c0_2, %c0_3, %c0_4] : memref<1x392x16xbf16, #tpu.memory_space<vmem>>, vector<1x392x16xbf16>
    %5 = vector.shape_cast %4 : vector<1x392x16xbf16> to vector<392x16xbf16>
    %c0_5 = arith.constant 0 : index
    %c0_6 = arith.constant 0 : index
    %c0_7 = arith.constant 0 : index
    %6 = vector.load %arg3[%c0_5, %c0_6, %c0_7] : memref<1x16x32xbf16, #tpu.memory_space<vmem>>, vector<1x16x32xbf16>
    %7 = vector.shape_cast %6 : vector<1x16x32xbf16> to vector<16x32xbf16>
    %cst = arith.constant dense<0.000000e+00> : vector<392x32xf32>
    %8 = tpu.matmul %5, %7, %cst {dimension_numbers = #tpu.dot_dimension_numbers<[1], [0], [0], [1], [0, 0, 1, 1], [], []>} : vector<392x16xbf16>, vector<16x32xbf16>, vector<392x32xf32> -> vector<392x32xf32>
    %9 = arith.addf %3, %8 : vector<392x32xf32>
    %c0_8 = arith.constant 0 : index
    %c0_9 = arith.constant 0 : index
    %10 = vector.load %arg6[%c0_8, %c0_9] : memref<392x32xf32, #tpu.memory_space<vmem>>, vector<392x32xf32>
    tpu.vector_store %arg6[%c0_8, %c0_9], %9 {strides = array<i32>} : memref<392x32xf32, #tpu.memory_space<vmem>>, vector<392x32xf32>,
    %c8_i32 = arith.constant 8 : i32
    %11 = arith.cmpi eq, %arg1, %c8_i32 : i32
    %12 = arith.extui %11 : i1 to i32
    %c0_i32_10 = arith.constant 0 : i32
    %13 = arith.cmpi ne, %12, %c0_i32_10 : i32
    scf.if %13 {
      %c0_11 = arith.constant 0 : index
      %c0_12 = arith.constant 0 : index
      %14 = vector.load %arg6[%c0_11, %c0_12] : memref<392x32xf32, #tpu.memory_space<vmem>>, vector<392x32xf32>
      %c0_13 = arith.constant 0 : index
      %c0_14 = arith.constant 0 : index
      %15 = vector.load %arg4[%c0_13, %c0_14] : memref<1x32xf32, #tpu.memory_space<vmem>>, vector<1x32xf32>
      %16 = vector.broadcast %15 : vector<1x32xf32> to vector<392x32xf32>
      %17 = arith.addf %14, %16 : vector<392x32xf32>
      %cst_15 = arith.constant 0.000000e+00 : f32
      %18 = vector.broadcast %cst_15 : f32 to vector<392x32xf32>
      %19 = arith.cmpf oge, %17, %18 : vector<392x32xf32>
      %cst_16 = arith.constant 2.000000e-01 : f32
      %20 = vector.broadcast %cst_16 : f32 to vector<392x32xf32>
      %21 = arith.mulf %20, %17 : vector<392x32xf32>
      %22 = arith.select %19, %17, %21 : vector<392x32xi1>, vector<392x32xf32>
      %c0_17 = arith.constant 0 : index
      %c0_18 = arith.constant 0 : index
      %23 = vector.load %arg5[%c0_17, %c0_18] : memref<392x32xf32, #tpu.memory_space<vmem>>, vector<392x32xf32>
      tpu.vector_store %arg5[%c0_17, %c0_18], %22 {strides = array<i32>} : memref<392x32xf32, #tpu.memory_space<vmem>>, vector<392x32xf32>,
    } else {
    }
    return
  }
  func.func @transform_0(%arg0: i32, %arg1: i32) -> (i32, i32, i32) {
    %c0_i32 = arith.constant 0 : i32
    %c0_i32_0 = arith.constant 0 : i32
    return %arg1, %arg0, %c0_i32 : i32, i32, i32
  }
  func.func @transform_1(%arg0: i32, %arg1: i32) -> (i32, i32, i32) {
    %c0_i32 = arith.constant 0 : i32
    %c0_i32_0 = arith.constant 0 : i32
    %c0_i32_1 = arith.constant 0 : i32
    return %arg1, %c0_i32, %c0_i32_0 : i32, i32, i32
  }
  func.func @transform_2(%arg0: i32, %arg1: i32) -> (i32, i32) {
    %c0_i32 = arith.constant 0 : i32
    %c0_i32_0 = arith.constant 0 : i32
    %c0_i32_1 = arith.constant 0 : i32
    return %c0_i32, %c0_i32_0 : i32, i32
  }
  func.func @transform_3(%arg0: i32, %arg1: i32) -> (i32, i32) {
    %c0_i32 = arith.constant 0 : i32
    %c0_i32_0 = arith.constant 0 : i32
    return %arg0, %c0_i32 : i32, i32
  }
}

module attributes {stable_mosaic.version = 11 : i64} {
  func.func @_conv_tap_kernel(%arg0: i32, %arg1: i32, %arg2: memref<1x104x32xbf16, #tpu.memory_space<vmem>>, %arg3: memref<1x32x64xbf16, #tpu.memory_space<vmem>>, %arg4: memref<1x64xf32, #tpu.memory_space<vmem>>, %arg5: memref<104x64xf32, #tpu.memory_space<vmem>>, %arg6: memref<104x64xf32, #tpu.memory_space<vmem>>) attributes {dimension_semantics = [#tpu.dimension_semantics<parallel>, #tpu.dimension_semantics<arbitrary>], iteration_bounds = array<i64: 1, 9>, scalar_prefetch = 0 : i64, scratch_operands = 1 : i64, tpu.core_type = #tpu.core_type<tc>, window_params = [{transform_indices = @transform_0, window_bounds = array<i64: 1, 104, 32>}, {transform_indices = @transform_1, window_bounds = array<i64: 1, 32, 64>}, {pipeline_mode = #tpu.pipeline_mode<synchronous>, transform_indices = @transform_2, window_bounds = array<i64: 1, 64>}, {transform_indices = @transform_3, window_bounds = array<i64: 104, 64>}]} {
    %c0_i32 = arith.constant 0 : i32
    %0 = arith.cmpi eq, %arg1, %c0_i32 : i32
    %1 = arith.extui %0 : i1 to i32
    %c0_i32_0 = arith.constant 0 : i32
    %2 = arith.cmpi ne, %1, %c0_i32_0 : i32
    scf.if %2 {
      %cst_11 = arith.constant 0.000000e+00 : f32
      %14 = vector.broadcast %cst_11 : f32 to vector<104x64xf32>
      %c0_12 = arith.constant 0 : index
      %c0_13 = arith.constant 0 : index
      %15 = vector.load %arg6[%c0_12, %c0_13] : memref<104x64xf32, #tpu.memory_space<vmem>>, vector<104x64xf32>
      tpu.vector_store %arg6[%c0_12, %c0_13], %14 {strides = array<i32>} : memref<104x64xf32, #tpu.memory_space<vmem>>, vector<104x64xf32>,
    } else {
    }
    %c0 = arith.constant 0 : index
    %c0_1 = arith.constant 0 : index
    %3 = vector.load %arg6[%c0, %c0_1] : memref<104x64xf32, #tpu.memory_space<vmem>>, vector<104x64xf32>
    %c0_2 = arith.constant 0 : index
    %c0_3 = arith.constant 0 : index
    %c0_4 = arith.constant 0 : index
    %4 = vector.load %arg2[%c0_2, %c0_3, %c0_4] : memref<1x104x32xbf16, #tpu.memory_space<vmem>>, vector<1x104x32xbf16>
    %5 = vector.shape_cast %4 : vector<1x104x32xbf16> to vector<104x32xbf16>
    %c0_5 = arith.constant 0 : index
    %c0_6 = arith.constant 0 : index
    %c0_7 = arith.constant 0 : index
    %6 = vector.load %arg3[%c0_5, %c0_6, %c0_7] : memref<1x32x64xbf16, #tpu.memory_space<vmem>>, vector<1x32x64xbf16>
    %7 = vector.shape_cast %6 : vector<1x32x64xbf16> to vector<32x64xbf16>
    %cst = arith.constant dense<0.000000e+00> : vector<104x64xf32>
    %8 = tpu.matmul %5, %7, %cst {dimension_numbers = #tpu.dot_dimension_numbers<[1], [0], [0], [1], [0, 0, 1, 1], [], []>} : vector<104x32xbf16>, vector<32x64xbf16>, vector<104x64xf32> -> vector<104x64xf32>
    %9 = arith.addf %3, %8 : vector<104x64xf32>
    %c0_8 = arith.constant 0 : index
    %c0_9 = arith.constant 0 : index
    %10 = vector.load %arg6[%c0_8, %c0_9] : memref<104x64xf32, #tpu.memory_space<vmem>>, vector<104x64xf32>
    tpu.vector_store %arg6[%c0_8, %c0_9], %9 {strides = array<i32>} : memref<104x64xf32, #tpu.memory_space<vmem>>, vector<104x64xf32>,
    %c8_i32 = arith.constant 8 : i32
    %11 = arith.cmpi eq, %arg1, %c8_i32 : i32
    %12 = arith.extui %11 : i1 to i32
    %c0_i32_10 = arith.constant 0 : i32
    %13 = arith.cmpi ne, %12, %c0_i32_10 : i32
    scf.if %13 {
      %c0_11 = arith.constant 0 : index
      %c0_12 = arith.constant 0 : index
      %14 = vector.load %arg6[%c0_11, %c0_12] : memref<104x64xf32, #tpu.memory_space<vmem>>, vector<104x64xf32>
      %c0_13 = arith.constant 0 : index
      %c0_14 = arith.constant 0 : index
      %15 = vector.load %arg4[%c0_13, %c0_14] : memref<1x64xf32, #tpu.memory_space<vmem>>, vector<1x64xf32>
      %16 = vector.broadcast %15 : vector<1x64xf32> to vector<104x64xf32>
      %17 = arith.addf %14, %16 : vector<104x64xf32>
      %cst_15 = arith.constant 0.000000e+00 : f32
      %18 = vector.broadcast %cst_15 : f32 to vector<104x64xf32>
      %19 = arith.cmpf oge, %17, %18 : vector<104x64xf32>
      %cst_16 = arith.constant 2.000000e-01 : f32
      %20 = vector.broadcast %cst_16 : f32 to vector<104x64xf32>
      %21 = arith.mulf %20, %17 : vector<104x64xf32>
      %22 = arith.select %19, %17, %21 : vector<104x64xi1>, vector<104x64xf32>
      %c0_17 = arith.constant 0 : index
      %c0_18 = arith.constant 0 : index
      %23 = vector.load %arg5[%c0_17, %c0_18] : memref<104x64xf32, #tpu.memory_space<vmem>>, vector<104x64xf32>
      tpu.vector_store %arg5[%c0_17, %c0_18], %22 {strides = array<i32>} : memref<104x64xf32, #tpu.memory_space<vmem>>, vector<104x64xf32>,
    } else {
    }
    return
  }
  func.func @transform_0(%arg0: i32, %arg1: i32) -> (i32, i32, i32) {
    %c0_i32 = arith.constant 0 : i32
    %c0_i32_0 = arith.constant 0 : i32
    return %arg1, %arg0, %c0_i32 : i32, i32, i32
  }
  func.func @transform_1(%arg0: i32, %arg1: i32) -> (i32, i32, i32) {
    %c0_i32 = arith.constant 0 : i32
    %c0_i32_0 = arith.constant 0 : i32
    %c0_i32_1 = arith.constant 0 : i32
    return %arg1, %c0_i32, %c0_i32_0 : i32, i32, i32
  }
  func.func @transform_2(%arg0: i32, %arg1: i32) -> (i32, i32) {
    %c0_i32 = arith.constant 0 : i32
    %c0_i32_0 = arith.constant 0 : i32
    %c0_i32_1 = arith.constant 0 : i32
    return %c0_i32, %c0_i32_0 : i32, i32
  }
  func.func @transform_3(%arg0: i32, %arg1: i32) -> (i32, i32) {
    %c0_i32 = arith.constant 0 : i32
    %c0_i32_0 = arith.constant 0 : i32
    return %arg0, %c0_i32 : i32, i32
  }
}

module attributes {stable_mosaic.version = 11 : i64} {
  func.func @_avgpool7_kernel(%arg0: i32, %arg1: i32, %arg2: memref<1x7x7x64xf32, #tpu.memory_space<vmem>>, %arg3: memref<1x1x1x64xf32, #tpu.memory_space<vmem>>) attributes {dimension_semantics = [#tpu.dimension_semantics<parallel>, #tpu.dimension_semantics<parallel>], iteration_bounds = array<i64: 2, 1>, scalar_prefetch = 0 : i64, scratch_operands = 0 : i64, tpu.core_type = #tpu.core_type<tc>, window_params = [{transform_indices = @transform_0, window_bounds = array<i64: 1, 7, 7, 64>}, {transform_indices = @transform_1, window_bounds = array<i64: 1, 1, 1, 64>}]} {
    %c0 = arith.constant 0 : index
    %c0_0 = arith.constant 0 : index
    %c0_1 = arith.constant 0 : index
    %c0_2 = arith.constant 0 : index
    %0 = vector.load %arg2[%c0, %c0_0, %c0_1, %c0_2] : memref<1x7x7x64xf32, #tpu.memory_space<vmem>>, vector<1x7x7x64xf32>
    %1 = vector.shape_cast %0 : vector<1x7x7x64xf32> to vector<7x7x64xf32>
    %cst = arith.constant dense<0.000000e+00> : vector<64xf32>
    %2 = vector.multi_reduction <add>, %1, %cst [0, 1] : vector<7x7x64xf32> to vector<64xf32>
    %3 = vector.shape_cast %2 : vector<64xf32> to vector<1x1x64xf32>
    %4 = vector.shape_cast %3 : vector<1x1x64xf32> to vector<1x64xf32>
    %cst_3 = arith.constant 0.0204081628 : f32
    %5 = vector.broadcast %cst_3 : f32 to vector<1x64xf32>
    %6 = arith.mulf %4, %5 : vector<1x64xf32>
    %c0_4 = arith.constant 0 : index
    %c0_5 = arith.constant 0 : index
    %c0_6 = arith.constant 0 : index
    %c0_7 = arith.constant 0 : index
    %7 = vector.load %arg3[%c0_4, %c0_5, %c0_6, %c0_7] : memref<1x1x1x64xf32, #tpu.memory_space<vmem>>, vector<1x1x1x64xf32>
    %8 = vector.shape_cast %7 : vector<1x1x1x64xf32> to vector<1x64xf32>
    %9 = vector.shape_cast %6 : vector<1x64xf32> to vector<1x1x1x64xf32>
    tpu.vector_store %arg3[%c0_4, %c0_5, %c0_6, %c0_7], %9 {strides = array<i32>} : memref<1x1x1x64xf32, #tpu.memory_space<vmem>>, vector<1x1x1x64xf32>,
    return
  }
  func.func @transform_0(%arg0: i32, %arg1: i32) -> (i32, i32, i32, i32) {
    %c0_i32 = arith.constant 0 : i32
    %c0_i32_0 = arith.constant 0 : i32
    %c0_i32_1 = arith.constant 0 : i32
    return %arg0, %arg1, %c0_i32, %c0_i32_0 : i32, i32, i32, i32
  }
  func.func @transform_1(%arg0: i32, %arg1: i32) -> (i32, i32, i32, i32) {
    %c0_i32 = arith.constant 0 : i32
    %c0_i32_0 = arith.constant 0 : i32
    %c0_i32_1 = arith.constant 0 : i32
    return %arg0, %arg1, %c0_i32, %c0_i32_0 : i32, i32, i32, i32
  }
}

</mosaic_0001>

<llo_original>
// kernel: fc_discriminator_forward.5
$region0: #{fc_discriminator_forward.5}
  #allocation0 [shape = 'u32[]', space=smem, size = 0x4, offset = 0x4, fixed_abs, tag = 'smem constant byte address 0x4 - core index']
  #allocation1 [shape = 'u32[144,128]{1,0:T(1,128)}', space=vmem, size = 0x12000, scoped, tag = 'internal scratch']
  %s0 = inlined_call_operand.vmem [shape: bf16[6656,18], index: 0, kind: input, shape index: {}]
  %s1 = inlined_call_operand.vmem [shape: bf16[6656,27], index: 1, kind: input, shape index: {}]
  %s2 = inlined_call_operand.vmem [shape: bf16[18,8], index: 2, kind: input, shape index: {}]
  %s3 = inlined_call_operand.vmem [shape: bf16[27,8], index: 3, kind: input, shape index: {}]
  %s4 = inlined_call_operand.vmem [shape: f32[1,8], index: 4, kind: input, shape index: {}]
  %s5 = inlined_call_operand.vmem [shape: f32[6656,8], index: 5, kind: output, shape index: {}]
  %s6 = sld [smem:[#allocation0]]
  $region53: #{fc_discriminator_forward.5} parent=0
    _
  %s8 = ssub.s32 1, %s6
  %s9 = scalar_select 0, %s8, %s6
  loop: start=0, step=1, limit=15
  $region2: #{fc_discriminator_forward.5} parent=0 // loop_pre_header
    _
  $region3: #{fc_discriminator_forward.5} parent=0 // loop_header
    %s11 = sphi 0, %s15
    %p12 = scmp.ge.s32.totalorder %s11, 15
    %s21 = sphi 0, %s23
    %s24 = sphi 0, %s21
    %s25 = sphi 0, %s24
    %s41 = sphi 0, %s25
    %s47 = sphi 0, %s49
    %s50 = sphi 0, %s47
    %s51 = sphi 0, %s50
    %s67 = sphi 0, %s51
    %s71 = sphi 0, %s71
    %s73 = sphi 0, %s71
    %s74 = sphi 0, %s73
    %s88 = sphi 0, %s74
    %s92 = sphi 0, %s92
    %s94 = sphi 0, %s92
    %s95 = sphi 0, %s94
    %s109 = sphi 0, %s95
    %s113 = sphi 0, %s113
    %s115 = sphi 0, %s113
    %s116 = sphi 0, %s115
    %s130 = sphi 0, %s116
    %s136 = sphi 0, %s138
    %s139 = sphi 0, %s136
    %s140 = sphi 0, %s139
    %s156 = sphi 0, %s140
  $region4: #{fc_discriminator_forward.5} parent=0 // loop_header_branch
    %14 = sbr.rel (%p12) target = $region8
  $region5: #{fc_discriminator_forward.5} parent=0 // loop_body
    %s16 = ssub.s32 %s11, 1
    %s17 = ssub.s32 %s11, 2
    %s18 = sadd.s32 %s11, 1
    %s19 = ssub.s32 %s11, %s18
    %p20 = scmp.eq.s32.totalorder %s19, 0
    %s22 = sadd.s32 %s21, 1
    %s23 = scalar_select %p20, %s21, %s22
    %p26 = pneg %p20
    %p27 = scmp.eq.s32.totalorder %s11, 12
    %p28 = por %p26, %p27
    %p29 = scmp.ne.s32.totalorder %s21, %s24
    %p30 = scmp.eq.s32.totalorder %s11, 0
    %p31 = por %p29, %p30
    %p32 = scmp.ne.s32.totalorder %s21, %s24
    %p33 = scmp.eq.s32.totalorder %s16, 12
    %p34 = por %p32, %p33
    %p35 = scmp.ne.s32.totalorder %s24, %s25
    %p36 = scmp.eq.s32.totalorder %s16, 0
    %p37 = por %p35, %p36
    %p38 = scmp.ne.s32.totalorder %s24, %s25
    %p39 = scmp.eq.s32.totalorder %s17, 12
    %p40 = por %p38, %p39
    %p42 = scmp.ne.s32.totalorder %s25, %s41
    %p43 = scmp.eq.s32.totalorder %s17, 0
    %p44 = por %p42, %p43
    %s45 = ssub.s32 %s11, %s18
    %p46 = scmp.eq.s32.totalorder %s45, 0
    %s48 = sadd.s32 %s47, 1
    %s49 = scalar_select %p46, %s47, %s48
    %p52 = pneg %p46
    %p53 = scmp.eq.s32.totalorder %s11, 12
    %p54 = por %p52, %p53
    %p55 = scmp.ne.s32.totalorder %s47, %s50
    %p56 = scmp.eq.s32.totalorder %s11, 0
    %p57 = por %p55, %p56
    %p58 = scmp.ne.s32.totalorder %s47, %s50
    %p59 = scmp.eq.s32.totalorder %s16, 12
    %p60 = por %p58, %p59
    %p61 = scmp.ne.s32.totalorder %s50, %s51
    %p62 = scmp.eq.s32.totalorder %s16, 0
    %p63 = por %p61, %p62
    %p64 = scmp.ne.s32.totalorder %s50, %s51
    %p65 = scmp.eq.s32.totalorder %s17, 12
    %p66 = por %p64, %p65
    %p68 = scmp.ne.s32.totalorder %s51, %s67
    %p69 = scmp.eq.s32.totalorder %s17, 0
    %p70 = por %p68, %p69
    %s72 = sadd.s32 %s71, 1
    %p75 = scmp.eq.s32.totalorder %s11, 12
    %p76 = scmp.ne.s32.totalorder %s71, %s73
    %p77 = scmp.eq.s32.totalorder %s11, 0
    %p78 = por %p76, %p77
    %p79 = scmp.ne.s32.totalorder %s71, %s73
    %p80 = scmp.eq.s32.totalorder %s16, 12
    %p81 = por %p79, %p80
    %p82 = scmp.ne.s32.totalorder %s73, %s74
    %p83 = scmp.eq.s32.totalorder %s16, 0
    %p84 = por %p82, %p83
    %p85 = scmp.ne.s32.totalorder %s73, %s74
    %p86 = scmp.eq.s32.totalorder %s17, 12
    %p87 = por %p85, %p86
    %p89 = scmp.ne.s32.totalorder %s74, %s88
    %p90 = scmp.eq.s32.totalorder %s17, 0
    %p91 = por %p89, %p90
    %s93 = sadd.s32 %s92, 1
    %p96 = scmp.eq.s32.totalorder %s11, 12
    %p97 = scmp.ne.s32.totalorder %s92, %s94
    %p98 = scmp.eq.s32.totalorder %s11, 0
    %p99 = por %p97, %p98
    %p100 = scmp.ne.s32.totalorder %s92, %s94
    %p101 = scmp.eq.s32.totalorder %s16, 12
    %p102 = por %p100, %p101
    %p103 = scmp.ne.s32.totalorder %s94, %s95
    %p104 = scmp.eq.s32.totalorder %s16, 0
    %p105 = por %p103, %p104
    %p106 = scmp.ne.s32.totalorder %s94, %s95
    %p107 = scmp.eq.s32.totalorder %s17, 12
    %p108 = por %p106, %p107
    %p110 = scmp.ne.s32.totalorder %s95, %s109
    %p111 = scmp.eq.s32.totalorder %s17, 0
    %p112 = por %p110, %p111
    %s114 = sadd.s32 %s113, 1
    %p117 = scmp.eq.s32.totalorder %s11, 12
    %p118 = scmp.ne.s32.totalorder %s113, %s115
    %p119 = scmp.eq.s32.totalorder %s11, 0
    %p120 = por %p118, %p119
    %p121 = scmp.ne.s32.totalorder %s113, %s115
    %p122 = scmp.eq.s32.totalorder %s16, 12
    %p123 = por %p121, %p122
    %p124 = scmp.ne.s32.totalorder %s115, %s116
    %p125 = scmp.eq.s32.totalorder %s16, 0
    %p126 = por %p124, %p125
    %p127 = scmp.ne.s32.totalorder %s115, %s116
    %p128 = scmp.eq.s32.totalorder %s17, 12
    %p129 = por %p127, %p128
    %p131 = scmp.ne.s32.totalorder %s116, %s130
    %p132 = scmp.eq.s32.totalorder %s17, 0
    %p133 = por %p131, %p132
    %s134 = ssub.s32 %s11, %s18
    %p135 = scmp.eq.s32.totalorder %s134, 0
    %s137 = sadd.s32 %s136, 1
    %s138 = scalar_select %p135, %s136, %s137
    %p141 = pneg %p135
    %p142 = scmp.eq.s32.totalorder %s11, 12
    %p143 = por %p141, %p142
    %p144 = scmp.ne.s32.totalorder %s136, %s139
    %p145 = scmp.eq.s32.totalorder %s11, 0
    %p146 = por %p144, %p145
    %p147 = scmp.ne.s32.totalorder %s136, %s139
    %p148 = scmp.eq.s32.totalorder %s16, 12
    %p149 = por %p147, %p148
    %p150 = scmp.ne.s32.totalorder %s139, %s140
    %p151 = scmp.eq.s32.totalorder %s16, 0
    %p152 = por %p150, %p151
    %p153 = scmp.ne.s32.totalorder %s139, %s140
    %p154 = scmp.eq.s32.totalorder %s17, 12
    %p155 = por %p153, %p154
    %p157 = scmp.ne.s32.totalorder %s140, %s156
    %p158 = scmp.eq.s32.totalorder %s17, 0
    %p159 = por %p157, %p158
    %p160 = scmp.le.s32.totalorder 1, %s11
    %p161 = scmp.lt.s32.totalorder %s11, 14
    %p162 = pnand %p160, %p161
    %p163 = pneg %p162
    // Predicated region
    $region9: #{fc_discriminator_forward.5} parent=5 // pred_check
      _
    $region10: #{fc_discriminator_forward.5} parent=5 // pred_check_branch
      %165 = sbr.rel (%p162) target = $region12
    $region11: #{fc_discriminator_forward.5} parent=5 // pred_region
      %s166 = ssub.s32 %s11, 1
      // Predicated region
      $region13: #{fc_discriminator_forward.5} parent=11 // pred_check
        %p167 = pneg %p84
      $region14: #{fc_discriminator_forward.5} parent=11 // pred_check_branch
        %169 = sbr.rel (%p167) target = $region16
      $region15: #{fc_discriminator_forward.5} parent=11 // pred_region
        _
      $region16: #{fc_discriminator_forward.5} parent=11 // pred_fallthru
        _
      // Predicated region
      $region17: #{fc_discriminator_forward.5} parent=11 // pred_check
        %p170 = pneg %p105
      $region18: #{fc_discriminator_forward.5} parent=11 // pred_check_branch
        %172 = sbr.rel (%p170) target = $region20
      $region19: #{fc_discriminator_forward.5} parent=11 // pred_region
        _
      $region20: #{fc_discriminator_forward.5} parent=11 // pred_fallthru
        _
      // Predicated region
      $region21: #{fc_discriminator_forward.5} parent=11 // pred_check
        %p173 = pneg %p126
      $region22: #{fc_discriminator_forward.5} parent=11 // pred_check_branch
        %175 = sbr.rel (%p173) target = $region24
      $region23: #{fc_discriminator_forward.5} parent=11 // pred_region
        _
      $region24: #{fc_discriminator_forward.5} parent=11 // pred_fallthru
        _
    $region12: #{fc_discriminator_forward.5} parent=5 // pred_fallthru
      _
    %p176 = scmp.lt.s32.totalorder %s11, 13
    // Predicated region
    $region25: #{fc_discriminator_forward.5} parent=5 // pred_check
      %p177 = pneg %p176
    $region26: #{fc_discriminator_forward.5} parent=5 // pred_check_branch
      %179 = sbr.rel (%p177) target = $region28
    $region27: #{fc_discriminator_forward.5} parent=5 // pred_region
      // Predicated region
      $region29: #{fc_discriminator_forward.5} parent=27 // pred_check
        %p180 = pneg %p31
      $region30: #{fc_discriminator_forward.5} parent=27 // pred_check_branch
        %182 = sbr.rel (%p180) target = $region32
      $region31: #{fc_discriminator_forward.5} parent=27 // pred_region
        %s183 = smul.u32 64, %s11
        %p184 = scmp.lt.s32.totalorder %s183, 831
        %s185 = scalar_select %p184, %s183, 831
        %s186 = smul.addr %s185, 4
        %s187 = scalar_lea.vmem %s0, %s186
        %s188 = smul.u32 64, %s11
      $region32: #{fc_discriminator_forward.5} parent=27 // pred_fallthru
        _
      // Predicated region
      $region33: #{fc_discriminator_forward.5} parent=27 // pred_check
        %p189 = pneg %p57
      $region34: #{fc_discriminator_forward.5} parent=27 // pred_check_branch
        %191 = sbr.rel (%p189) target = $region36
      $region35: #{fc_discriminator_forward.5} parent=27 // pred_region
        %s192 = smul.u32 64, %s11
        %p193 = scmp.lt.s32.totalorder %s192, 831
        %s194 = scalar_select %p193, %s192, 831
        %s195 = smul.addr %s194, 4
        %s196 = scalar_lea.vmem %s1, %s195
        %s197 = smul.u32 64, %s11
      $region36: #{fc_discriminator_forward.5} parent=27 // pred_fallthru
        _
    $region28: #{fc_discriminator_forward.5} parent=5 // pred_fallthru
      _
    %p198 = scmp.le.s32.totalorder 1, %s11
    %p199 = scmp.lt.s32.totalorder %s11, 14
    %p200 = pnand %p198, %p199
    %p201 = pneg %p200
    // Predicated region
    $region37: #{fc_discriminator_forward.5} parent=5 // pred_check
      _
    $region38: #{fc_discriminator_forward.5} parent=5 // pred_check_branch
      %203 = sbr.rel (%p200) target = $region40
    $region39: #{fc_discriminator_forward.5} parent=5 // pred_region
      %s204 = ssub.s32 %s11, 1
      %s205 = smul.u32 64, %s16
      %p206 = scmp.lt.s32.totalorder %s205, 831
      %s207 = scalar_select %p206, %s205, 831
      %s208 = smul.addr %s207, 4
      %s209 = scalar_lea.vmem %s0, %s208
      %p210 = pneg %p37
      %p211 = pneg %p34
      %s212 = smul.u32 64, %s16
      %p213 = scmp.lt.s32.totalorder %s212, 831
      %s214 = scalar_select %p213, %s212, 831
      %s215 = smul.addr %s214, 4
      %s216 = scalar_lea.vmem %s1, %s215
      %p217 = pneg %p63
      %p218 = pneg %p60
      %p219 = pneg %p84
      %p220 = pneg %p81
      %p221 = pneg %p105
      %p222 = pneg %p102
      %p223 = pneg %p126
      %p224 = pneg %p123
      %p225 = pneg %p152
      %p226 = pneg %p149
      %s227 = smul.u32 64, %s16
      %p228 = scmp.lt.s32.totalorder %s227, 831
      %s229 = scalar_select %p228, %s227, 831
      %s230 = smul.addr %s229, 8
      %s231 = scalar_lea.vmem %s5, %s230
      %s232 = smul.u32 64, %s16
      %p233 = scmp.lt.s32.totalorder %s232, 831
      %s234 = scalar_select %p233, %s232, 831
      %s235 = smul.addr %s234, 4
      %s236 = scalar_lea.vmem %s0, %s235
      %s237 = smul.u32 64, %s16
      %s238 = smul.u32 64, %s16
      %p239 = scmp.lt.s32.totalorder %s238, 831
      %s240 = scalar_select %p239, %s238, 831
      %s241 = smul.addr %s240, 4
      %s242 = scalar_lea.vmem %s1, %s241
      %s243 = smul.u32 64, %s16
      %s244 = smul.u32 64, %s16
      %p245 = scmp.lt.s32.totalorder %s244, 831
      %s246 = scalar_select %p245, %s244, 831
      %s247 = smul.addr %s246, 8
      %s248 = scalar_lea.vmem %s5, %s247
      %s249 = smul.u32 64, %s16
      %v251 = vld [vmem:[%s236] sm:$0xf]
      %v252 = vld [vmem:[%s236 + $0x4] sm:$0xf]
      %v253 = vld [vmem:[%s236 + $0x8] sm:$0xf]
      %v254 = vld [vmem:[%s236 + $0xc] sm:$0xf]
      %v255 = vld [vmem:[%s236 + $0x10] sm:$0xf]
      %v256 = vld [vmem:[%s236 + $0x14] sm:$0xf]
      %v257 = vld [vmem:[%s236 + $0x18] sm:$0xf]
      %v258 = vld [vmem:[%s236 + $0x1c] sm:$0xf]
      %v259 = vld [vmem:[%s236 + $0x20] sm:$0xf]
      %v260 = vld [vmem:[%s236 + $0x24] sm:$0xf]
      %v261 = vld [vmem:[%s236 + $0x28] sm:$0xf]
      %v262 = vld [vmem:[%s236 + $0x2c] sm:$0xf]
      %v263 = vld [vmem:[%s236 + $0x30] sm:$0xf]
      %v264 = vld [vmem:[%s236 + $0x34] sm:$0xf]
      %v265 = vld [vmem:[%s236 + $0x38] sm:$0xf]
      %v266 = vld [vmem:[%s236 + $0x3c] sm:$0xf]
      %v267 = vld [vmem:[%s236 + $0x40] sm:$0xf]
      %v268 = vld [vmem:[%s236 + $0x44] sm:$0xf]
      %v269 = vld [vmem:[%s236 + $0x48] sm:$0xf]
      %v270 = vld [vmem:[%s236 + $0x4c] sm:$0xf]
      %v271 = vld [vmem:[%s236 + $0x50] sm:$0xf]
      %v272 = vld [vmem:[%s236 + $0x54] sm:$0xf]
      %v273 = vld [vmem:[%s236 + $0x58] sm:$0xf]
      %v274 = vld [vmem:[%s236 + $0x5c] sm:$0xf]
      %v275 = vld [vmem:[%s236 + $0x60] sm:$0xf]
      %v276 = vld [vmem:[%s236 + $0x64] sm:$0xf]
      %v277 = vld [vmem:[%s236 + $0x68] sm:$0xf]
      %v278 = vld [vmem:[%s236 + $0x6c] sm:$0xf]
      %v279 = vld [vmem:[%s236 + $0x70] sm:$0xf]
      %v280 = vld [vmem:[%s236 + $0x74] sm:$0xf]
      %v281 = vld [vmem:[%s236 + $0x78] sm:$0xf]
      %v282 = vld [vmem:[%s236 + $0x7c] sm:$0xf]
      %v283 = vld [vmem:[%s236 + $0x80] sm:$0xf]
      %v284 = vld [vmem:[%s236 + $0x84] sm:$0xf]
      %v285 = vld [vmem:[%s236 + $0x88] sm:$0xf]
      %v286 = vld [vmem:[%s236 + $0x8c] sm:$0xf]
      %v287 = vld [vmem:[%s236 + $0x90] sm:$0xf]
      %v288 = vld [vmem:[%s236 + $0x94] sm:$0xf]
      %v289 = vld [vmem:[%s236 + $0x98] sm:$0xf]
      %v290 = vld [vmem:[%s236 + $0x9c] sm:$0xf]
      %v291 = vld [vmem:[%s236 + $0xa0] sm:$0xf]
      %v292 = vld [vmem:[%s236 + $0xa4] sm:$0xf]
      %v293 = vld [vmem:[%s236 + $0xa8] sm:$0xf]
      %v294 = vld [vmem:[%s236 + $0xac] sm:$0xf]
      %v295 = vld [vmem:[%s236 + $0xb0] sm:$0xf]
      %v296 = vld [vmem:[%s236 + $0xb4] sm:$0xf]
      %v297 = vld [vmem:[%s236 + $0xb8] sm:$0xf]
      %v298 = vld [vmem:[%s236 + $0xbc] sm:$0xf]
      %v299 = vld [vmem:[%s236 + $0xc0] sm:$0xf]
      %v300 = vld [vmem:[%s236 + $0xc4] sm:$0xf]
      %v301 = vld [vmem:[%s236 + $0xc8] sm:$0xf]
      %v302 = vld [vmem:[%s236 + $0xcc] sm:$0xf]
      %v303 = vld [vmem:[%s236 + $0xd0] sm:$0xf]
      %v304 = vld [vmem:[%s236 + $0xd4] sm:$0xf]
      %v305 = vld [vmem:[%s236 + $0xd8] sm:$0xf]
      %v306 = vld [vmem:[%s236 + $0xdc] sm:$0xf]
      %v307 = vld [vmem:[%s236 + $0xe0] sm:$0xf]
      %v308 = vld [vmem:[%s236 + $0xe4] sm:$0xf]
      %v309 = vld [vmem:[%s236 + $0xe8] sm:$0xf]
      %v310 = vld [vmem:[%s236 + $0xec] sm:$0xf]
      %v311 = vld [vmem:[%s236 + $0xf0] sm:$0xf]
      %v312 = vld [vmem:[%s236 + $0xf4] sm:$0xf]
      %v313 = vld [vmem:[%s236 + $0xf8] sm:$0xf]
      %v314 = vld [vmem:[%s236 + $0xfc] sm:$0xf]
      %v315 = vld [vmem:[%s2] sm:$0xf]
      %v316 = vld [vmem:[%s2 + $0x4] sm:$0xf]
      %v317 = vld [vmem:[%s2 + $0x8] sm:$0x1]
      %v318 = vld [vmem:[%s242] sm:$0xf]
      %v319 = vld [vmem:[%s242 + $0x4] sm:$0xf]
      %v320 = vld [vmem:[%s242 + $0x8] sm:$0xf]
      %v321 = vld [vmem:[%s242 + $0xc] sm:$0xf]
      %v322 = vld [vmem:[%s242 + $0x10] sm:$0xf]
      %v323 = vld [vmem:[%s242 + $0x14] sm:$0xf]
      %v324 = vld [vmem:[%s242 + $0x18] sm:$0xf]
      %v325 = vld [vmem:[%s242 + $0x1c] sm:$0xf]
      %v326 = vld [vmem:[%s242 + $0x20] sm:$0xf]
      %v327 = vld [vmem:[%s242 + $0x24] sm:$0xf]
      %v328 = vld [vmem:[%s242 + $0x28] sm:$0xf]
      %v329 = vld [vmem:[%s242 + $0x2c] sm:$0xf]
      %v330 = vld [vmem:[%s242 + $0x30] sm:$0xf]
      %v331 = vld [vmem:[%s242 + $0x34] sm:$0xf]
      %v332 = vld [vmem:[%s242 + $0x38] sm:$0xf]
      %v333 = vld [vmem:[%s242 + $0x3c] sm:$0xf]
      %v334 = vld [vmem:[%s242 + $0x40] sm:$0xf]
      %v335 = vld [vmem:[%s242 + $0x44] sm:$0xf]
      %v336 = vld [vmem:[%s242 + $0x48] sm:$0xf]
      %v337 = vld [vmem:[%s242 + $0x4c] sm:$0xf]
      %v338 = vld [vmem:[%s242 + $0x50] sm:$0xf]
      %v339 = vld [vmem:[%s242 + $0x54] sm:$0xf]
      %v340 = vld [vmem:[%s242 + $0x58] sm:$0xf]
      %v341 = vld [vmem:[%s242 + $0x5c] sm:$0xf]
      %v342 = vld [vmem:[%s242 + $0x60] sm:$0xf]
      %v343 = vld [vmem:[%s242 + $0x64] sm:$0xf]
      %v344 = vld [vmem:[%s242 + $0x68] sm:$0xf]
      %v345 = vld [vmem:[%s242 + $0x6c] sm:$0xf]
      %v346 = vld [vmem:[%s242 + $0x70] sm:$0xf]
      %v347 = vld [vmem:[%s242 + $0x74] sm:$0xf]
      %v348 = vld [vmem:[%s242 + $0x78] sm:$0xf]
      %v349 = vld [vmem:[%s242 + $0x7c] sm:$0xf]
      %v350 = vld [vmem:[%s242 + $0x80] sm:$0xf]
      %v351 = vld [vmem:[%s242 + $0x84] sm:$0xf]
      %v352 = vld [vmem:[%s242 + $0x88] sm:$0xf]
      %v353 = vld [vmem:[%s242 + $0x8c] sm:$0xf]
      %v354 = vld [vmem:[%s242 + $0x90] sm:$0xf]
      %v355 = vld [vmem:[%s242 + $0x94] sm:$0xf]
      %v356 = vld [vmem:[%s242 + $0x98] sm:$0xf]
      %v357 = vld [vmem:[%s242 + $0x9c] sm:$0xf]
      %v358 = vld [vmem:[%s242 + $0xa0] sm:$0xf]
      %v359 = vld [vmem:[%s242 + $0xa4] sm:$0xf]
      %v360 = vld [vmem:[%s242 + $0xa8] sm:$0xf]
      %v361 = vld [vmem:[%s242 + $0xac] sm:$0xf]
      %v362 = vld [vmem:[%s242 + $0xb0] sm:$0xf]
      %v363 = vld [vmem:[%s242 + $0xb4] sm:$0xf]
      %v364 = vld [vmem:[%s242 + $0xb8] sm:$0xf]
      %v365 = vld [vmem:[%s242 + $0xbc] sm:$0xf]
      %v366 = vld [vmem:[%s242 + $0xc0] sm:$0xf]
      %v367 = vld [vmem:[%s242 + $0xc4] sm:$0xf]
      %v368 = vld [vmem:[%s242 + $0xc8] sm:$0xf]
      %v369 = vld [vmem:[%s242 + $0xcc] sm:$0xf]
      %v370 = vld [vmem:[%s242 + $0xd0] sm:$0xf]
      %v371 = vld [vmem:[%s242 + $0xd4] sm:$0xf]
      %v372 = vld [vmem:[%s242 + $0xd8] sm:$0xf]
      %v373 = vld [vmem:[%s242 + $0xdc] sm:$0xf]
      %v374 = vld [vmem:[%s242 + $0xe0] sm:$0xf]
      %v375 = vld [vmem:[%s242 + $0xe4] sm:$0xf]
      %v376 = vld [vmem:[%s242 + $0xe8] sm:$0xf]
      %v377 = vld [vmem:[%s242 + $0xec] sm:$0xf]
      %v378 = vld [vmem:[%s242 + $0xf0] sm:$0xf]
      %v379 = vld [vmem:[%s242 + $0xf4] sm:$0xf]
      %v380 = vld [vmem:[%s242 + $0xf8] sm:$0xf]
      %v381 = vld [vmem:[%s242 + $0xfc] sm:$0xf]
      %v382 = vld [vmem:[%s3] sm:$0xf]
      %v383 = vld [vmem:[%s3 + $0x4] sm:$0xf]
      %v384 = vld [vmem:[%s3 + $0x8] sm:$0xf]
      %v385 = vld [vmem:[%s3 + $0xc] sm:$0x3]
      %v450 = vunpack.c.l.b16 %v318
      %v451 = vunpack.c.l.b16 %v319
      %v452 = vunpack.c.l.b16 %v320
      %v453 = vunpack.c.l.b16 %v321
      %v454 = vunpack.c.l.b16 %v322
      %v455 = vunpack.c.l.b16 %v323
      %v456 = vunpack.c.l.b16 %v324
      %v457 = vunpack.c.l.b16 %v325
      %v458 = vunpack.c.l.b16 %v326
      %v459 = vunpack.c.l.b16 %v327
      %v460 = vunpack.c.l.b16 %v328
      %v461 = vunpack.c.l.b16 %v329
      %v462 = vunpack.c.l.b16 %v330
      %v463 = vunpack.c.l.b16 %v331
      %v464 = vunpack.c.l.b16 %v332
      %v465 = vunpack.c.l.b16 %v333
      %v466 = vunpack.c.l.b16 %v334
      %v467 = vunpack.c.l.b16 %v335
      %v468 = vunpack.c.l.b16 %v336
      %v469 = vunpack.c.l.b16 %v337
      %v470 = vunpack.c.l.b16 %v338
      %v471 = vunpack.c.l.b16 %v339
      %v472 = vunpack.c.l.b16 %v340
      %v473 = vunpack.c.l.b16 %v341
      %v474 = vunpack.c.l.b16 %v342
      %v475 = vunpack.c.l.b16 %v343
      %v476 = vunpack.c.l.b16 %v344
      %v477 = vunpack.c.l.b16 %v345
      %v478 = vunpack.c.l.b16 %v346
      %v479 = vunpack.c.l.b16 %v347
      %v480 = vunpack.c.l.b16 %v348
      %v481 = vunpack.c.l.b16 %v349
      %v482 = vunpack.c.l.b16 %v350
      %v483 = vunpack.c.l.b16 %v351
      %v484 = vunpack.c.l.b16 %v352
      %v485 = vunpack.c.l.b16 %v353
      %v486 = vunpack.c.l.b16 %v354
      %v487 = vunpack.c.l.b16 %v355
      %v488 = vunpack.c.l.b16 %v356
      %v489 = vunpack.c.l.b16 %v357
      %v490 = vunpack.c.l.b16 %v358
      %v491 = vunpack.c.l.b16 %v359
      %v492 = vunpack.c.l.b16 %v360
      %v493 = vunpack.c.l.b16 %v361
      %v494 = vunpack.c.l.b16 %v362
      %v495 = vunpack.c.l.b16 %v363
      %v496 = vunpack.c.l.b16 %v364
      %v497 = vunpack.c.l.b16 %v365
      %v498 = vunpack.c.l.b16 %v366
      %v499 = vunpack.c.l.b16 %v367
      %v500 = vunpack.c.l.b16 %v368
      %v501 = vunpack.c.l.b16 %v369
      %v502 = vunpack.c.l.b16 %v370
      %v503 = vunpack.c.l.b16 %v371
      %v504 = vunpack.c.l.b16 %v372
      %v505 = vunpack.c.l.b16 %v373
      %v506 = vunpack.c.l.b16 %v374
      %v507 = vunpack.c.l.b16 %v375
      %v508 = vunpack.c.l.b16 %v376
      %v509 = vunpack.c.l.b16 %v377
      %v510 = vunpack.c.l.b16 %v378
      %v511 = vunpack.c.l.b16 %v379
      %v512 = vunpack.c.l.b16 %v380
      %v513 = vunpack.c.l.b16 %v381
      %v514 = vpack.c.b16 %v451, %v450
      %v515 = vpack.c.b16 %v453, %v452
      %v516 = vpack.c.b16 %v455, %v454
      %v517 = vpack.c.b16 %v457, %v456
      %v518 = vpack.c.b16 %v459, %v458
      %v519 = vpack.c.b16 %v461, %v460
      %v520 = vpack.c.b16 %v463, %v462
      %v521 = vpack.c.b16 %v465, %v464
      %v522 = vpack.c.b16 %v467, %v466
      %v523 = vpack.c.b16 %v469, %v468
      %v524 = vpack.c.b16 %v471, %v470
      %v525 = vpack.c.b16 %v473, %v472
      %v526 = vpack.c.b16 %v475, %v474
      %v527 = vpack.c.b16 %v477, %v476
      %v528 = vpack.c.b16 %v479, %v478
      %v529 = vpack.c.b16 %v481, %v480
      %v530 = vpack.c.b16 %v483, %v482
      %v531 = vpack.c.b16 %v485, %v484
      %v532 = vpack.c.b16 %v487, %v486
      %v533 = vpack.c.b16 %v489, %v488
      %v534 = vpack.c.b16 %v491, %v490
      %v535 = vpack.c.b16 %v493, %v492
      %v536 = vpack.c.b16 %v495, %v494
      %v537 = vpack.c.b16 %v497, %v496
      %v538 = vpack.c.b16 %v499, %v498
      %v539 = vpack.c.b16 %v501, %v500
      %v540 = vpack.c.b16 %v503, %v502
      %v541 = vpack.c.b16 %v505, %v504
      %v542 = vpack.c.b16 %v507, %v506
      %v543 = vpack.c.b16 %v509, %v508
      %v544 = vpack.c.b16 %v511, %v510
      %v545 = vpack.c.b16 %v513, %v512
      %v550 = vunpack.c.l.b16 %v382
      %v551 = vunpack.c.l.b16 %v383
      %v552 = vunpack.c.l.b16 %v384
      %v553 = vunpack.c.l.b16 %v385
      %v554 = vpack.c.b16 %v551, %v550
      %v555 = vpack.c.b16 %v553, %v552
      %vm557 = vcmask 220160
      %v559 = vsel %vm557, %v514, 0
      %v562 = vsel %vm557, %v515, 0
      %v565 = vsel %vm557, %v516, 0
      %v568 = vsel %vm557, %v517, 0
      %v571 = vsel %vm557, %v518, 0
      %v574 = vsel %vm557, %v519, 0
      %v577 = vsel %vm557, %v520, 0
      %v580 = vsel %vm557, %v521, 0
      %v583 = vsel %vm557, %v522, 0
      %v586 = vsel %vm557, %v523, 0
      %v589 = vsel %vm557, %v524, 0
      %v592 = vsel %vm557, %v525, 0
      %v595 = vsel %vm557, %v526, 0
      %v598 = vsel %vm557, %v527, 0
      %v601 = vsel %vm557, %v528, 0
      %v604 = vsel %vm557, %v529, 0
      %v607 = vsel %vm557, %v530, 0
      %v610 = vsel %vm557, %v531, 0
      %v613 = vsel %vm557, %v532, 0
      %v616 = vsel %vm557, %v533, 0
      %v619 = vsel %vm557, %v534, 0
      %v622 = vsel %vm557, %v535, 0
      %v625 = vsel %vm557, %v536, 0
      %v628 = vsel %vm557, %v537, 0
      %v631 = vsel %vm557, %v538, 0
      %v634 = vsel %vm557, %v539, 0
      %v637 = vsel %vm557, %v540, 0
      %v640 = vsel %vm557, %v541, 0
      %v643 = vsel %vm557, %v542, 0
      %v646 = vsel %vm557, %v543, 0
      %v649 = vsel %vm557, %v544, 0
      %v652 = vsel %vm557, %v545, 0
      %vm654 = vcmask 1044480
      %vm655 = vcmask 1045504
      %v656 = vsel %vm654, 4294967295, 65535
      %v657 = vsel %vm655, %v656, 0
      %v659 = vand.u32 %v555, %v657
      %661 = vmatprep.subr.bf16.mxu0 0
      %662 = vmatpush1.bf16.msra.mxu0 %v554
      %663 = vmatprep.subr.bf16.mxu0 0
      %664 = vmatpush1.bf16.msra.mxu0 %v659
      %665 = vmatprep.subr.bf16.mxu0 0
      %666 = vmatpush1.bf16.msra.mxu0 0
      %667 = vmatprep.subr.bf16.mxu0 0
      %668 = vmatpush1.bf16.msra.mxu0 0
      %669 = vmatprep.subr.bf16.mxu0 0
      %670 = vmatpush1.bf16.msra.mxu0 0
      %671 = vmatprep.subr.bf16.mxu0 0
      %672 = vmatpush1.bf16.msra.mxu0 0
      %673 = vmatprep.subr.bf16.mxu0 0
      %674 = vmatpush1.bf16.msra.mxu0 0
      %675 = vmatprep.subr.bf16.mxu0 0
      %676 = vmatpush1.bf16.msra.mxu0 0
      %677 = vmatprep.subr.bf16.mxu0 0
      %678 = vmatpush1.bf16.msra.mxu0 0
      %679 = vmatprep.subr.bf16.mxu0 0
      %680 = vmatpush1.bf16.msra.mxu0 0
      %681 = vmatprep.subr.bf16.mxu0 0
      %682 = vmatpush1.bf16.msra.mxu0 0
      %683 = vmatprep.subr.bf16.mxu0 0
      %684 = vmatpush1.bf16.msra.mxu0 0
      %685 = vmatprep.subr.bf16.mxu0 0
      %686 = vmatpush1.bf16.msra.mxu0 0
      %687 = vmatprep.subr.bf16.mxu0 0
      %688 = vmatpush1.bf16.msra.mxu0 0
      %689 = vmatprep.subr.bf16.mxu0 0
      %690 = vmatpush1.bf16.msra.mxu0 0
      %691 = vmatprep.subr.bf16.mxu0 0
      %692 = vmatpush1.bf16.msra.mxu0 0
      %693 = vmatprep.mubr.bf16.mxu0 0
      %694 = vmatmul.mubr.bf16.gmra.mrb[0].mxu0 %v559
      %v695 = vpop.f32.mrb[0].mxu0
      %v696 = vadd.f32 0.0, %v695
      %v697 = vpop.f32.mrb[0].mxu0
      %v698 = vpop.f32.mrb[0].mxu0
      %v699 = vadd.f32 0.0, %v698
      %v700 = vpop.f32.mrb[0].mxu0
      %701 = vmatprep.mubr.bf16.mxu0 0
      %702 = vmatmul.mubr.bf16.gmra.mrb[0].mxu0 %v562
      %v703 = vpop.f32.mrb[0].mxu0
      %v704 = vadd.f32 0.0, %v703
      %v705 = vpop.f32.mrb[0].mxu0
      %v706 = vpop.f32.mrb[0].mxu0
      %v707 = vadd.f32 0.0, %v706
      %v708 = vpop.f32.mrb[0].mxu0
      %709 = vmatprep.mubr.bf16.mxu0 0
      %710 = vmatmul.mubr.bf16.gmra.mrb[0].mxu0 %v565
      %v711 = vpop.f32.mrb[0].mxu0
      %v712 = vadd.f32 0.0, %v711
      %v713 = vpop.f32.mrb[0].mxu0
      %v714 = vpop.f32.mrb[0].mxu0
      %v715 = vadd.f32 0.0, %v714
      %v716 = vpop.f32.mrb[0].mxu0
      %717 = vmatprep.mubr.bf16.mxu0 0
      %718 = vmatmul.mubr.bf16.gmra.mrb[0].mxu0 %v568
      %v719 = vpop.f32.mrb[0].mxu0
      %v720 = vadd.f32 0.0, %v719
      %v721 = vpop.f32.mrb[0].mxu0
      %v722 = vpop.f32.mrb[0].mxu0
      %v723 = vadd.f32 0.0, %v722
      %v724 = vpop.f32.mrb[0].mxu0
      %725 = vmatprep.mubr.bf16.mxu0 0
      %726 = vmatmul.mubr.bf16.gmra.mrb[0].mxu0 %v571
      %v727 = vpop.f32.mrb[0].mxu0
      %v728 = vadd.f32 0.0, %v727
      %v729 = vpop.f32.mrb[0].mxu0
      %v730 = vpop.f32.mrb[0].mxu0
      %v731 = vadd.f32 0.0, %v730
      %v732 = vpop.f32.mrb[0].mxu0
      %733 = vmatprep.mubr.bf16.mxu0 0
      %734 = vmatmul.mubr.bf16.gmra.mrb[0].mxu0 %v574
      %v735 = vpop.f32.mrb[0].mxu0
      %v736 = vadd.f32 0.0, %v735
      %v737 = vpop.f32.mrb[0].mxu0
      %v738 = vpop.f32.mrb[0].mxu0
      %v739 = vadd.f32 0.0, %v738
      %v740 = vpop.f32.mrb[0].mxu0
      %741 = vmatprep.mubr.bf16.mxu0 0
      %742 = vmatmul.mubr.bf16.gmra.mrb[0].mxu0 %v577
      %v743 = vpop.f32.mrb[0].mxu0
      %v744 = vadd.f32 0.0, %v743
      %v745 = vpop.f32.mrb[0].mxu0
      %v746 = vpop.f32.mrb[0].mxu0
      %v747 = vadd.f32 0.0, %v746
      %v748 = vpop.f32.mrb[0].mxu0
      %749 = vmatprep.mubr.bf16.mxu0 0
      %750 = vmatmul.mubr.bf16.gmra.mrb[0].mxu0 %v580
      %v751 = vpop.f32.mrb[0].mxu0
      %v752 = vadd.f32 0.0, %v751
      %v753 = vpop.f32.mrb[0].mxu0
      %v754 = vpop.f32.mrb[0].mxu0
      %v755 = vadd.f32 0.0, %v754
      %v756 = vpop.f32.mrb[0].mxu0
      %757 = vmatprep.mubr.bf16.mxu0 0
      %758 = vmatmul.mubr.bf16.gmra.mrb[0].mxu0 %v583
      %v759 = vpop.f32.mrb[0].mxu0
      %v760 = vadd.f32 0.0, %v759
      %v761 = vpop.f32.mrb[0].mxu0
      %v762 = vpop.f32.mrb[0].mxu0
      %v763 = vadd.f32 0.0, %v762
      %v764 = vpop.f32.mrb[0].mxu0
      %765 = vmatprep.mubr.bf16.mxu0 0
      %766 = vmatmul.mubr.bf16.gmra.mrb[0].mxu0 %v586
      %v767 = vpop.f32.mrb[0].mxu0
      %v768 = vadd.f32 0.0, %v767
      %v769 = vpop.f32.mrb[0].mxu0
      %v770 = vpop.f32.mrb[0].mxu0
      %v771 = vadd.f32 0.0, %v770
      %v772 = vpop.f32.mrb[0].mxu0
      %773 = vmatprep.mubr.bf16.mxu0 0
      %774 = vmatmul.mubr.bf16.gmra.mrb[0].mxu0 %v589
      %v775 = vpop.f32.mrb[0].mxu0
      %v776 = vadd.f32 0.0, %v775
      %v777 = vpop.f32.mrb[0].mxu0
      %v778 = vpop.f32.mrb[0].mxu0
      %v779 = vadd.f32 0.0, %v778
      %v780 = vpop.f32.mrb[0].mxu0
      %781 = vmatprep.mubr.bf16.mxu0 0
      %782 = vmatmul.mubr.bf16.gmra.mrb[0].mxu0 %v592
      %v783 = vpop.f32.mrb[0].mxu0
      %v784 = vadd.f32 0.0, %v783
      %v785 = vpop.f32.mrb[0].mxu0
      %v786 = vpop.f32.mrb[0].mxu0
      %v787 = vadd.f32 0.0, %v786
      %v788 = vpop.f32.mrb[0].mxu0
      %789 = vmatprep.mubr.bf16.mxu0 0
      %790 = vmatmul.mubr.bf16.gmra.mrb[0].mxu0 %v595
      %v791 = vpop.f32.mrb[0].mxu0
      %v792 = vadd.f32 0.0, %v791
      %v793 = vpop.f32.mrb[0].mxu0
      %v794 = vpop.f32.mrb[0].mxu0
      %v795 = vadd.f32 0.0, %v794
      %v796 = vpop.f32.mrb[0].mxu0
      %797 = vmatprep.mubr.bf16.mxu0 0
      %798 = vmatmul.mubr.bf16.gmra.mrb[0].mxu0 %v598
      %v799 = vpop.f32.mrb[0].mxu0
      %v800 = vadd.f32 0.0, %v799
      %v801 = vpop.f32.mrb[0].mxu0
      %v802 = vpop.f32.mrb[0].mxu0
      %v803 = vadd.f32 0.0, %v802
      %v804 = vpop.f32.mrb[0].mxu0
      %805 = vmatprep.mubr.bf16.mxu0 0
      %806 = vmatmul.mubr.bf16.gmra.mrb[0].mxu0 %v601
      %v807 = vpop.f32.mrb[0].mxu0
      %v808 = vadd.f32 0.0, %v807
      %v809 = vpop.f32.mrb[0].mxu0
      %v810 = vpop.f32.mrb[0].mxu0
      %v811 = vadd.f32 0.0, %v810
      %v812 = vpop.f32.mrb[0].mxu0
      %813 = vmatprep.mubr.bf16.mxu0 0
      %814 = vmatmul.mubr.bf16.gmra.mrb[0].mxu0 %v604
      %v815 = vpop.f32.mrb[0].mxu0
      %v816 = vadd.f32 0.0, %v815
      %v817 = vpop.f32.mrb[0].mxu0
      %v818 = vpop.f32.mrb[0].mxu0
      %v819 = vadd.f32 0.0, %v818
      %v820 = vpop.f32.mrb[0].mxu0
      %821 = vmatprep.mubr.bf16.mxu0 0
      %822 = vmatmul.mubr.bf16.gmra.mrb[0].mxu0 %v607
      %v823 = vpop.f32.mrb[0].mxu0
      %v824 = vadd.f32 0.0, %v823
      %v825 = vpop.f32.mrb[0].mxu0
      %v826 = vpop.f32.mrb[0].mxu0
      %v827 = vadd.f32 0.0, %v826
      %v828 = vpop.f32.mrb[0].mxu0
      %829 = vmatprep.mubr.bf16.mxu0 0
      %830 = vmatmul.mubr.bf16.gmra.mrb[0].mxu0 %v610
      %v831 = vpop.f32.mrb[0].mxu0
      %v832 = vadd.f32 0.0, %v831
      %v833 = vpop.f32.mrb[0].mxu0
      %v834 = vpop.f32.mrb[0].mxu0
      %v835 = vadd.f32 0.0, %v834
      %v836 = vpop.f32.mrb[0].mxu0
      %837 = vmatprep.mubr.bf16.mxu0 0
      %838 = vmatmul.mubr.bf16.gmra.mrb[0].mxu0 %v613
      %v839 = vpop.f32.mrb[0].mxu0
      %v840 = vadd.f32 0.0, %v839
      %v841 = vpop.f32.mrb[0].mxu0
      %v842 = vpop.f32.mrb[0].mxu0
      %v843 = vadd.f32 0.0, %v842
      %v844 = vpop.f32.mrb[0].mxu0
      %845 = vmatprep.mubr.bf16.mxu0 0
      %846 = vmatmul.mubr.bf16.gmra.mrb[0].mxu0 %v616
      %v847 = vpop.f32.mrb[0].mxu0
      %v848 = vadd.f32 0.0, %v847
      %v849 = vpop.f32.mrb[0].mxu0
      %v850 = vpop.f32.mrb[0].mxu0
      %v851 = vadd.f32 0.0, %v850
      %v852 = vpop.f32.mrb[0].mxu0
      %853 = vmatprep.mubr.bf16.mxu0 0
      %854 = vmatmul.mubr.bf16.gmra.mrb[0].mxu0 %v619
      %v855 = vpop.f32.mrb[0].mxu0
      %v856 = vadd.f32 0.0, %v855
      %v857 = vpop.f32.mrb[0].mxu0
      %v858 = vpop.f32.mrb[0].mxu0
      %v859 = vadd.f32 0.0, %v858
      %v860 = vpop.f32.mrb[0].mxu0
      %861 = vmatprep.mubr.bf16.mxu0 0
      %862 = vmatmul.mubr.bf16.gmra.mrb[0].mxu0 %v622
      %v863 = vpop.f32.mrb[0].mxu0
      %v864 = vadd.f32 0.0, %v863
      %v865 = vpop.f32.mrb[0].mxu0
      %v866 = vpop.f32.mrb[0].mxu0
      %v867 = vadd.f32 0.0, %v866
      %v868 = vpop.f32.mrb[0].mxu0
      %869 = vmatprep.mubr.bf16.mxu0 0
      %870 = vmatmul.mubr.bf16.gmra.mrb[0].mxu0 %v625
      %v871 = vpop.f32.mrb[0].mxu0
      %v872 = vadd.f32 0.0, %v871
      %v873 = vpop.f32.mrb[0].mxu0
      %v874 = vpop.f32.mrb[0].mxu0
      %v875 = vadd.f32 0.0, %v874
      %v876 = vpop.f32.mrb[0].mxu0
      %877 = vmatprep.mubr.bf16.mxu0 0
      %878 = vmatmul.mubr.bf16.gmra.mrb[0].mxu0 %v628
      %v879 = vpop.f32.mrb[0].mxu0
      %v880 = vadd.f32 0.0, %v879
      %v881 = vpop.f32.mrb[0].mxu0
      %v882 = vpop.f32.mrb[0].mxu0
      %v883 = vadd.f32 0.0, %v882
      %v884 = vpop.f32.mrb[0].mxu0
      %885 = vmatprep.mubr.bf16.mxu0 0
      %886 = vmatmul.mubr.bf16.gmra.mrb[0].mxu0 %v631
      %v887 = vpop.f32.mrb[0].mxu0
      %v888 = vadd.f32 0.0, %v887
      %v889 = vpop.f32.mrb[0].mxu0
      %v890 = vpop.f32.mrb[0].mxu0
      %v891 = vadd.f32 0.0, %v890
      %v892 = vpop.f32.mrb[0].mxu0
      %893 = vmatprep.mubr.bf16.mxu0 0
      %894 = vmatmul.mubr.bf16.gmra.mrb[0].mxu0 %v634
      %v895 = vpop.f32.mrb[0].mxu0
      %v896 = vadd.f32 0.0, %v895
      %v897 = vpop.f32.mrb[0].mxu0
      %v898 = vpop.f32.mrb[0].mxu0
      %v899 = vadd.f32 0.0, %v898
      %v900 = vpop.f32.mrb[0].mxu0
      %901 = vmatprep.mubr.bf16.mxu0 0
      %902 = vmatmul.mubr.bf16.gmra.mrb[0].mxu0 %v637
      %v903 = vpop.f32.mrb[0].mxu0
      %v904 = vadd.f32 0.0, %v903
      %v905 = vpop.f32.mrb[0].mxu0
      %v906 = vpop.f32.mrb[0].mxu0
      %v907 = vadd.f32 0.0, %v906
      %v908 = vpop.f32.mrb[0].mxu0
      %909 = vmatprep.mubr.bf16.mxu0 0
      %910 = vmatmul.mubr.bf16.gmra.mrb[0].mxu0 %v640
      %v911 = vpop.f32.mrb[0].mxu0
      %v912 = vadd.f32 0.0, %v911
      %v913 = vpop.f32.mrb[0].mxu0
      %v914 = vpop.f32.mrb[0].mxu0
      %v915 = vadd.f32 0.0, %v914
      %v916 = vpop.f32.mrb[0].mxu0
      %917 = vmatprep.mubr.bf16.mxu0 0
      %918 = vmatmul.mubr.bf16.gmra.mrb[0].mxu0 %v643
      %v919 = vpop.f32.mrb[0].mxu0
      %v920 = vadd.f32 0.0, %v919
      %v921 = vpop.f32.mrb[0].mxu0
      %v922 = vpop.f32.mrb[0].mxu0
      %v923 = vadd.f32 0.0, %v922
      %v924 = vpop.f32.mrb[0].mxu0
      %925 = vmatprep.mubr.bf16.mxu0 0
      %926 = vmatmul.mubr.bf16.gmra.mrb[0].mxu0 %v646
      %v927 = vpop.f32.mrb[0].mxu0
      %v928 = vadd.f32 0.0, %v927
      %v929 = vpop.f32.mrb[0].mxu0
      %v930 = vpop.f32.mrb[0].mxu0
      %v931 = vadd.f32 0.0, %v930
      %v932 = vpop.f32.mrb[0].mxu0
      %933 = vmatprep.mubr.bf16.mxu0 0
      %934 = vmatmul.mubr.bf16.gmra.mrb[0].mxu0 %v649
      %v935 = vpop.f32.mrb[0].mxu0
      %v936 = vadd.f32 0.0, %v935
      %v937 = vpop.f32.mrb[0].mxu0
      %v938 = vpop.f32.mrb[0].mxu0
      %v939 = vadd.f32 0.0, %v938
      %v940 = vpop.f32.mrb[0].mxu0
      %941 = vmatprep.mubr.bf16.mxu0 0
      %942 = vmatmul.mubr.bf16.gmra.mrb[0].mxu0 %v652
      %v943 = vpop.f32.mrb[0].mxu0
      %v944 = vadd.f32 0.0, %v943
      %v945 = vpop.f32.mrb[0].mxu0
      %v946 = vpop.f32.mrb[0].mxu0
      %v947 = vadd.f32 0.0, %v946
      %v948 = vpop.f32.mrb[0].mxu0
      %949 = vdwg.mxu0
      %v1014 = vunpack.c.l.b16 %v251
      %v1015 = vunpack.c.l.b16 %v252
      %v1016 = vunpack.c.l.b16 %v253
      %v1017 = vunpack.c.l.b16 %v254
      %v1018 = vunpack.c.l.b16 %v255
      %v1019 = vunpack.c.l.b16 %v256
      %v1020 = vunpack.c.l.b16 %v257
      %v1021 = vunpack.c.l.b16 %v258
      %v1022 = vunpack.c.l.b16 %v259
      %v1023 = vunpack.c.l.b16 %v260
      %v1024 = vunpack.c.l.b16 %v261
      %v1025 = vunpack.c.l.b16 %v262
      %v1026 = vunpack.c.l.b16 %v263
      %v1027 = vunpack.c.l.b16 %v264
      %v1028 = vunpack.c.l.b16 %v265
      %v1029 = vunpack.c.l.b16 %v266
      %v1030 = vunpack.c.l.b16 %v267
      %v1031 = vunpack.c.l.b16 %v268
      %v1032 = vunpack.c.l.b16 %v269
      %v1033 = vunpack.c.l.b16 %v270
      %v1034 = vunpack.c.l.b16 %v271
      %v1035 = vunpack.c.l.b16 %v272
      %v1036 = vunpack.c.l.b16 %v273
      %v1037 = vunpack.c.l.b16 %v274
      %v1038 = vunpack.c.l.b16 %v275
      %v1039 = vunpack.c.l.b16 %v276
      %v1040 = vunpack.c.l.b16 %v277
      %v1041 = vunpack.c.l.b16 %v278
      %v1042 = vunpack.c.l.b16 %v279
      %v1043 = vunpack.c.l.b16 %v280
      %v1044 = vunpack.c.l.b16 %v281
      %v1045 = vunpack.c.l.b16 %v282
      %v1046 = vunpack.c.l.b16 %v283
      %v1047 = vunpack.c.l.b16 %v284
      %v1048 = vunpack.c.l.b16 %v285
      %v1049 = vunpack.c.l.b16 %v286
      %v1050 = vunpack.c.l.b16 %v287
      %v1051 = vunpack.c.l.b16 %v288
      %v1052 = vunpack.c.l.b16 %v289
      %v1053 = vunpack.c.l.b16 %v290
      %v1054 = vunpack.c.l.b16 %v291
      %v1055 = vunpack.c.l.b16 %v292
      %v1056 = vunpack.c.l.b16 %v293
      %v1057 = vunpack.c.l.b16 %v294
      %v1058 = vunpack.c.l.b16 %v295
      %v1059 = vunpack.c.l.b16 %v296
      %v1060 = vunpack.c.l.b16 %v297
      %v1061 = vunpack.c.l.b16 %v298
      %v1062 = vunpack.c.l.b16 %v299
      %v1063 = vunpack.c.l.b16 %v300
      %v1064 = vunpack.c.l.b16 %v301
      %v1065 = vunpack.c.l.b16 %v302
      %v1066 = vunpack.c.l.b16 %v303
      %v1067 = vunpack.c.l.b16 %v304
      %v1068 = vunpack.c.l.b16 %v305
      %v1069 = vunpack.c.l.b16 %v306
      %v1070 = vunpack.c.l.b16 %v307
      %v1071 = vunpack.c.l.b16 %v308
      %v1072 = vunpack.c.l.b16 %v309
      %v1073 = vunpack.c.l.b16 %v310
      %v1074 = vunpack.c.l.b16 %v311
      %v1075 = vunpack.c.l.b16 %v312
      %v1076 = vunpack.c.l.b16 %v313
      %v1077 = vunpack.c.l.b16 %v314
      %v1078 = vpack.c.b16 %v1015, %v1014
      %v1079 = vpack.c.b16 %v1017, %v1016
      %v1080 = vpack.c.b16 %v1019, %v1018
      %v1081 = vpack.c.b16 %v1021, %v1020
      %v1082 = vpack.c.b16 %v1023, %v1022
      %v1083 = vpack.c.b16 %v1025, %v1024
      %v1084 = vpack.c.b16 %v1027, %v1026
      %v1085 = vpack.c.b16 %v1029, %v1028
      %v1086 = vpack.c.b16 %v1031, %v1030
      %v1087 = vpack.c.b16 %v1033, %v1032
      %v1088 = vpack.c.b16 %v1035, %v1034
      %v1089 = vpack.c.b16 %v1037, %v1036
      %v1090 = vpack.c.b16 %v1039, %v1038
      %v1091 = vpack.c.b16 %v1041, %v1040
      %v1092 = vpack.c.b16 %v1043, %v1042
      %v1093 = vpack.c.b16 %v1045, %v1044
      %v1094 = vpack.c.b16 %v1047, %v1046
      %v1095 = vpack.c.b16 %v1049, %v1048
      %v1096 = vpack.c.b16 %v1051, %v1050
      %v1097 = vpack.c.b16 %v1053, %v1052
      %v1098 = vpack.c.b16 %v1055, %v1054
      %v1099 = vpack.c.b16 %v1057, %v1056
      %v1100 = vpack.c.b16 %v1059, %v1058
      %v1101 = vpack.c.b16 %v1061, %v1060
      %v1102 = vpack.c.b16 %v1063, %v1062
      %v1103 = vpack.c.b16 %v1065, %v1064
      %v1104 = vpack.c.b16 %v1067, %v1066
      %v1105 = vpack.c.b16 %v1069, %v1068
      %v1106 = vpack.c.b16 %v1071, %v1070
      %v1107 = vpack.c.b16 %v1073, %v1072
      %v1108 = vpack.c.b16 %v1075, %v1074
      %v1109 = vpack.c.b16 %v1077, %v1076
      %v1113 = vunpack.c.l.b16 %v315
      %v1114 = vunpack.c.l.b16 %v316
      %v1115 = vunpack.c.l.b16 %v317
      %v1116 = vpack.c.b16 %v1114, %v1113
      %v1117 = vpack.c.b16 %v1115, %v1115
      %vm1119 = vcmask 146432
      %v1121 = vsel %vm1119, %v1078, 0
      %v1124 = vsel %vm1119, %v1079, 0
      %v1127 = vsel %vm1119, %v1080, 0
      %v1130 = vsel %vm1119, %v1081, 0
      %v1133 = vsel %vm1119, %v1082, 0
      %v1136 = vsel %vm1119, %v1083, 0
      %v1139 = vsel %vm1119, %v1084, 0
      %v1142 = vsel %vm1119, %v1085, 0
      %v1145 = vsel %vm1119, %v1086, 0
      %v1148 = vsel %vm1119, %v1087, 0
      %v1151 = vsel %vm1119, %v1088, 0
      %v1154 = vsel %vm1119, %v1089, 0
      %v1157 = vsel %vm1119, %v1090, 0
      %v1160 = vsel %vm1119, %v1091, 0
      %v1163 = vsel %vm1119, %v1092, 0
      %v1166 = vsel %vm1119, %v1093, 0
      %v1169 = vsel %vm1119, %v1094, 0
      %v1172 = vsel %vm1119, %v1095, 0
      %v1175 = vsel %vm1119, %v1096, 0
      %v1178 = vsel %vm1119, %v1097, 0
      %v1181 = vsel %vm1119, %v1098, 0
      %v1184 = vsel %vm1119, %v1099, 0
      %v1187 = vsel %vm1119, %v1100, 0
      %v1190 = vsel %vm1119, %v1101, 0
      %v1193 = vsel %vm1119, %v1102, 0
      %v1196 = vsel %vm1119, %v1103, 0
      %v1199 = vsel %vm1119, %v1104, 0
      %v1202 = vsel %vm1119, %v1105, 0
      %v1205 = vsel %vm1119, %v1106, 0
      %v1208 = vsel %vm1119, %v1107, 0
      %v1211 = vsel %vm1119, %v1108, 0
      %v1214 = vsel %vm1119, %v1109, 0
      %vm1216 = vcmask 1040384
      %v1218 = vsel %vm1216, %v1117, 0
      %1220 = vmatprep.subr.bf16.mxu0 0
      %1221 = vmatpush1.bf16.msra.mxu0 %v1116
      %1222 = vmatprep.subr.bf16.mxu0 0
      %1223 = vmatpush1.bf16.msra.mxu0 %v1218
      %1224 = vmatprep.subr.bf16.mxu0 0
      %1225 = vmatpush1.bf16.msra.mxu0 0
      %1226 = vmatprep.subr.bf16.mxu0 0
      %1227 = vmatpush1.bf16.msra.mxu0 0
      %1228 = vmatprep.subr.bf16.mxu0 0
      %1229 = vmatpush1.bf16.msra.mxu0 0
      %1230 = vmatprep.subr.bf16.mxu0 0
      %1231 = vmatpush1.bf16.msra.mxu0 0
      %1232 = vmatprep.subr.bf16.mxu0 0
      %1233 = vmatpush1.bf16.msra.mxu0 0
      %1234 = vmatprep.subr.bf16.mxu0 0
      %1235 = vmatpush1.bf16.msra.mxu0 0
      %1236 = vmatprep.subr.bf16.mxu0 0
      %1237 = vmatpush1.bf16.msra.mxu0 0
      %1238 = vmatprep.subr.bf16.mxu0 0
      %1239 = vmatpush1.bf16.msra.mxu0 0
      %1240 = vmatprep.subr.bf16.mxu0 0
      %1241 = vmatpush1.bf16.msra.mxu0 0
      %1242 = vmatprep.subr.bf16.mxu0 0
      %1243 = vmatpush1.bf16.msra.mxu0 0
      %1244 = vmatprep.subr.bf16.mxu0 0
      %1245 = vmatpush1.bf16.msra.mxu0 0
      %1246 = vmatprep.subr.bf16.mxu0 0
      %1247 = vmatpush1.bf16.msra.mxu0 0
      %1248 = vmatprep.subr.bf16.mxu0 0
      %1249 = vmatpush1.bf16.msra.mxu0 0
      %1250 = vmatprep.subr.bf16.mxu0 0
      %1251 = vmatpush1.bf16.msra.mxu0 0
      %1252 = vmatprep.mubr.bf16.mxu0 0
      %1253 = vmatmul.mubr.bf16.gmra.mrb[0].mxu0 %v1121
      %v1254 = vpop.f32.mrb[0].mxu0
      %v1255 = vadd.f32 %v696, %v1254
      %v1256 = vpop.f32.mrb[0].mxu0
      %v1257 = vpop.f32.mrb[0].mxu0
      %v1258 = vadd.f32 %v699, %v1257
      %v1259 = vpop.f32.mrb[0].mxu0
      %1260 = vmatprep.mubr.bf16.mxu0 0
      %1261 = vmatmul.mubr.bf16.gmra.mrb[0].mxu0 %v1124
      %v1262 = vpop.f32.mrb[0].mxu0
      %v1263 = vadd.f32 %v704, %v1262
      %v1264 = vpop.f32.mrb[0].mxu0
      %v1265 = vpop.f32.mrb[0].mxu0
      %v1266 = vadd.f32 %v707, %v1265
      %v1267 = vpop.f32.mrb[0].mxu0
      %1268 = vmatprep.mubr.bf16.mxu0 0
      %1269 = vmatmul.mubr.bf16.gmra.mrb[0].mxu0 %v1127
      %v1270 = vpop.f32.mrb[0].mxu0
      %v1271 = vadd.f32 %v712, %v1270
      %v1272 = vpop.f32.mrb[0].mxu0
      %v1273 = vpop.f32.mrb[0].mxu0
      %v1274 = vadd.f32 %v715, %v1273
      %v1275 = vpop.f32.mrb[0].mxu0
      %1276 = vmatprep.mubr.bf16.mxu0 0
      %1277 = vmatmul.mubr.bf16.gmra.mrb[0].mxu0 %v1130
      %v1278 = vpop.f32.mrb[0].mxu0
      %v1279 = vadd.f32 %v720, %v1278
      %v1280 = vpop.f32.mrb[0].mxu0
      %v1281 = vpop.f32.mrb[0].mxu0
      %v1282 = vadd.f32 %v723, %v1281
      %v1283 = vpop.f32.mrb[0].mxu0
      %1284 = vmatprep.mubr.bf16.mxu0 0
      %1285 = vmatmul.mubr.bf16.gmra.mrb[0].mxu0 %v1133
      %v1286 = vpop.f32.mrb[0].mxu0
      %v1287 = vadd.f32 %v728, %v1286
      %v1288 = vpop.f32.mrb[0].mxu0
      %v1289 = vpop.f32.mrb[0].mxu0
      %v1290 = vadd.f32 %v731, %v1289
      %v1291 = vpop.f32.mrb[0].mxu0
      %1292 = vmatprep.mubr.bf16.mxu0 0
      %1293 = vmatmul.mubr.bf16.gmra.mrb[0].mxu0 %v1136
      %v1294 = vpop.f32.mrb[0].mxu0
      %v1295 = vadd.f32 %v736, %v1294
      %v1296 = vpop.f32.mrb[0].mxu0
      %v1297 = vpop.f32.mrb[0].mxu0
      %v1298 = vadd.f32 %v739, %v1297
      %v1299 = vpop.f32.mrb[0].mxu0
      %1300 = vmatprep.mubr.bf16.mxu0 0
      %1301 = vmatmul.mubr.bf16.gmra.mrb[0].mxu0 %v1139
      %v1302 = vpop.f32.mrb[0].mxu0
      %v1303 = vadd.f32 %v744, %v1302
      %v1304 = vpop.f32.mrb[0].mxu0
      %v1305 = vpop.f32.mrb[0].mxu0
      %v1306 = vadd.f32 %v747, %v1305
      %v1307 = vpop.f32.mrb[0].mxu0
      %1308 = vmatprep.mubr.bf16.mxu0 0
      %1309 = vmatmul.mubr.bf16.gmra.mrb[0].mxu0 %v1142
      %v1310 = vpop.f32.mrb[0].mxu0
      %v1311 = vadd.f32 %v752, %v1310
      %v1312 = vpop.f32.mrb[0].mxu0
      %v1313 = vpop.f32.mrb[0].mxu0
      %v1314 = vadd.f32 %v755, %v1313
      %v1315 = vpop.f32.mrb[0].mxu0
      %1316 = vmatprep.mubr.bf16.mxu0 0
      %1317 = vmatmul.mubr.bf16.gmra.mrb[0].mxu0 %v1145
      %v1318 = vpop.f32.mrb[0].mxu0
      %v1319 = vadd.f32 %v760, %v1318
      %v1320 = vpop.f32.mrb[0].mxu0
      %v1321 = vpop.f32.mrb[0].mxu0
      %v1322 = vadd.f32 %v763, %v1321
      %v1323 = vpop.f32.mrb[0].mxu0
      %1324 = vmatprep.mubr.bf16.mxu0 0
      %1325 = vmatmul.mubr.bf16.gmra.mrb[0].mxu0 %v1148
      %v1326 = vpop.f32.mrb[0].mxu0
      %v1327 = vadd.f32 %v768, %v1326
      %v1328 = vpop.f32.mrb[0].mxu0
      %v1329 = vpop.f32.mrb[0].mxu0
      %v1330 = vadd.f32 %v771, %v1329
      %v1331 = vpop.f32.mrb[0].mxu0
      %1332 = vmatprep.mubr.bf16.mxu0 0
      %1333 = vmatmul.mubr.bf16.gmra.mrb[0].mxu0 %v1151
      %v1334 = vpop.f32.mrb[0].mxu0
      %v1335 = vadd.f32 %v776, %v1334
      %v1336 = vpop.f32.mrb[0].mxu0
      %v1337 = vpop.f32.mrb[0].mxu0
      %v1338 = vadd.f32 %v779, %v1337
      %v1339 = vpop.f32.mrb[0].mxu0
      %1340 = vmatprep.mubr.bf16.mxu0 0
      %1341 = vmatmul.mubr.bf16.gmra.mrb[0].mxu0 %v1154
      %v1342 = vpop.f32.mrb[0].mxu0
      %v1343 = vadd.f32 %v784, %v1342
      %v1344 = vpop.f32.mrb[0].mxu0
      %v1345 = vpop.f32.mrb[0].mxu0
      %v1346 = vadd.f32 %v787, %v1345
      %v1347 = vpop.f32.mrb[0].mxu0
      %1348 = vmatprep.mubr.bf16.mxu0 0
      %1349 = vmatmul.mubr.bf16.gmra.mrb[0].mxu0 %v1157
      %v1350 = vpop.f32.mrb[0].mxu0
      %v1351 = vadd.f32 %v792, %v1350
      %v1352 = vpop.f32.mrb[0].mxu0
      %v1353 = vpop.f32.mrb[0].mxu0
      %v1354 = vadd.f32 %v795, %v1353
      %v1355 = vpop.f32.mrb[0].mxu0
      %1356 = vmatprep.mubr.bf16.mxu0 0
      %1357 = vmatmul.mubr.bf16.gmra.mrb[0].mxu0 %v1160
      %v1358 = vpop.f32.mrb[0].mxu0
      %v1359 = vadd.f32 %v800, %v1358
      %v1360 = vpop.f32.mrb[0].mxu0
      %v1361 = vpop.f32.mrb[0].mxu0
      %v1362 = vadd.f32 %v803, %v1361
      %v1363 = vpop.f32.mrb[0].mxu0
      %1364 = vmatprep.mubr.bf16.mxu0 0
      %1365 = vmatmul.mubr.bf16.gmra.mrb[0].mxu0 %v1163
      %v1366 = vpop.f32.mrb[0].mxu0
      %v1367 = vadd.f32 %v808, %v1366
      %v1368 = vpop.f32.mrb[0].mxu0
      %v1369 = vpop.f32.mrb[0].mxu0
      %v1370 = vadd.f32 %v811, %v1369
      %v1371 = vpop.f32.mrb[0].mxu0
      %1372 = vmatprep.mubr.bf16.mxu0 0
      %1373 = vmatmul.mubr.bf16.gmra.mrb[0].mxu0 %v1166
      %v1374 = vpop.f32.mrb[0].mxu0
      %v1375 = vadd.f32 %v816, %v1374
      %v1376 = vpop.f32.mrb[0].mxu0
      %v1377 = vpop.f32.mrb[0].mxu0
      %v1378 = vadd.f32 %v819, %v1377
      %v1379 = vpop.f32.mrb[0].mxu0
      %1380 = vmatprep.mubr.bf16.mxu0 0
      %1381 = vmatmul.mubr.bf16.gmra.mrb[0].mxu0 %v1169
      %v1382 = vpop.f32.mrb[0].mxu0
      %v1383 = vadd.f32 %v824, %v1382
      %v1384 = vpop.f32.mrb[0].mxu0
      %v1385 = vpop.f32.mrb[0].mxu0
      %v1386 = vadd.f32 %v827, %v1385
      %v1387 = vpop.f32.mrb[0].mxu0
      %1388 = vmatprep.mubr.bf16.mxu0 0
      %1389 = vmatmul.mubr.bf16.gmra.mrb[0].mxu0 %v1172
      %v1390 = vpop.f32.mrb[0].mxu0
      %v1391 = vadd.f32 %v832, %v1390
      %v1392 = vpop.f32.mrb[0].mxu0
      %v1393 = vpop.f32.mrb[0].mxu0
      %v1394 = vadd.f32 %v835, %v1393
      %v1395 = vpop.f32.mrb[0].mxu0
      %1396 = vmatprep.mubr.bf16.mxu0 0
      %1397 = vmatmul.mubr.bf16.gmra.mrb[0].mxu0 %v1175
      %v1398 = vpop.f32.mrb[0].mxu0
      %v1399 = vadd.f32 %v840, %v1398
      %v1400 = vpop.f32.mrb[0].mxu0
      %v1401 = vpop.f32.mrb[0].mxu0
      %v1402 = vadd.f32 %v843, %v1401
      %v1403 = vpop.f32.mrb[0].mxu0
      %1404 = vmatprep.mubr.bf16.mxu0 0
      %1405 = vmatmul.mubr.bf16.gmra.mrb[0].mxu0 %v1178
      %v1406 = vpop.f32.mrb[0].mxu0
      %v1407 = vadd.f32 %v848, %v1406
      %v1408 = vpop.f32.mrb[0].mxu0
      %v1409 = vpop.f32.mrb[0].mxu0
      %v1410 = vadd.f32 %v851, %v1409
      %v1411 = vpop.f32.mrb[0].mxu0
      %1412 = vmatprep.mubr.bf16.mxu0 0
      %1413 = vmatmul.mubr.bf16.gmra.mrb[0].mxu0 %v1181
      %v1414 = vpop.f32.mrb[0].mxu0
      %v1415 = vadd.f32 %v856, %v1414
      %v1416 = vpop.f32.mrb[0].mxu0
      %v1417 = vpop.f32.mrb[0].mxu0
      %v1418 = vadd.f32 %v859, %v1417
      %v1419 = vpop.f32.mrb[0].mxu0
      %1420 = vmatprep.mubr.bf16.mxu0 0
      %1421 = vmatmul.mubr.bf16.gmra.mrb[0].mxu0 %v1184
      %v1422 = vpop.f32.mrb[0].mxu0
      %v1423 = vadd.f32 %v864, %v1422
      %v1424 = vpop.f32.mrb[0].mxu0
      %v1425 = vpop.f32.mrb[0].mxu0
      %v1426 = vadd.f32 %v867, %v1425
      %v1427 = vpop.f32.mrb[0].mxu0
      %1428 = vmatprep.mubr.bf16.mxu0 0
      %1429 = vmatmul.mubr.bf16.gmra.mrb[0].mxu0 %v1187
      %v1430 = vpop.f32.mrb[0].mxu0
      %v1431 = vadd.f32 %v872, %v1430
      %v1432 = vpop.f32.mrb[0].mxu0
      %v1433 = vpop.f32.mrb[0].mxu0
      %v1434 = vadd.f32 %v875, %v1433
      %v1435 = vpop.f32.mrb[0].mxu0
      %1436 = vmatprep.mubr.bf16.mxu0 0
      %1437 = vmatmul.mubr.bf16.gmra.mrb[0].mxu0 %v1190
      %v1438 = vpop.f32.mrb[0].mxu0
      %v1439 = vadd.f32 %v880, %v1438
      %v1440 = vpop.f32.mrb[0].mxu0
      %v1441 = vpop.f32.mrb[0].mxu0
      %v1442 = vadd.f32 %v883, %v1441
      %v1443 = vpop.f32.mrb[0].mxu0
      %1444 = vmatprep.mubr.bf16.mxu0 0
      %1445 = vmatmul.mubr.bf16.gmra.mrb[0].mxu0 %v1193
      %v1446 = vpop.f32.mrb[0].mxu0
      %v1447 = vadd.f32 %v888, %v1446
      %v1448 = vpop.f32.mrb[0].mxu0
      %v1449 = vpop.f32.mrb[0].mxu0
      %v1450 = vadd.f32 %v891, %v1449
      %v1451 = vpop.f32.mrb[0].mxu0
      %1452 = vmatprep.mubr.bf16.mxu0 0
      %1453 = vmatmul.mubr.bf16.gmra.mrb[0].mxu0 %v1196
      %v1454 = vpop.f32.mrb[0].mxu0
      %v1455 = vadd.f32 %v896, %v1454
      %v1456 = vpop.f32.mrb[0].mxu0
      %v1457 = vpop.f32.mrb[0].mxu0
      %v1458 = vadd.f32 %v899, %v1457
      %v1459 = vpop.f32.mrb[0].mxu0
      %1460 = vmatprep.mubr.bf16.mxu0 0
      %1461 = vmatmul.mubr.bf16.gmra.mrb[0].mxu0 %v1199
      %v1462 = vpop.f32.mrb[0].mxu0
      %v1463 = vadd.f32 %v904, %v1462
      %v1464 = vpop.f32.mrb[0].mxu0
      %v1465 = vpop.f32.mrb[0].mxu0
      %v1466 = vadd.f32 %v907, %v1465
      %v1467 = vpop.f32.mrb[0].mxu0
      %1468 = vmatprep.mubr.bf16.mxu0 0
      %1469 = vmatmul.mubr.bf16.gmra.mrb[0].mxu0 %v1202
      %v1470 = vpop.f32.mrb[0].mxu0
      %v1471 = vadd.f32 %v912, %v1470
      %v1472 = vpop.f32.mrb[0].mxu0
      %v1473 = vpop.f32.mrb[0].mxu0
      %v1474 = vadd.f32 %v915, %v1473
      %v1475 = vpop.f32.mrb[0].mxu0
      %1476 = vmatprep.mubr.bf16.mxu0 0
      %1477 = vmatmul.mubr.bf16.gmra.mrb[0].mxu0 %v1205
      %v1478 = vpop.f32.mrb[0].mxu0
      %v1479 = vadd.f32 %v920, %v1478
      %v1480 = vpop.f32.mrb[0].mxu0
      %v1481 = vpop.f32.mrb[0].mxu0
      %v1482 = vadd.f32 %v923, %v1481
      %v1483 = vpop.f32.mrb[0].mxu0
      %1484 = vmatprep.mubr.bf16.mxu0 0
      %1485 = vmatmul.mubr.bf16.gmra.mrb[0].mxu0 %v1208
      %v1486 = vpop.f32.mrb[0].mxu0
      %v1487 = vadd.f32 %v928, %v1486
      %v1488 = vpop.f32.mrb[0].mxu0
      %v1489 = vpop.f32.mrb[0].mxu0
      %v1490 = vadd.f32 %v931, %v1489
      %v1491 = vpop.f32.mrb[0].mxu0
      %1492 = vmatprep.mubr.bf16.mxu0 0
      %1493 = vmatmul.mubr.bf16.gmra.mrb[0].mxu0 %v1211
      %v1494 = vpop.f32.mrb[0].mxu0
      %v1495 = vadd.f32 %v936, %v1494
      %v1496 = vpop.f32.mrb[0].mxu0
      %v1497 = vpop.f32.mrb[0].mxu0
      %v1498 = vadd.f32 %v939, %v1497
      %v1499 = vpop.f32.mrb[0].mxu0
      %1500 = vmatprep.mubr.bf16.mxu0 0
      %1501 = vmatmul.mubr.bf16.gmra.mrb[0].mxu0 %v1214
      %v1502 = vpop.f32.mrb[0].mxu0
      %v1503 = vadd.f32 %v944, %v1502
      %v1504 = vpop.f32.mrb[0].mxu0
      %v1505 = vpop.f32.mrb[0].mxu0
      %v1506 = vadd.f32 %v947, %v1505
      %v1507 = vpop.f32.mrb[0].mxu0
      %1508 = vdwg.mxu0
      %v1509 = vld [vmem:[%s4] sm:$0x1]
      %v1511 = vlaneseq
      %v1512 = vshrl.u32 %v1511, 7
      %v1513 = vsub.s32 0, %v1512
      %v1514 = vrot.slane %v1509, %v1513
      %v1516 = vadd.f32 %v1255, %v1514
      %v1517 = vadd.f32 %v1258, %v1514
      %v1518 = vadd.f32 %v1263, %v1514
      %v1519 = vadd.f32 %v1266, %v1514
      %v1520 = vadd.f32 %v1271, %v1514
      %v1521 = vadd.f32 %v1274, %v1514
      %v1522 = vadd.f32 %v1279, %v1514
      %v1523 = vadd.f32 %v1282, %v1514
      %v1524 = vadd.f32 %v1287, %v1514
      %v1525 = vadd.f32 %v1290, %v1514
      %v1526 = vadd.f32 %v1295, %v1514
      %v1527 = vadd.f32 %v1298, %v1514
      %v1528 = vadd.f32 %v1303, %v1514
      %v1529 = vadd.f32 %v1306, %v1514
      %v1530 = vadd.f32 %v1311, %v1514
      %v1531 = vadd.f32 %v1314, %v1514
      %v1532 = vadd.f32 %v1319, %v1514
      %v1533 = vadd.f32 %v1322, %v1514
      %v1534 = vadd.f32 %v1327, %v1514
      %v1535 = vadd.f32 %v1330, %v1514
      %v1536 = vadd.f32 %v1335, %v1514
      %v1537 = vadd.f32 %v1338, %v1514
      %v1538 = vadd.f32 %v1343, %v1514
      %v1539 = vadd.f32 %v1346, %v1514
      %v1540 = vadd.f32 %v1351, %v1514
      %v1541 = vadd.f32 %v1354, %v1514
      %v1542 = vadd.f32 %v1359, %v1514
      %v1543 = vadd.f32 %v1362, %v1514
      %v1544 = vadd.f32 %v1367, %v1514
      %v1545 = vadd.f32 %v1370, %v1514
      %v1546 = vadd.f32 %v1375, %v1514
      %v1547 = vadd.f32 %v1378, %v1514
      %v1548 = vadd.f32 %v1383, %v1514
      %v1549 = vadd.f32 %v1386, %v1514
      %v1550 = vadd.f32 %v1391, %v1514
      %v1551 = vadd.f32 %v1394, %v1514
      %v1552 = vadd.f32 %v1399, %v1514
      %v1553 = vadd.f32 %v1402, %v1514
      %v1554 = vadd.f32 %v1407, %v1514
      %v1555 = vadd.f32 %v1410, %v1514
      %v1556 = vadd.f32 %v1415, %v1514
      %v1557 = vadd.f32 %v1418, %v1514
      %v1558 = vadd.f32 %v1423, %v1514
      %v1559 = vadd.f32 %v1426, %v1514
      %v1560 = vadd.f32 %v1431, %v1514
      %v1561 = vadd.f32 %v1434, %v1514
      %v1562 = vadd.f32 %v1439, %v1514
      %v1563 = vadd.f32 %v1442, %v1514
      %v1564 = vadd.f32 %v1447, %v1514
      %v1565 = vadd.f32 %v1450, %v1514
      %v1566 = vadd.f32 %v1455, %v1514
      %v1567 = vadd.f32 %v1458, %v1514
      %v1568 = vadd.f32 %v1463, %v1514
      %v1569 = vadd.f32 %v1466, %v1514
      %v1570 = vadd.f32 %v1471, %v1514
      %v1571 = vadd.f32 %v1474, %v1514
      %v1572 = vadd.f32 %v1479, %v1514
      %v1573 = vadd.f32 %v1482, %v1514
      %v1574 = vadd.f32 %v1487, %v1514
      %v1575 = vadd.f32 %v1490, %v1514
      %v1576 = vadd.f32 %v1495, %v1514
      %v1577 = vadd.f32 %v1498, %v1514
      %v1578 = vadd.f32 %v1503, %v1514
      %v1579 = vadd.f32 %v1506, %v1514
      %vm1580 = vcmask 64512
      %1581 = vst.msk [vmem:[%s248] sm:$0xff] %vm1580, %v1516
      %1582 = vst.msk [vmem:[%s248 + $0x8] sm:$0xff] %vm1580, %v1517
      %1583 = vst.msk [vmem:[%s248 + $0x10] sm:$0xff] %vm1580, %v1518
      %1584 = vst.msk [vmem:[%s248 + $0x18] sm:$0xff] %vm1580, %v1519
      %1585 = vst.msk [vmem:[%s248 + $0x20] sm:$0xff] %vm1580, %v1520
      %1586 = vst.msk [vmem:[%s248 + $0x28] sm:$0xff] %vm1580, %v1521
      %1587 = vst.msk [vmem:[%s248 + $0x30] sm:$0xff] %vm1580, %v1522
      %1588 = vst.msk [vmem:[%s248 + $0x38] sm:$0xff] %vm1580, %v1523
      %1589 = vst.msk [vmem:[%s248 + $0x40] sm:$0xff] %vm1580, %v1524
      %1590 = vst.msk [vmem:[%s248 + $0x48] sm:$0xff] %vm1580, %v1525
      %1591 = vst.msk [vmem:[%s248 + $0x50] sm:$0xff] %vm1580, %v1526
      %1592 = vst.msk [vmem:[%s248 + $0x58] sm:$0xff] %vm1580, %v1527
      %1593 = vst.msk [vmem:[%s248 + $0x60] sm:$0xff] %vm1580, %v1528
      %1594 = vst.msk [vmem:[%s248 + $0x68] sm:$0xff] %vm1580, %v1529
      %1595 = vst.msk [vmem:[%s248 + $0x70] sm:$0xff] %vm1580, %v1530
      %1596 = vst.msk [vmem:[%s248 + $0x78] sm:$0xff] %vm1580, %v1531
      %1597 = vst.msk [vmem:[%s248 + $0x80] sm:$0xff] %vm1580, %v1532
      %1598 = vst.msk [vmem:[%s248 + $0x88] sm:$0xff] %vm1580, %v1533
      %1599 = vst.msk [vmem:[%s248 + $0x90] sm:$0xff] %vm1580, %v1534
      %1600 = vst.msk [vmem:[%s248 + $0x98] sm:$0xff] %vm1580, %v1535
      %1601 = vst.msk [vmem:[%s248 + $0xa0] sm:$0xff] %vm1580, %v1536
      %1602 = vst.msk [vmem:[%s248 + $0xa8] sm:$0xff] %vm1580, %v1537
      %1603 = vst.msk [vmem:[%s248 + $0xb0] sm:$0xff] %vm1580, %v1538
      %1604 = vst.msk [vmem:[%s248 + $0xb8] sm:$0xff] %vm1580, %v1539
      %1605 = vst.msk [vmem:[%s248 + $0xc0] sm:$0xff] %vm1580, %v1540
      %1606 = vst.msk [vmem:[%s248 + $0xc8] sm:$0xff] %vm1580, %v1541
      %1607 = vst.msk [vmem:[%s248 + $0xd0] sm:$0xff] %vm1580, %v1542
      %1608 = vst.msk [vmem:[%s248 + $0xd8] sm:$0xff] %vm1580, %v1543
      %1609 = vst.msk [vmem:[%s248 + $0xe0] sm:$0xff] %vm1580, %v1544
      %1610 = vst.msk [vmem:[%s248 + $0xe8] sm:$0xff] %vm1580, %v1545
      %1611 = vst.msk [vmem:[%s248 + $0xf0] sm:$0xff] %vm1580, %v1546
      %1612 = vst.msk [vmem:[%s248 + $0xf8] sm:$0xff] %vm1580, %v1547
      %1613 = vst.msk [vmem:[%s248 + $0x100] sm:$0xff] %vm1580, %v1548
      %1614 = vst.msk [vmem:[%s248 + $0x108] sm:$0xff] %vm1580, %v1549
      %1615 = vst.msk [vmem:[%s248 + $0x110] sm:$0xff] %vm1580, %v1550
      %1616 = vst.msk [vmem:[%s248 + $0x118] sm:$0xff] %vm1580, %v1551
      %1617 = vst.msk [vmem:[%s248 + $0x120] sm:$0xff] %vm1580, %v1552
      %1618 = vst.msk [vmem:[%s248 + $0x128] sm:$0xff] %vm1580, %v1553
      %1619 = vst.msk [vmem:[%s248 + $0x130] sm:$0xff] %vm1580, %v1554
      %1620 = vst.msk [vmem:[%s248 + $0x138] sm:$0xff] %vm1580, %v1555
      %1621 = vst.msk [vmem:[%s248 + $0x140] sm:$0xff] %vm1580, %v1556
      %1622 = vst.msk [vmem:[%s248 + $0x148] sm:$0xff] %vm1580, %v1557
      %1623 = vst.msk [vmem:[%s248 + $0x150] sm:$0xff] %vm1580, %v1558
      %1624 = vst.msk [vmem:[%s248 + $0x158] sm:$0xff] %vm1580, %v1559
      %1625 = vst.msk [vmem:[%s248 + $0x160] sm:$0xff] %vm1580, %v1560
      %1626 = vst.msk [vmem:[%s248 + $0x168] sm:$0xff] %vm1580, %v1561
      %1627 = vst.msk [vmem:[%s248 + $0x170] sm:$0xff] %vm1580, %v1562
      %1628 = vst.msk [vmem:[%s248 + $0x178] sm:$0xff] %vm1580, %v1563
      %1629 = vst.msk [vmem:[%s248 + $0x180] sm:$0xff] %vm1580, %v1564
      %1630 = vst.msk [vmem:[%s248 + $0x188] sm:$0xff] %vm1580, %v1565
      %1631 = vst.msk [vmem:[%s248 + $0x190] sm:$0xff] %vm1580, %v1566
      %1632 = vst.msk [vmem:[%s248 + $0x198] sm:$0xff] %vm1580, %v1567
      %1633 = vst.msk [vmem:[%s248 + $0x1a0] sm:$0xff] %vm1580, %v1568
      %1634 = vst.msk [vmem:[%s248 + $0x1a8] sm:$0xff] %vm1580, %v1569
      %1635 = vst.msk [vmem:[%s248 + $0x1b0] sm:$0xff] %vm1580, %v1570
      %1636 = vst.msk [vmem:[%s248 + $0x1b8] sm:$0xff] %vm1580, %v1571
      %1637 = vst.msk [vmem:[%s248 + $0x1c0] sm:$0xff] %vm1580, %v1572
      %1638 = vst.msk [vmem:[%s248 + $0x1c8] sm:$0xff] %vm1580, %v1573
      %1639 = vst.msk [vmem:[%s248 + $0x1d0] sm:$0xff] %vm1580, %v1574
      %1640 = vst.msk [vmem:[%s248 + $0x1d8] sm:$0xff] %vm1580, %v1575
      %1641 = vst.msk [vmem:[%s248 + $0x1e0] sm:$0xff] %vm1580, %v1576
      %1642 = vst.msk [vmem:[%s248 + $0x1e8] sm:$0xff] %vm1580, %v1577
      %1643 = vst.msk [vmem:[%s248 + $0x1f0] sm:$0xff] %vm1580, %v1578
      %1644 = vst.msk [vmem:[%s248 + $0x1f8] sm:$0xff] %vm1580, %v1579
      %s1645 = smul.u32 64, %s16
      %p1646 = scmp.lt.s32.totalorder %s1645, 831
      %s1647 = scalar_select %p1646, %s1645, 831
      %s1648 = smul.addr %s1647, 8
      %s1649 = scalar_lea.vmem %s5, %s1648
      // Predicated region
      $region41: #{fc_discriminator_forward.5} parent=39 // pred_check
        %p1650 = pneg %p149
      $region42: #{fc_discriminator_forward.5} parent=39 // pred_check_branch
        %1652 = sbr.rel (%p1650) target = $region44
      $region43: #{fc_discriminator_forward.5} parent=39 // pred_region
        %s1653 = smul.u32 64, %s16
      $region44: #{fc_discriminator_forward.5} parent=39 // pred_fallthru
        _
    $region40: #{fc_discriminator_forward.5} parent=5 // pred_fallthru
      _
    %p1654 = scmp.le.s32.totalorder 2, %s11
    // Predicated region
    $region45: #{fc_discriminator_forward.5} parent=5 // pred_check
      %p1655 = pneg %p1654
    $region46: #{fc_discriminator_forward.5} parent=5 // pred_check_branch
      %1657 = sbr.rel (%p1655) target = $region48
    $region47: #{fc_discriminator_forward.5} parent=5 // pred_region
      %s1658 = ssub.s32 %s11, 2
      // Predicated region
      $region49: #{fc_discriminator_forward.5} parent=47 // pred_check
        %p1659 = pneg %p155
      $region50: #{fc_discriminator_forward.5} parent=47 // pred_check_branch
        %1661 = sbr.rel (%p1659) target = $region52
      $region51: #{fc_discriminator_forward.5} parent=47 // pred_region
        %s1662 = smul.u32 64, %s17
        %p1663 = scmp.lt.s32.totalorder %s1662, 831
        %s1664 = scalar_select %p1663, %s1662, 831
        %s1665 = smul.addr %s1664, 8
        %s1666 = scalar_lea.vmem %s5, %s1665
      $region52: #{fc_discriminator_forward.5} parent=47 // pred_fallthru
        _
    $region48: #{fc_discriminator_forward.5} parent=5 // pred_fallthru
      _
  $region6: #{fc_discriminator_forward.5} parent=0 // loop_footer
    %s15 = sadd.s32 1, %s11
  $region7: #{fc_discriminator_forward.5} parent=0 // loop_footer_branch
    %10 = sbr.rel target = $region3
  $region8: #{fc_discriminator_forward.5} parent=0 // loop_exit
    _

// kernel: fc_discriminator_forward.6
$region0: #{fc_discriminator_forward.6}
  #allocation0 [shape = 'u32[]', space=smem, size = 0x4, offset = 0x4, fixed_abs, tag = 'smem constant byte address 0x4 - core index']
  #allocation1 [shape = 'u32[144,128]{1,0:T(1,128)}', space=vmem, size = 0x12000, scoped, tag = 'internal scratch']
  #allocation2 [shape = 'f32[512,16]{1,0:T(8,128)}', space=vmem, size = 0x40000, scoped, tag = 'scratch operand']
  %s0 = inlined_call_operand.vmem [shape: bf16[9,2048,8], index: 0, kind: input, shape index: {}]
  %s1 = inlined_call_operand.vmem [shape: bf16[9,8,16], index: 1, kind: input, shape index: {}]
  %s2 = inlined_call_operand.vmem [shape: f32[1,16], index: 2, kind: input, shape index: {}]
  %s3 = inlined_call_operand.vmem [shape: f32[2048,16], index: 3, kind: output, shape index: {}]
  %s4 = sld [smem:[#allocation0]]
  $region53: #{fc_discriminator_forward.6} parent=0
    _
  %s6 = ssub.s32 1, %s4
  %s7 = scalar_select 0, %s6, %s4
  loop: start=0, step=1, limit=38
  $region2: #{fc_discriminator_forward.6} parent=0 // loop_pre_header
    _
  $region3: #{fc_discriminator_forward.6} parent=0 // loop_header
    %s9 = sphi 0, %s13
    %p10 = scmp.ge.s32.totalorder %s9, 38
    %s16 = sphi 0, %s28
    %s17 = sphi 0, %s24
    %s18 = sphi 0, %s16
    %s19 = sphi 0, %s17
    %s20 = sphi 0, %s18
    %s21 = sphi 0, %s19
    %s33 = sphi 0, %s35
    %s36 = sphi 0, %s33
    %s37 = sphi 0, %s36
    %s53 = sphi 0, %s37
    %s59 = sphi 0, %s61
    %s62 = sphi 0, %s59
    %s63 = sphi 0, %s62
    %s79 = sphi 0, %s63
    %s83 = sphi 0, %s83
    %s85 = sphi 0, %s83
    %s86 = sphi 0, %s85
    %s100 = sphi 0, %s86
    %s106 = sphi 0, %s108
    %s109 = sphi 0, %s106
    %s110 = sphi 0, %s109
    %s126 = sphi 0, %s110
  $region4: #{fc_discriminator_forward.6} parent=0 // loop_header_branch
    %12 = sbr.rel (%p10) target = $region8
  $region5: #{fc_discriminator_forward.6} parent=0 // loop_body
    %s14 = ssub.s32 %s9, 1
    %s15 = ssub.s32 %s9, 2
    %s22 = sadd.s32 1, %s17
    %p23 = scmp.ge.s32.totalorder %s22, 9
    %s24 = scalar_select %p23, 0, %s22
    %s25 = sadd.s32 1, %s16
    %s26 = scalar_select %p23, %s25, %s16
    %p27 = scmp.ge.s32.totalorder %s26, 4
    %s28 = scalar_select %p27, 0, %s26
    %s29 = ssub.s32 %s17, %s24
    %s30 = ssub.s32 %s16, %s28
    %s31 = sor.u32 %s29, %s30
    %p32 = scmp.eq.s32.totalorder %s31, 0
    %s34 = sadd.s32 %s33, 1
    %s35 = scalar_select %p32, %s33, %s34
    %p38 = pneg %p32
    %p39 = scmp.eq.s32.totalorder %s9, 35
    %p40 = por %p38, %p39
    %p41 = scmp.ne.s32.totalorder %s33, %s36
    %p42 = scmp.eq.s32.totalorder %s9, 0
    %p43 = por %p41, %p42
    %p44 = scmp.ne.s32.totalorder %s33, %s36
    %p45 = scmp.eq.s32.totalorder %s14, 35
    %p46 = por %p44, %p45
    %p47 = scmp.ne.s32.totalorder %s36, %s37
    %p48 = scmp.eq.s32.totalorder %s14, 0
    %p49 = por %p47, %p48
    %p50 = scmp.ne.s32.totalorder %s36, %s37
    %p51 = scmp.eq.s32.totalorder %s15, 35
    %p52 = por %p50, %p51
    %p54 = scmp.ne.s32.totalorder %s37, %s53
    %p55 = scmp.eq.s32.totalorder %s15, 0
    %p56 = por %p54, %p55
    %s57 = ssub.s32 %s17, %s24
    %p58 = scmp.eq.s32.totalorder %s57, 0
    %s60 = sadd.s32 %s59, 1
    %s61 = scalar_select %p58, %s59, %s60
    %p64 = pneg %p58
    %p65 = scmp.eq.s32.totalorder %s9, 35
    %p66 = por %p64, %p65
    %p67 = scmp.ne.s32.totalorder %s59, %s62
    %p68 = scmp.eq.s32.totalorder %s9, 0
    %p69 = por %p67, %p68
    %p70 = scmp.ne.s32.totalorder %s59, %s62
    %p71 = scmp.eq.s32.totalorder %s14, 35
    %p72 = por %p70, %p71
    %p73 = scmp.ne.s32.totalorder %s62, %s63
    %p74 = scmp.eq.s32.totalorder %s14, 0
    %p75 = por %p73, %p74
    %p76 = scmp.ne.s32.totalorder %s62, %s63
    %p77 = scmp.eq.s32.totalorder %s15, 35
    %p78 = por %p76, %p77
    %p80 = scmp.ne.s32.totalorder %s63, %s79
    %p81 = scmp.eq.s32.totalorder %s15, 0
    %p82 = por %p80, %p81
    %s84 = sadd.s32 %s83, 1
    %p87 = scmp.eq.s32.totalorder %s9, 35
    %p88 = scmp.ne.s32.totalorder %s83, %s85
    %p89 = scmp.eq.s32.totalorder %s9, 0
    %p90 = por %p88, %p89
    %p91 = scmp.ne.s32.totalorder %s83, %s85
    %p92 = scmp.eq.s32.totalorder %s14, 35
    %p93 = por %p91, %p92
    %p94 = scmp.ne.s32.totalorder %s85, %s86
    %p95 = scmp.eq.s32.totalorder %s14, 0
    %p96 = por %p94, %p95
    %p97 = scmp.ne.s32.totalorder %s85, %s86
    %p98 = scmp.eq.s32.totalorder %s15, 35
    %p99 = por %p97, %p98
    %p101 = scmp.ne.s32.totalorder %s86, %s100
    %p102 = scmp.eq.s32.totalorder %s15, 0
    %p103 = por %p101, %p102
    %s104 = ssub.s32 %s16, %s28
    %p105 = scmp.eq.s32.totalorder %s104, 0
    %s107 = sadd.s32 %s106, 1
    %s108 = scalar_select %p105, %s106, %s107
    %p111 = pneg %p105
    %p112 = scmp.eq.s32.totalorder %s9, 35
    %p113 = por %p111, %p112
    %p114 = scmp.ne.s32.totalorder %s106, %s109
    %p115 = scmp.eq.s32.totalorder %s9, 0
    %p116 = por %p114, %p115
    %p117 = scmp.ne.s32.totalorder %s106, %s109
    %p118 = scmp.eq.s32.totalorder %s14, 35
    %p119 = por %p117, %p118
    %p120 = scmp.ne.s32.totalorder %s109, %s110
    %p121 = scmp.eq.s32.totalorder %s14, 0
    %p122 = por %p120, %p121
    %p123 = scmp.ne.s32.totalorder %s109, %s110
    %p124 = scmp.eq.s32.totalorder %s15, 35
    %p125 = por %p123, %p124
    %p127 = scmp.ne.s32.totalorder %s110, %s126
    %p128 = scmp.eq.s32.totalorder %s15, 0
    %p129 = por %p127, %p128
    %p130 = scmp.le.s32.totalorder 1, %s9
    %p131 = scmp.lt.s32.totalorder %s9, 37
    %p132 = pnand %p130, %p131
    %p133 = pneg %p132
    // Predicated region
    $region9: #{fc_discriminator_forward.6} parent=5 // pred_check
      _
    $region10: #{fc_discriminator_forward.6} parent=5 // pred_check_branch
      %135 = sbr.rel (%p132) target = $region12
    $region11: #{fc_discriminator_forward.6} parent=5 // pred_region
      %s136 = ssub.s32 %s9, 1
      // Predicated region
      $region13: #{fc_discriminator_forward.6} parent=11 // pred_check
        %p137 = pneg %p96
      $region14: #{fc_discriminator_forward.6} parent=11 // pred_check_branch
        %139 = sbr.rel (%p137) target = $region16
      $region15: #{fc_discriminator_forward.6} parent=11 // pred_region
        _
      $region16: #{fc_discriminator_forward.6} parent=11 // pred_fallthru
        _
    $region12: #{fc_discriminator_forward.6} parent=5 // pred_fallthru
      _
    %p140 = scmp.lt.s32.totalorder %s9, 36
    // Predicated region
    $region17: #{fc_discriminator_forward.6} parent=5 // pred_check
      %p141 = pneg %p140
    $region18: #{fc_discriminator_forward.6} parent=5 // pred_check_branch
      %143 = sbr.rel (%p141) target = $region20
    $region19: #{fc_discriminator_forward.6} parent=5 // pred_region
      // Predicated region
      $region21: #{fc_discriminator_forward.6} parent=19 // pred_check
        %p144 = pneg %p43
      $region22: #{fc_discriminator_forward.6} parent=19 // pred_check_branch
        %146 = sbr.rel (%p144) target = $region24
      $region23: #{fc_discriminator_forward.6} parent=19 // pred_region
        %s147 = smul.u32 64, %s16
        %p148 = scmp.lt.s32.totalorder %s17, 8
        %s149 = scalar_select %p148, %s17, 8
        %p150 = scmp.lt.s32.totalorder %s147, 255
        %s151 = scalar_select %p150, %s147, 255
        %s152 = smul.addr %s149, 256
        %s153 = sadd.s32 %s151, %s152
        %s154 = smul.addr %s153, 4
        %s155 = scalar_lea.vmem %s0, %s154
        %s156 = smul.u32 64, %s16
      $region24: #{fc_discriminator_forward.6} parent=19 // pred_fallthru
        _
      // Predicated region
      $region25: #{fc_discriminator_forward.6} parent=19 // pred_check
        %p157 = pneg %p69
      $region26: #{fc_discriminator_forward.6} parent=19 // pred_check_branch
        %159 = sbr.rel (%p157) target = $region28
      $region27: #{fc_discriminator_forward.6} parent=19 // pred_region
        %p160 = scmp.lt.s32.totalorder %s17, 8
        %s161 = scalar_select %p160, %s17, 8
        %s162 = smul.addr %s161, 4
        %s163 = scalar_lea.vmem %s1, %s162
      $region28: #{fc_discriminator_forward.6} parent=19 // pred_fallthru
        _
    $region20: #{fc_discriminator_forward.6} parent=5 // pred_fallthru
      _
    %p164 = scmp.le.s32.totalorder 1, %s9
    %p165 = scmp.lt.s32.totalorder %s9, 37
    %p166 = pnand %p164, %p165
    %p167 = pneg %p166
    // Predicated region
    $region29: #{fc_discriminator_forward.6} parent=5 // pred_check
      _
    $region30: #{fc_discriminator_forward.6} parent=5 // pred_check_branch
      %169 = sbr.rel (%p166) target = $region32
    $region31: #{fc_discriminator_forward.6} parent=5 // pred_region
      %s170 = ssub.s32 %s9, 1
      %s171 = smul.u32 64, %s18
      %p172 = scmp.lt.s32.totalorder %s19, 8
      %s173 = scalar_select %p172, %s19, 8
      %p174 = scmp.lt.s32.totalorder %s171, 255
      %s175 = scalar_select %p174, %s171, 255
      %s176 = smul.addr %s173, 256
      %s177 = sadd.s32 %s175, %s176
      %s178 = smul.addr %s177, 4
      %s179 = scalar_lea.vmem %s0, %s178
      %p180 = pneg %p49
      %p181 = pneg %p46
      %p182 = scmp.lt.s32.totalorder %s19, 8
      %s183 = scalar_select %p182, %s19, 8
      %s184 = smul.addr %s183, 4
      %s185 = scalar_lea.vmem %s1, %s184
      %p186 = pneg %p75
      %p187 = pneg %p72
      %p188 = pneg %p96
      %p189 = pneg %p93
      %p190 = pneg %p122
      %p191 = pneg %p119
      %s192 = smul.u32 64, %s18
      %p193 = scmp.lt.s32.totalorder %s192, 255
      %s194 = scalar_select %p193, %s192, 255
      %s195 = smul.addr %s194, 8
      %s196 = scalar_lea.vmem %s3, %s195
      %s197 = smul.u32 64, %s18
      %p198 = scmp.lt.s32.totalorder %s19, 8
      %s199 = scalar_select %p198, %s19, 8
      %p200 = scmp.lt.s32.totalorder %s197, 255
      %s201 = scalar_select %p200, %s197, 255
      %s202 = smul.addr %s199, 256
      %s203 = sadd.s32 %s201, %s202
      %s204 = smul.addr %s203, 4
      %s205 = scalar_lea.vmem %s0, %s204
      %s206 = smul.u32 64, %s18
      %p207 = scmp.lt.s32.totalorder %s19, 8
      %s208 = scalar_select %p207, %s19, 8
      %s209 = smul.addr %s208, 4
      %s210 = scalar_lea.vmem %s1, %s209
      %s211 = smul.u32 64, %s18
      %p212 = scmp.lt.s32.totalorder %s211, 255
      %s213 = scalar_select %p212, %s211, 255
      %s214 = smul.addr %s213, 8
      %s215 = scalar_lea.vmem %s3, %s214
      %s216 = smul.u32 64, %s18
      %p218 = scmp.eq.s32.totalorder %s19, 0
      // Predicated region
      $region33: #{fc_discriminator_forward.6} parent=31 // pred_check
        %p219 = pneg %p218
      $region34: #{fc_discriminator_forward.6} parent=31 // pred_check_branch
        %221 = sbr.rel (%p219) target = $region36
      $region35: #{fc_discriminator_forward.6} parent=31 // pred_region
        %vm222 = vcmask 130048
        %223 = vst.msk [vmem:[#allocation2] sm:$0xff] %vm222, 0.0
        %224 = vst.msk [vmem:[#allocation2 + $0x8] sm:$0xff] %vm222, 0.0
        %225 = vst.msk [vmem:[#allocation2 + $0x10] sm:$0xff] %vm222, 0.0
        %226 = vst.msk [vmem:[#allocation2 + $0x18] sm:$0xff] %vm222, 0.0
        %227 = vst.msk [vmem:[#allocation2 + $0x20] sm:$0xff] %vm222, 0.0
        %228 = vst.msk [vmem:[#allocation2 + $0x28] sm:$0xff] %vm222, 0.0
        %229 = vst.msk [vmem:[#allocation2 + $0x30] sm:$0xff] %vm222, 0.0
        %230 = vst.msk [vmem:[#allocation2 + $0x38] sm:$0xff] %vm222, 0.0
        %231 = vst.msk [vmem:[#allocation2 + $0x40] sm:$0xff] %vm222, 0.0
        %232 = vst.msk [vmem:[#allocation2 + $0x48] sm:$0xff] %vm222, 0.0
        %233 = vst.msk [vmem:[#allocation2 + $0x50] sm:$0xff] %vm222, 0.0
        %234 = vst.msk [vmem:[#allocation2 + $0x58] sm:$0xff] %vm222, 0.0
        %235 = vst.msk [vmem:[#allocation2 + $0x60] sm:$0xff] %vm222, 0.0
        %236 = vst.msk [vmem:[#allocation2 + $0x68] sm:$0xff] %vm222, 0.0
        %237 = vst.msk [vmem:[#allocation2 + $0x70] sm:$0xff] %vm222, 0.0
        %238 = vst.msk [vmem:[#allocation2 + $0x78] sm:$0xff] %vm222, 0.0
        %239 = vst.msk [vmem:[#allocation2 + $0x80] sm:$0xff] %vm222, 0.0
        %240 = vst.msk [vmem:[#allocation2 + $0x88] sm:$0xff] %vm222, 0.0
        %241 = vst.msk [vmem:[#allocation2 + $0x90] sm:$0xff] %vm222, 0.0
        %242 = vst.msk [vmem:[#allocation2 + $0x98] sm:$0xff] %vm222, 0.0
        %243 = vst.msk [vmem:[#allocation2 + $0xa0] sm:$0xff] %vm222, 0.0
        %244 = vst.msk [vmem:[#allocation2 + $0xa8] sm:$0xff] %vm222, 0.0
        %245 = vst.msk [vmem:[#allocation2 + $0xb0] sm:$0xff] %vm222, 0.0
        %246 = vst.msk [vmem:[#allocation2 + $0xb8] sm:$0xff] %vm222, 0.0
        %247 = vst.msk [vmem:[#allocation2 + $0xc0] sm:$0xff] %vm222, 0.0
        %248 = vst.msk [vmem:[#allocation2 + $0xc8] sm:$0xff] %vm222, 0.0
        %249 = vst.msk [vmem:[#allocation2 + $0xd0] sm:$0xff] %vm222, 0.0
        %250 = vst.msk [vmem:[#allocation2 + $0xd8] sm:$0xff] %vm222, 0.0
        %251 = vst.msk [vmem:[#allocation2 + $0xe0] sm:$0xff] %vm222, 0.0
        %252 = vst.msk [vmem:[#allocation2 + $0xe8] sm:$0xff] %vm222, 0.0
        %253 = vst.msk [vmem:[#allocation2 + $0xf0] sm:$0xff] %vm222, 0.0
        %254 = vst.msk [vmem:[#allocation2 + $0xf8] sm:$0xff] %vm222, 0.0
        %255 = vst.msk [vmem:[#allocation2 + $0x100] sm:$0xff] %vm222, 0.0
        %256 = vst.msk [vmem:[#allocation2 + $0x108] sm:$0xff] %vm222, 0.0
        %257 = vst.msk [vmem:[#allocation2 + $0x110] sm:$0xff] %vm222, 0.0
        %258 = vst.msk [vmem:[#allocation2 + $0x118] sm:$0xff] %vm222, 0.0
        %259 = vst.msk [vmem:[#allocation2 + $0x120] sm:$0xff] %vm222, 0.0
        %260 = vst.msk [vmem:[#allocation2 + $0x128] sm:$0xff] %vm222, 0.0
        %261 = vst.msk [vmem:[#allocation2 + $0x130] sm:$0xff] %vm222, 0.0
        %262 = vst.msk [vmem:[#allocation2 + $0x138] sm:$0xff] %vm222, 0.0
        %263 = vst.msk [vmem:[#allocation2 + $0x140] sm:$0xff] %vm222, 0.0
        %264 = vst.msk [vmem:[#allocation2 + $0x148] sm:$0xff] %vm222, 0.0
        %265 = vst.msk [vmem:[#allocation2 + $0x150] sm:$0xff] %vm222, 0.0
        %266 = vst.msk [vmem:[#allocation2 + $0x158] sm:$0xff] %vm222, 0.0
        %267 = vst.msk [vmem:[#allocation2 + $0x160] sm:$0xff] %vm222, 0.0
        %268 = vst.msk [vmem:[#allocation2 + $0x168] sm:$0xff] %vm222, 0.0
        %269 = vst.msk [vmem:[#allocation2 + $0x170] sm:$0xff] %vm222, 0.0
        %270 = vst.msk [vmem:[#allocation2 + $0x178] sm:$0xff] %vm222, 0.0
        %271 = vst.msk [vmem:[#allocation2 + $0x180] sm:$0xff] %vm222, 0.0
        %272 = vst.msk [vmem:[#allocation2 + $0x188] sm:$0xff] %vm222, 0.0
        %273 = vst.msk [vmem:[#allocation2 + $0x190] sm:$0xff] %vm222, 0.0
        %274 = vst.msk [vmem:[#allocation2 + $0x198] sm:$0xff] %vm222, 0.0
        %275 = vst.msk [vmem:[#allocation2 + $0x1a0] sm:$0xff] %vm222, 0.0
        %276 = vst.msk [vmem:[#allocation2 + $0x1a8] sm:$0xff] %vm222, 0.0
        %277 = vst.msk [vmem:[#allocation2 + $0x1b0] sm:$0xff] %vm222, 0.0
        %278 = vst.msk [vmem:[#allocation2 + $0x1b8] sm:$0xff] %vm222, 0.0
        %279 = vst.msk [vmem:[#allocation2 + $0x1c0] sm:$0xff] %vm222, 0.0
        %280 = vst.msk [vmem:[#allocation2 + $0x1c8] sm:$0xff] %vm222, 0.0
        %281 = vst.msk [vmem:[#allocation2 + $0x1d0] sm:$0xff] %vm222, 0.0
        %282 = vst.msk [vmem:[#allocation2 + $0x1d8] sm:$0xff] %vm222, 0.0
        %283 = vst.msk [vmem:[#allocation2 + $0x1e0] sm:$0xff] %vm222, 0.0
        %284 = vst.msk [vmem:[#allocation2 + $0x1e8] sm:$0xff] %vm222, 0.0
        %285 = vst.msk [vmem:[#allocation2 + $0x1f0] sm:$0xff] %vm222, 0.0
        %286 = vst.msk [vmem:[#allocation2 + $0x1f8] sm:$0xff] %vm222, 0.0
      $region36: #{fc_discriminator_forward.6} parent=31 // pred_fallthru
        _
      %v287 = vld [vmem:[#allocation2] sm:$0xff]
      %v288 = vld [vmem:[#allocation2 + $0x8] sm:$0xff]
      %v289 = vld [vmem:[#allocation2 + $0x10] sm:$0xff]
      %v290 = vld [vmem:[#allocation2 + $0x18] sm:$0xff]
      %v291 = vld [vmem:[#allocation2 + $0x20] sm:$0xff]
      %v292 = vld [vmem:[#allocation2 + $0x28] sm:$0xff]
      %v293 = vld [vmem:[#allocation2 + $0x30] sm:$0xff]
      %v294 = vld [vmem:[#allocation2 + $0x38] sm:$0xff]
      %v295 = vld [vmem:[#allocation2 + $0x40] sm:$0xff]
      %v296 = vld [vmem:[#allocation2 + $0x48] sm:$0xff]
      %v297 = vld [vmem:[#allocation2 + $0x50] sm:$0xff]
      %v298 = vld [vmem:[#allocation2 + $0x58] sm:$0xff]
      %v299 = vld [vmem:[#allocation2 + $0x60] sm:$0xff]
      %v300 = vld [vmem:[#allocation2 + $0x68] sm:$0xff]
      %v301 = vld [vmem:[#allocation2 + $0x70] sm:$0xff]
      %v302 = vld [vmem:[#allocation2 + $0x78] sm:$0xff]
      %v303 = vld [vmem:[#allocation2 + $0x80] sm:$0xff]
      %v304 = vld [vmem:[#allocation2 + $0x88] sm:$0xff]
      %v305 = vld [vmem:[#allocation2 + $0x90] sm:$0xff]
      %v306 = vld [vmem:[#allocation2 + $0x98] sm:$0xff]
      %v307 = vld [vmem:[#allocation2 + $0xa0] sm:$0xff]
      %v308 = vld [vmem:[#allocation2 + $0xa8] sm:$0xff]
      %v309 = vld [vmem:[#allocation2 + $0xb0] sm:$0xff]
      %v310 = vld [vmem:[#allocation2 + $0xb8] sm:$0xff]
      %v311 = vld [vmem:[#allocation2 + $0xc0] sm:$0xff]
      %v312 = vld [vmem:[#allocation2 + $0xc8] sm:$0xff]
      %v313 = vld [vmem:[#allocation2 + $0xd0] sm:$0xff]
      %v314 = vld [vmem:[#allocation2 + $0xd8] sm:$0xff]
      %v315 = vld [vmem:[#allocation2 + $0xe0] sm:$0xff]
      %v316 = vld [vmem:[#allocation2 + $0xe8] sm:$0xff]
      %v317 = vld [vmem:[#allocation2 + $0xf0] sm:$0xff]
      %v318 = vld [vmem:[#allocation2 + $0xf8] sm:$0xff]
      %v319 = vld [vmem:[#allocation2 + $0x100] sm:$0xff]
      %v320 = vld [vmem:[#allocation2 + $0x108] sm:$0xff]
      %v321 = vld [vmem:[#allocation2 + $0x110] sm:$0xff]
      %v322 = vld [vmem:[#allocation2 + $0x118] sm:$0xff]
      %v323 = vld [vmem:[#allocation2 + $0x120] sm:$0xff]
      %v324 = vld [vmem:[#allocation2 + $0x128] sm:$0xff]
      %v325 = vld [vmem:[#allocation2 + $0x130] sm:$0xff]
      %v326 = vld [vmem:[#allocation2 + $0x138] sm:$0xff]
      %v327 = vld [vmem:[#allocation2 + $0x140] sm:$0xff]
      %v328 = vld [vmem:[#allocation2 + $0x148] sm:$0xff]
      %v329 = vld [vmem:[#allocation2 + $0x150] sm:$0xff]
      %v330 = vld [vmem:[#allocation2 + $0x158] sm:$0xff]
      %v331 = vld [vmem:[#allocation2 + $0x160] sm:$0xff]
      %v332 = vld [vmem:[#allocation2 + $0x168] sm:$0xff]
      %v333 = vld [vmem:[#allocation2 + $0x170] sm:$0xff]
      %v334 = vld [vmem:[#allocation2 + $0x178] sm:$0xff]
      %v335 = vld [vmem:[#allocation2 + $0x180] sm:$0xff]
      %v336 = vld [vmem:[#allocation2 + $0x188] sm:$0xff]
      %v337 = vld [vmem:[#allocation2 + $0x190] sm:$0xff]
      %v338 = vld [vmem:[#allocation2 + $0x198] sm:$0xff]
      %v339 = vld [vmem:[#allocation2 + $0x1a0] sm:$0xff]
      %v340 = vld [vmem:[#allocation2 + $0x1a8] sm:$0xff]
      %v341 = vld [vmem:[#allocation2 + $0x1b0] sm:$0xff]
      %v342 = vld [vmem:[#allocation2 + $0x1b8] sm:$0xff]
      %v343 = vld [vmem:[#allocation2 + $0x1c0] sm:$0xff]
      %v344 = vld [vmem:[#allocation2 + $0x1c8] sm:$0xff]
      %v345 = vld [vmem:[#allocation2 + $0x1d0] sm:$0xff]
      %v346 = vld [vmem:[#allocation2 + $0x1d8] sm:$0xff]
      %v347 = vld [vmem:[#allocation2 + $0x1e0] sm:$0xff]
      %v348 = vld [vmem:[#allocation2 + $0x1e8] sm:$0xff]
      %v349 = vld [vmem:[#allocation2 + $0x1f0] sm:$0xff]
      %v350 = vld [vmem:[#allocation2 + $0x1f8] sm:$0xff]
      %v351 = vld [vmem:[%s205] sm:$0xf]
      %v352 = vld [vmem:[%s205 + $0x4] sm:$0xf]
      %v353 = vld [vmem:[%s205 + $0x8] sm:$0xf]
      %v354 = vld [vmem:[%s205 + $0xc] sm:$0xf]
      %v355 = vld [vmem:[%s205 + $0x10] sm:$0xf]
      %v356 = vld [vmem:[%s205 + $0x14] sm:$0xf]
      %v357 = vld [vmem:[%s205 + $0x18] sm:$0xf]
      %v358 = vld [vmem:[%s205 + $0x1c] sm:$0xf]
      %v359 = vld [vmem:[%s205 + $0x20] sm:$0xf]
      %v360 = vld [vmem:[%s205 + $0x24] sm:$0xf]
      %v361 = vld [vmem:[%s205 + $0x28] sm:$0xf]
      %v362 = vld [vmem:[%s205 + $0x2c] sm:$0xf]
      %v363 = vld [vmem:[%s205 + $0x30] sm:$0xf]
      %v364 = vld [vmem:[%s205 + $0x34] sm:$0xf]
      %v365 = vld [vmem:[%s205 + $0x38] sm:$0xf]
      %v366 = vld [vmem:[%s205 + $0x3c] sm:$0xf]
      %v367 = vld [vmem:[%s205 + $0x40] sm:$0xf]
      %v368 = vld [vmem:[%s205 + $0x44] sm:$0xf]
      %v369 = vld [vmem:[%s205 + $0x48] sm:$0xf]
      %v370 = vld [vmem:[%s205 + $0x4c] sm:$0xf]
      %v371 = vld [vmem:[%s205 + $0x50] sm:$0xf]
      %v372 = vld [vmem:[%s205 + $0x54] sm:$0xf]
      %v373 = vld [vmem:[%s205 + $0x58] sm:$0xf]
      %v374 = vld [vmem:[%s205 + $0x5c] sm:$0xf]
      %v375 = vld [vmem:[%s205 + $0x60] sm:$0xf]
      %v376 = vld [vmem:[%s205 + $0x64] sm:$0xf]
      %v377 = vld [vmem:[%s205 + $0x68] sm:$0xf]
      %v378 = vld [vmem:[%s205 + $0x6c] sm:$0xf]
      %v379 = vld [vmem:[%s205 + $0x70] sm:$0xf]
      %v380 = vld [vmem:[%s205 + $0x74] sm:$0xf]
      %v381 = vld [vmem:[%s205 + $0x78] sm:$0xf]
      %v382 = vld [vmem:[%s205 + $0x7c] sm:$0xf]
      %v383 = vld [vmem:[%s205 + $0x80] sm:$0xf]
      %v384 = vld [vmem:[%s205 + $0x84] sm:$0xf]
      %v385 = vld [vmem:[%s205 + $0x88] sm:$0xf]
      %v386 = vld [vmem:[%s205 + $0x8c] sm:$0xf]
      %v387 = vld [vmem:[%s205 + $0x90] sm:$0xf]
      %v388 = vld [vmem:[%s205 + $0x94] sm:$0xf]
      %v389 = vld [vmem:[%s205 + $0x98] sm:$0xf]
      %v390 = vld [vmem:[%s205 + $0x9c] sm:$0xf]
      %v391 = vld [vmem:[%s205 + $0xa0] sm:$0xf]
      %v392 = vld [vmem:[%s205 + $0xa4] sm:$0xf]
      %v393 = vld [vmem:[%s205 + $0xa8] sm:$0xf]
      %v394 = vld [vmem:[%s205 + $0xac] sm:$0xf]
      %v395 = vld [vmem:[%s205 + $0xb0] sm:$0xf]
      %v396 = vld [vmem:[%s205 + $0xb4] sm:$0xf]
      %v397 = vld [vmem:[%s205 + $0xb8] sm:$0xf]
      %v398 = vld [vmem:[%s205 + $0xbc] sm:$0xf]
      %v399 = vld [vmem:[%s205 + $0xc0] sm:$0xf]
      %v400 = vld [vmem:[%s205 + $0xc4] sm:$0xf]
      %v401 = vld [vmem:[%s205 + $0xc8] sm:$0xf]
      %v402 = vld [vmem:[%s205 + $0xcc] sm:$0xf]
      %v403 = vld [vmem:[%s205 + $0xd0] sm:$0xf]
      %v404 = vld [vmem:[%s205 + $0xd4] sm:$0xf]
      %v405 = vld [vmem:[%s205 + $0xd8] sm:$0xf]
      %v406 = vld [vmem:[%s205 + $0xdc] sm:$0xf]
      %v407 = vld [vmem:[%s205 + $0xe0] sm:$0xf]
      %v408 = vld [vmem:[%s205 + $0xe4] sm:$0xf]
      %v409 = vld [vmem:[%s205 + $0xe8] sm:$0xf]
      %v410 = vld [vmem:[%s205 + $0xec] sm:$0xf]
      %v411 = vld [vmem:[%s205 + $0xf0] sm:$0xf]
      %v412 = vld [vmem:[%s205 + $0xf4] sm:$0xf]
      %v413 = vld [vmem:[%s205 + $0xf8] sm:$0xf]
      %v414 = vld [vmem:[%s205 + $0xfc] sm:$0xf]
      %v415 = vld [vmem:[%s210] sm:$0xf]
      %v480 = vunpack.c.l.b16 %v351
      %v481 = vunpack.c.l.b16 %v352
      %v482 = vunpack.c.l.b16 %v353
      %v483 = vunpack.c.l.b16 %v354
      %v484 = vunpack.c.l.b16 %v355
      %v485 = vunpack.c.l.b16 %v356
      %v486 = vunpack.c.l.b16 %v357
      %v487 = vunpack.c.l.b16 %v358
      %v488 = vunpack.c.l.b16 %v359
      %v489 = vunpack.c.l.b16 %v360
      %v490 = vunpack.c.l.b16 %v361
      %v491 = vunpack.c.l.b16 %v362
      %v492 = vunpack.c.l.b16 %v363
      %v493 = vunpack.c.l.b16 %v364
      %v494 = vunpack.c.l.b16 %v365
      %v495 = vunpack.c.l.b16 %v366
      %v496 = vunpack.c.l.b16 %v367
      %v497 = vunpack.c.l.b16 %v368
      %v498 = vunpack.c.l.b16 %v369
      %v499 = vunpack.c.l.b16 %v370
      %v500 = vunpack.c.l.b16 %v371
      %v501 = vunpack.c.l.b16 %v372
      %v502 = vunpack.c.l.b16 %v373
      %v503 = vunpack.c.l.b16 %v374
      %v504 = vunpack.c.l.b16 %v375
      %v505 = vunpack.c.l.b16 %v376
      %v506 = vunpack.c.l.b16 %v377
      %v507 = vunpack.c.l.b16 %v378
      %v508 = vunpack.c.l.b16 %v379
      %v509 = vunpack.c.l.b16 %v380
      %v510 = vunpack.c.l.b16 %v381
      %v511 = vunpack.c.l.b16 %v382
      %v512 = vunpack.c.l.b16 %v383
      %v513 = vunpack.c.l.b16 %v384
      %v514 = vunpack.c.l.b16 %v385
      %v515 = vunpack.c.l.b16 %v386
      %v516 = vunpack.c.l.b16 %v387
      %v517 = vunpack.c.l.b16 %v388
      %v518 = vunpack.c.l.b16 %v389
      %v519 = vunpack.c.l.b16 %v390
      %v520 = vunpack.c.l.b16 %v391
      %v521 = vunpack.c.l.b16 %v392
      %v522 = vunpack.c.l.b16 %v393
      %v523 = vunpack.c.l.b16 %v394
      %v524 = vunpack.c.l.b16 %v395
      %v525 = vunpack.c.l.b16 %v396
      %v526 = vunpack.c.l.b16 %v397
      %v527 = vunpack.c.l.b16 %v398
      %v528 = vunpack.c.l.b16 %v399
      %v529 = vunpack.c.l.b16 %v400
      %v530 = vunpack.c.l.b16 %v401
      %v531 = vunpack.c.l.b16 %v402
      %v532 = vunpack.c.l.b16 %v403
      %v533 = vunpack.c.l.b16 %v404
      %v534 = vunpack.c.l.b16 %v405
      %v535 = vunpack.c.l.b16 %v406
      %v536 = vunpack.c.l.b16 %v407
      %v537 = vunpack.c.l.b16 %v408
      %v538 = vunpack.c.l.b16 %v409
      %v539 = vunpack.c.l.b16 %v410
      %v540 = vunpack.c.l.b16 %v411
      %v541 = vunpack.c.l.b16 %v412
      %v542 = vunpack.c.l.b16 %v413
      %v543 = vunpack.c.l.b16 %v414
      %v544 = vpack.c.b16 %v481, %v480
      %v545 = vpack.c.b16 %v483, %v482
      %v546 = vpack.c.b16 %v485, %v484
      %v547 = vpack.c.b16 %v487, %v486
      %v548 = vpack.c.b16 %v489, %v488
      %v549 = vpack.c.b16 %v491, %v490
      %v550 = vpack.c.b16 %v493, %v492
      %v551 = vpack.c.b16 %v495, %v494
      %v552 = vpack.c.b16 %v497, %v496
      %v553 = vpack.c.b16 %v499, %v498
      %v554 = vpack.c.b16 %v501, %v500
      %v555 = vpack.c.b16 %v503, %v502
      %v556 = vpack.c.b16 %v505, %v504
      %v557 = vpack.c.b16 %v507, %v506
      %v558 = vpack.c.b16 %v509, %v508
      %v559 = vpack.c.b16 %v511, %v510
      %v560 = vpack.c.b16 %v513, %v512
      %v561 = vpack.c.b16 %v515, %v514
      %v562 = vpack.c.b16 %v517, %v516
      %v563 = vpack.c.b16 %v519, %v518
      %v564 = vpack.c.b16 %v521, %v520
      %v565 = vpack.c.b16 %v523, %v522
      %v566 = vpack.c.b16 %v525, %v524
      %v567 = vpack.c.b16 %v527, %v526
      %v568 = vpack.c.b16 %v529, %v528
      %v569 = vpack.c.b16 %v531, %v530
      %v570 = vpack.c.b16 %v533, %v532
      %v571 = vpack.c.b16 %v535, %v534
      %v572 = vpack.c.b16 %v537, %v536
      %v573 = vpack.c.b16 %v539, %v538
      %v574 = vpack.c.b16 %v541, %v540
      %v575 = vpack.c.b16 %v543, %v542
      %vm576 = vcmask 64512
      %v578 = vsel %vm576, %v544, 0
      %v581 = vsel %vm576, %v545, 0
      %v584 = vsel %vm576, %v546, 0
      %v587 = vsel %vm576, %v547, 0
      %v590 = vsel %vm576, %v548, 0
      %v593 = vsel %vm576, %v549, 0
      %v596 = vsel %vm576, %v550, 0
      %v599 = vsel %vm576, %v551, 0
      %v602 = vsel %vm576, %v552, 0
      %v605 = vsel %vm576, %v553, 0
      %v608 = vsel %vm576, %v554, 0
      %v611 = vsel %vm576, %v555, 0
      %v614 = vsel %vm576, %v556, 0
      %v617 = vsel %vm576, %v557, 0
      %v620 = vsel %vm576, %v558, 0
      %v623 = vsel %vm576, %v559, 0
      %v626 = vsel %vm576, %v560, 0
      %v629 = vsel %vm576, %v561, 0
      %v632 = vsel %vm576, %v562, 0
      %v635 = vsel %vm576, %v563, 0
      %v638 = vsel %vm576, %v564, 0
      %v641 = vsel %vm576, %v565, 0
      %v644 = vsel %vm576, %v566, 0
      %v647 = vsel %vm576, %v567, 0
      %v650 = vsel %vm576, %v568, 0
      %v653 = vsel %vm576, %v569, 0
      %v656 = vsel %vm576, %v570, 0
      %v659 = vsel %vm576, %v571, 0
      %v662 = vsel %vm576, %v572, 0
      %v665 = vsel %vm576, %v573, 0
      %v668 = vsel %vm576, %v574, 0
      %v671 = vsel %vm576, %v575, 0
      %vm673 = vcmask 1043456
      %v675 = vsel %vm673, %v415, 0
      %677 = vmatprep.subr.bf16.mxu0 0
      %678 = vmatpush1.bf16.msra.mxu0 %v675
      %679 = vmatprep.subr.bf16.mxu0 0
      %680 = vmatpush1.bf16.msra.mxu0 0
      %681 = vmatprep.subr.bf16.mxu0 0
      %682 = vmatpush1.bf16.msra.mxu0 0
      %683 = vmatprep.subr.bf16.mxu0 0
      %684 = vmatpush1.bf16.msra.mxu0 0
      %685 = vmatprep.subr.bf16.mxu0 0
      %686 = vmatpush1.bf16.msra.mxu0 0
      %687 = vmatprep.subr.bf16.mxu0 0
      %688 = vmatpush1.bf16.msra.mxu0 0
      %689 = vmatprep.subr.bf16.mxu0 0
      %690 = vmatpush1.bf16.msra.mxu0 0
      %691 = vmatprep.subr.bf16.mxu0 0
      %692 = vmatpush1.bf16.msra.mxu0 0
      %693 = vmatprep.subr.bf16.mxu0 0
      %694 = vmatpush1.bf16.msra.mxu0 0
      %695 = vmatprep.subr.bf16.mxu0 0
      %696 = vmatpush1.bf16.msra.mxu0 0
      %697 = vmatprep.subr.bf16.mxu0 0
      %698 = vmatpush1.bf16.msra.mxu0 0
      %699 = vmatprep.subr.bf16.mxu0 0
      %700 = vmatpush1.bf16.msra.mxu0 0
      %701 = vmatprep.subr.bf16.mxu0 0
      %702 = vmatpush1.bf16.msra.mxu0 0
      %703 = vmatprep.subr.bf16.mxu0 0
      %704 = vmatpush1.bf16.msra.mxu0 0
      %705 = vmatprep.subr.bf16.mxu0 0
      %706 = vmatpush1.bf16.msra.mxu0 0
      %707 = vmatprep.subr.bf16.mxu0 0
      %708 = vmatpush1.bf16.msra.mxu0 0
      %709 = vmatprep.mubr.bf16.mxu0 0
      %710 = vmatmul.mubr.bf16.gmra.mrb[0].mxu0 %v578
      %v711 = vpop.f32.mrb[0].mxu0
      %v712 = vadd.f32 0.0, %v711
      %v713 = vpop.f32.mrb[0].mxu0
      %v714 = vpop.f32.mrb[0].mxu0
      %v715 = vadd.f32 0.0, %v714
      %v716 = vpop.f32.mrb[0].mxu0
      %717 = vmatprep.mubr.bf16.mxu0 0
      %718 = vmatmul.mubr.bf16.gmra.mrb[0].mxu0 %v581
      %v719 = vpop.f32.mrb[0].mxu0
      %v720 = vadd.f32 0.0, %v719
      %v721 = vpop.f32.mrb[0].mxu0
      %v722 = vpop.f32.mrb[0].mxu0
      %v723 = vadd.f32 0.0, %v722
      %v724 = vpop.f32.mrb[0].mxu0
      %725 = vmatprep.mubr.bf16.mxu0 0
      %726 = vmatmul.mubr.bf16.gmra.mrb[0].mxu0 %v584
      %v727 = vpop.f32.mrb[0].mxu0
      %v728 = vadd.f32 0.0, %v727
      %v729 = vpop.f32.mrb[0].mxu0
      %v730 = vpop.f32.mrb[0].mxu0
      %v731 = vadd.f32 0.0, %v730
      %v732 = vpop.f32.mrb[0].mxu0
      %733 = vmatprep.mubr.bf16.mxu0 0
      %734 = vmatmul.mubr.bf16.gmra.mrb[0].mxu0 %v587
      %v735 = vpop.f32.mrb[0].mxu0
      %v736 = vadd.f32 0.0, %v735
      %v737 = vpop.f32.mrb[0].mxu0
      %v738 = vpop.f32.mrb[0].mxu0
      %v739 = vadd.f32 0.0, %v738
      %v740 = vpop.f32.mrb[0].mxu0
      %741 = vmatprep.mubr.bf16.mxu0 0
      %742 = vmatmul.mubr.bf16.gmra.mrb[0].mxu0 %v590
      %v743 = vpop.f32.mrb[0].mxu0
      %v744 = vadd.f32 0.0, %v743
      %v745 = vpop.f32.mrb[0].mxu0
      %v746 = vpop.f32.mrb[0].mxu0
      %v747 = vadd.f32 0.0, %v746
      %v748 = vpop.f32.mrb[0].mxu0
      %749 = vmatprep.mubr.bf16.mxu0 0
      %750 = vmatmul.mubr.bf16.gmra.mrb[0].mxu0 %v593
      %v751 = vpop.f32.mrb[0].mxu0
      %v752 = vadd.f32 0.0, %v751
      %v753 = vpop.f32.mrb[0].mxu0
      %v754 = vpop.f32.mrb[0].mxu0
      %v755 = vadd.f32 0.0, %v754
      %v756 = vpop.f32.mrb[0].mxu0
      %757 = vmatprep.mubr.bf16.mxu0 0
      %758 = vmatmul.mubr.bf16.gmra.mrb[0].mxu0 %v596
      %v759 = vpop.f32.mrb[0].mxu0
      %v760 = vadd.f32 0.0, %v759
      %v761 = vpop.f32.mrb[0].mxu0
      %v762 = vpop.f32.mrb[0].mxu0
      %v763 = vadd.f32 0.0, %v762
      %v764 = vpop.f32.mrb[0].mxu0
      %765 = vmatprep.mubr.bf16.mxu0 0
      %766 = vmatmul.mubr.bf16.gmra.mrb[0].mxu0 %v599
      %v767 = vpop.f32.mrb[0].mxu0
      %v768 = vadd.f32 0.0, %v767
      %v769 = vpop.f32.mrb[0].mxu0
      %v770 = vpop.f32.mrb[0].mxu0
      %v771 = vadd.f32 0.0, %v770
      %v772 = vpop.f32.mrb[0].mxu0
      %773 = vmatprep.mubr.bf16.mxu0 0
      %774 = vmatmul.mubr.bf16.gmra.mrb[0].mxu0 %v602
      %v775 = vpop.f32.mrb[0].mxu0
      %v776 = vadd.f32 0.0, %v775
      %v777 = vpop.f32.mrb[0].mxu0
      %v778 = vpop.f32.mrb[0].mxu0
      %v779 = vadd.f32 0.0, %v778
      %v780 = vpop.f32.mrb[0].mxu0
      %781 = vmatprep.mubr.bf16.mxu0 0
      %782 = vmatmul.mubr.bf16.gmra.mrb[0].mxu0 %v605
      %v783 = vpop.f32.mrb[0].mxu0
      %v784 = vadd.f32 0.0, %v783
      %v785 = vpop.f32.mrb[0].mxu0
      %v786 = vpop.f32.mrb[0].mxu0
      %v787 = vadd.f32 0.0, %v786
      %v788 = vpop.f32.mrb[0].mxu0
      %789 = vmatprep.mubr.bf16.mxu0 0
      %790 = vmatmul.mubr.bf16.gmra.mrb[0].mxu0 %v608
      %v791 = vpop.f32.mrb[0].mxu0
      %v792 = vadd.f32 0.0, %v791
      %v793 = vpop.f32.mrb[0].mxu0
      %v794 = vpop.f32.mrb[0].mxu0
      %v795 = vadd.f32 0.0, %v794
      %v796 = vpop.f32.mrb[0].mxu0
      %797 = vmatprep.mubr.bf16.mxu0 0
      %798 = vmatmul.mubr.bf16.gmra.mrb[0].mxu0 %v611
      %v799 = vpop.f32.mrb[0].mxu0
      %v800 = vadd.f32 0.0, %v799
      %v801 = vpop.f32.mrb[0].mxu0
      %v802 = vpop.f32.mrb[0].mxu0
      %v803 = vadd.f32 0.0, %v802
      %v804 = vpop.f32.mrb[0].mxu0
      %805 = vmatprep.mubr.bf16.mxu0 0
      %806 = vmatmul.mubr.bf16.gmra.mrb[0].mxu0 %v614
      %v807 = vpop.f32.mrb[0].mxu0
      %v808 = vadd.f32 0.0, %v807
      %v809 = vpop.f32.mrb[0].mxu0
      %v810 = vpop.f32.mrb[0].mxu0
      %v811 = vadd.f32 0.0, %v810
      %v812 = vpop.f32.mrb[0].mxu0
      %813 = vmatprep.mubr.bf16.mxu0 0
      %814 = vmatmul.mubr.bf16.gmra.mrb[0].mxu0 %v617
      %v815 = vpop.f32.mrb[0].mxu0
      %v816 = vadd.f32 0.0, %v815
      %v817 = vpop.f32.mrb[0].mxu0
      %v818 = vpop.f32.mrb[0].mxu0
      %v819 = vadd.f32 0.0, %v818
      %v820 = vpop.f32.mrb[0].mxu0
      %821 = vmatprep.mubr.bf16.mxu0 0
      %822 = vmatmul.mubr.bf16.gmra.mrb[0].mxu0 %v620
      %v823 = vpop.f32.mrb[0].mxu0
      %v824 = vadd.f32 0.0, %v823
      %v825 = vpop.f32.mrb[0].mxu0
      %v826 = vpop.f32.mrb[0].mxu0
      %v827 = vadd.f32 0.0, %v826
      %v828 = vpop.f32.mrb[0].mxu0
      %829 = vmatprep.mubr.bf16.mxu0 0
      %830 = vmatmul.mubr.bf16.gmra.mrb[0].mxu0 %v623
      %v831 = vpop.f32.mrb[0].mxu0
      %v832 = vadd.f32 0.0, %v831
      %v833 = vpop.f32.mrb[0].mxu0
      %v834 = vpop.f32.mrb[0].mxu0
      %v835 = vadd.f32 0.0, %v834
      %v836 = vpop.f32.mrb[0].mxu0
      %837 = vmatprep.mubr.bf16.mxu0 0
      %838 = vmatmul.mubr.bf16.gmra.mrb[0].mxu0 %v626
      %v839 = vpop.f32.mrb[0].mxu0
      %v840 = vadd.f32 0.0, %v839
      %v841 = vpop.f32.mrb[0].mxu0
      %v842 = vpop.f32.mrb[0].mxu0
      %v843 = vadd.f32 0.0, %v842
      %v844 = vpop.f32.mrb[0].mxu0
      %845 = vmatprep.mubr.bf16.mxu0 0
      %846 = vmatmul.mubr.bf16.gmra.mrb[0].mxu0 %v629
      %v847 = vpop.f32.mrb[0].mxu0
      %v848 = vadd.f32 0.0, %v847
      %v849 = vpop.f32.mrb[0].mxu0
      %v850 = vpop.f32.mrb[0].mxu0
      %v851 = vadd.f32 0.0, %v850
      %v852 = vpop.f32.mrb[0].mxu0
      %853 = vmatprep.mubr.bf16.mxu0 0
      %854 = vmatmul.mubr.bf16.gmra.mrb[0].mxu0 %v632
      %v855 = vpop.f32.mrb[0].mxu0
      %v856 = vadd.f32 0.0, %v855
      %v857 = vpop.f32.mrb[0].mxu0
      %v858 = vpop.f32.mrb[0].mxu0
      %v859 = vadd.f32 0.0, %v858
      %v860 = vpop.f32.mrb[0].mxu0
      %861 = vmatprep.mubr.bf16.mxu0 0
      %862 = vmatmul.mubr.bf16.gmra.mrb[0].mxu0 %v635
      %v863 = vpop.f32.mrb[0].mxu0
      %v864 = vadd.f32 0.0, %v863
      %v865 = vpop.f32.mrb[0].mxu0
      %v866 = vpop.f32.mrb[0].mxu0
      %v867 = vadd.f32 0.0, %v866
      %v868 = vpop.f32.mrb[0].mxu0
      %869 = vmatprep.mubr.bf16.mxu0 0
      %870 = vmatmul.mubr.bf16.gmra.mrb[0].mxu0 %v638
      %v871 = vpop.f32.mrb[0].mxu0
      %v872 = vadd.f32 0.0, %v871
      %v873 = vpop.f32.mrb[0].mxu0
      %v874 = vpop.f32.mrb[0].mxu0
      %v875 = vadd.f32 0.0, %v874
      %v876 = vpop.f32.mrb[0].mxu0
      %877 = vmatprep.mubr.bf16.mxu0 0
      %878 = vmatmul.mubr.bf16.gmra.mrb[0].mxu0 %v641
      %v879 = vpop.f32.mrb[0].mxu0
      %v880 = vadd.f32 0.0, %v879
      %v881 = vpop.f32.mrb[0].mxu0
      %v882 = vpop.f32.mrb[0].mxu0
      %v883 = vadd.f32 0.0, %v882
      %v884 = vpop.f32.mrb[0].mxu0
      %885 = vmatprep.mubr.bf16.mxu0 0
      %886 = vmatmul.mubr.bf16.gmra.mrb[0].mxu0 %v644
      %v887 = vpop.f32.mrb[0].mxu0
      %v888 = vadd.f32 0.0, %v887
      %v889 = vpop.f32.mrb[0].mxu0
      %v890 = vpop.f32.mrb[0].mxu0
      %v891 = vadd.f32 0.0, %v890
      %v892 = vpop.f32.mrb[0].mxu0
      %893 = vmatprep.mubr.bf16.mxu0 0
      %894 = vmatmul.mubr.bf16.gmra.mrb[0].mxu0 %v647
      %v895 = vpop.f32.mrb[0].mxu0
      %v896 = vadd.f32 0.0, %v895
      %v897 = vpop.f32.mrb[0].mxu0
      %v898 = vpop.f32.mrb[0].mxu0
      %v899 = vadd.f32 0.0, %v898
      %v900 = vpop.f32.mrb[0].mxu0
      %901 = vmatprep.mubr.bf16.mxu0 0
      %902 = vmatmul.mubr.bf16.gmra.mrb[0].mxu0 %v650
      %v903 = vpop.f32.mrb[0].mxu0
      %v904 = vadd.f32 0.0, %v903
      %v905 = vpop.f32.mrb[0].mxu0
      %v906 = vpop.f32.mrb[0].mxu0
      %v907 = vadd.f32 0.0, %v906
      %v908 = vpop.f32.mrb[0].mxu0
      %909 = vmatprep.mubr.bf16.mxu0 0
      %910 = vmatmul.mubr.bf16.gmra.mrb[0].mxu0 %v653
      %v911 = vpop.f32.mrb[0].mxu0
      %v912 = vadd.f32 0.0, %v911
      %v913 = vpop.f32.mrb[0].mxu0
      %v914 = vpop.f32.mrb[0].mxu0
      %v915 = vadd.f32 0.0, %v914
      %v916 = vpop.f32.mrb[0].mxu0
      %917 = vmatprep.mubr.bf16.mxu0 0
      %918 = vmatmul.mubr.bf16.gmra.mrb[0].mxu0 %v656
      %v919 = vpop.f32.mrb[0].mxu0
      %v920 = vadd.f32 0.0, %v919
      %v921 = vpop.f32.mrb[0].mxu0
      %v922 = vpop.f32.mrb[0].mxu0
      %v923 = vadd.f32 0.0, %v922
      %v924 = vpop.f32.mrb[0].mxu0
      %925 = vmatprep.mubr.bf16.mxu0 0
      %926 = vmatmul.mubr.bf16.gmra.mrb[0].mxu0 %v659
      %v927 = vpop.f32.mrb[0].mxu0
      %v928 = vadd.f32 0.0, %v927
      %v929 = vpop.f32.mrb[0].mxu0
      %v930 = vpop.f32.mrb[0].mxu0
      %v931 = vadd.f32 0.0, %v930
      %v932 = vpop.f32.mrb[0].mxu0
      %933 = vmatprep.mubr.bf16.mxu0 0
      %934 = vmatmul.mubr.bf16.gmra.mrb[0].mxu0 %v662
      %v935 = vpop.f32.mrb[0].mxu0
      %v936 = vadd.f32 0.0, %v935
      %v937 = vpop.f32.mrb[0].mxu0
      %v938 = vpop.f32.mrb[0].mxu0
      %v939 = vadd.f32 0.0, %v938
      %v940 = vpop.f32.mrb[0].mxu0
      %941 = vmatprep.mubr.bf16.mxu0 0
      %942 = vmatmul.mubr.bf16.gmra.mrb[0].mxu0 %v665
      %v943 = vpop.f32.mrb[0].mxu0
      %v944 = vadd.f32 0.0, %v943
      %v945 = vpop.f32.mrb[0].mxu0
      %v946 = vpop.f32.mrb[0].mxu0
      %v947 = vadd.f32 0.0, %v946
      %v948 = vpop.f32.mrb[0].mxu0
      %949 = vmatprep.mubr.bf16.mxu0 0
      %950 = vmatmul.mubr.bf16.gmra.mrb[0].mxu0 %v668
      %v951 = vpop.f32.mrb[0].mxu0
      %v952 = vadd.f32 0.0, %v951
      %v953 = vpop.f32.mrb[0].mxu0
      %v954 = vpop.f32.mrb[0].mxu0
      %v955 = vadd.f32 0.0, %v954
      %v956 = vpop.f32.mrb[0].mxu0
      %957 = vmatprep.mubr.bf16.mxu0 0
      %958 = vmatmul.mubr.bf16.gmra.mrb[0].mxu0 %v671
      %v959 = vpop.f32.mrb[0].mxu0
      %v960 = vadd.f32 0.0, %v959
      %v961 = vpop.f32.mrb[0].mxu0
      %v962 = vpop.f32.mrb[0].mxu0
      %v963 = vadd.f32 0.0, %v962
      %v964 = vpop.f32.mrb[0].mxu0
      %965 = vdwg.mxu0
      %v966 = vadd.f32 %v287, %v712
      %v967 = vadd.f32 %v288, %v715
      %v968 = vadd.f32 %v289, %v720
      %v969 = vadd.f32 %v290, %v723
      %v970 = vadd.f32 %v291, %v728
      %v971 = vadd.f32 %v292, %v731
      %v972 = vadd.f32 %v293, %v736
      %v973 = vadd.f32 %v294, %v739
      %v974 = vadd.f32 %v295, %v744
      %v975 = vadd.f32 %v296, %v747
      %v976 = vadd.f32 %v297, %v752
      %v977 = vadd.f32 %v298, %v755
      %v978 = vadd.f32 %v299, %v760
      %v979 = vadd.f32 %v300, %v763
      %v980 = vadd.f32 %v301, %v768
      %v981 = vadd.f32 %v302, %v771
      %v982 = vadd.f32 %v303, %v776
      %v983 = vadd.f32 %v304, %v779
      %v984 = vadd.f32 %v305, %v784
      %v985 = vadd.f32 %v306, %v787
      %v986 = vadd.f32 %v307, %v792
      %v987 = vadd.f32 %v308, %v795
      %v988 = vadd.f32 %v309, %v800
      %v989 = vadd.f32 %v310, %v803
      %v990 = vadd.f32 %v311, %v808
      %v991 = vadd.f32 %v312, %v811
      %v992 = vadd.f32 %v313, %v816
      %v993 = vadd.f32 %v314, %v819
      %v994 = vadd.f32 %v315, %v824
      %v995 = vadd.f32 %v316, %v827
      %v996 = vadd.f32 %v317, %v832
      %v997 = vadd.f32 %v318, %v835
      %v998 = vadd.f32 %v319, %v840
      %v999 = vadd.f32 %v320, %v843
      %v1000 = vadd.f32 %v321, %v848
      %v1001 = vadd.f32 %v322, %v851
      %v1002 = vadd.f32 %v323, %v856
      %v1003 = vadd.f32 %v324, %v859
      %v1004 = vadd.f32 %v325, %v864
      %v1005 = vadd.f32 %v326, %v867
      %v1006 = vadd.f32 %v327, %v872
      %v1007 = vadd.f32 %v328, %v875
      %v1008 = vadd.f32 %v329, %v880
      %v1009 = vadd.f32 %v330, %v883
      %v1010 = vadd.f32 %v331, %v888
      %v1011 = vadd.f32 %v332, %v891
      %v1012 = vadd.f32 %v333, %v896
      %v1013 = vadd.f32 %v334, %v899
      %v1014 = vadd.f32 %v335, %v904
      %v1015 = vadd.f32 %v336, %v907
      %v1016 = vadd.f32 %v337, %v912
      %v1017 = vadd.f32 %v338, %v915
      %v1018 = vadd.f32 %v339, %v920
      %v1019 = vadd.f32 %v340, %v923
      %v1020 = vadd.f32 %v341, %v928
      %v1021 = vadd.f32 %v342, %v931
      %v1022 = vadd.f32 %v343, %v936
      %v1023 = vadd.f32 %v344, %v939
      %v1024 = vadd.f32 %v345, %v944
      %v1025 = vadd.f32 %v346, %v947
      %v1026 = vadd.f32 %v347, %v952
      %v1027 = vadd.f32 %v348, %v955
      %v1028 = vadd.f32 %v349, %v960
      %v1029 = vadd.f32 %v350, %v963
      %vm1030 = vcmask 130048
      %1031 = vst.msk [vmem:[#allocation2] sm:$0xff] %vm1030, %v966
      %1032 = vst.msk [vmem:[#allocation2 + $0x8] sm:$0xff] %vm1030, %v967
      %1033 = vst.msk [vmem:[#allocation2 + $0x10] sm:$0xff] %vm1030, %v968
      %1034 = vst.msk [vmem:[#allocation2 + $0x18] sm:$0xff] %vm1030, %v969
      %1035 = vst.msk [vmem:[#allocation2 + $0x20] sm:$0xff] %vm1030, %v970
      %1036 = vst.msk [vmem:[#allocation2 + $0x28] sm:$0xff] %vm1030, %v971
      %1037 = vst.msk [vmem:[#allocation2 + $0x30] sm:$0xff] %vm1030, %v972
      %1038 = vst.msk [vmem:[#allocation2 + $0x38] sm:$0xff] %vm1030, %v973
      %1039 = vst.msk [vmem:[#allocation2 + $0x40] sm:$0xff] %vm1030, %v974
      %1040 = vst.msk [vmem:[#allocation2 + $0x48] sm:$0xff] %vm1030, %v975
      %1041 = vst.msk [vmem:[#allocation2 + $0x50] sm:$0xff] %vm1030, %v976
      %1042 = vst.msk [vmem:[#allocation2 + $0x58] sm:$0xff] %vm1030, %v977
      %1043 = vst.msk [vmem:[#allocation2 + $0x60] sm:$0xff] %vm1030, %v978
      %1044 = vst.msk [vmem:[#allocation2 + $0x68] sm:$0xff] %vm1030, %v979
      %1045 = vst.msk [vmem:[#allocation2 + $0x70] sm:$0xff] %vm1030, %v980
      %1046 = vst.msk [vmem:[#allocation2 + $0x78] sm:$0xff] %vm1030, %v981
      %1047 = vst.msk [vmem:[#allocation2 + $0x80] sm:$0xff] %vm1030, %v982
      %1048 = vst.msk [vmem:[#allocation2 + $0x88] sm:$0xff] %vm1030, %v983
      %1049 = vst.msk [vmem:[#allocation2 + $0x90] sm:$0xff] %vm1030, %v984
      %1050 = vst.msk [vmem:[#allocation2 + $0x98] sm:$0xff] %vm1030, %v985
      %1051 = vst.msk [vmem:[#allocation2 + $0xa0] sm:$0xff] %vm1030, %v986
      %1052 = vst.msk [vmem:[#allocation2 + $0xa8] sm:$0xff] %vm1030, %v987
      %1053 = vst.msk [vmem:[#allocation2 + $0xb0] sm:$0xff] %vm1030, %v988
      %1054 = vst.msk [vmem:[#allocation2 + $0xb8] sm:$0xff] %vm1030, %v989
      %1055 = vst.msk [vmem:[#allocation2 + $0xc0] sm:$0xff] %vm1030, %v990
      %1056 = vst.msk [vmem:[#allocation2 + $0xc8] sm:$0xff] %vm1030, %v991
      %1057 = vst.msk [vmem:[#allocation2 + $0xd0] sm:$0xff] %vm1030, %v992
      %1058 = vst.msk [vmem:[#allocation2 + $0xd8] sm:$0xff] %vm1030, %v993
      %1059 = vst.msk [vmem:[#allocation2 + $0xe0] sm:$0xff] %vm1030, %v994
      %1060 = vst.msk [vmem:[#allocation2 + $0xe8] sm:$0xff] %vm1030, %v995
      %1061 = vst.msk [vmem:[#allocation2 + $0xf0] sm:$0xff] %vm1030, %v996
      %1062 = vst.msk [vmem:[#allocation2 + $0xf8] sm:$0xff] %vm1030, %v997
      %1063 = vst.msk [vmem:[#allocation2 + $0x100] sm:$0xff] %vm1030, %v998
      %1064 = vst.msk [vmem:[#allocation2 + $0x108] sm:$0xff] %vm1030, %v999
      %1065 = vst.msk [vmem:[#allocation2 + $0x110] sm:$0xff] %vm1030, %v1000
      %1066 = vst.msk [vmem:[#allocation2 + $0x118] sm:$0xff] %vm1030, %v1001
      %1067 = vst.msk [vmem:[#allocation2 + $0x120] sm:$0xff] %vm1030, %v1002
      %1068 = vst.msk [vmem:[#allocation2 + $0x128] sm:$0xff] %vm1030, %v1003
      %1069 = vst.msk [vmem:[#allocation2 + $0x130] sm:$0xff] %vm1030, %v1004
      %1070 = vst.msk [vmem:[#allocation2 + $0x138] sm:$0xff] %vm1030, %v1005
      %1071 = vst.msk [vmem:[#allocation2 + $0x140] sm:$0xff] %vm1030, %v1006
      %1072 = vst.msk [vmem:[#allocation2 + $0x148] sm:$0xff] %vm1030, %v1007
      %1073 = vst.msk [vmem:[#allocation2 + $0x150] sm:$0xff] %vm1030, %v1008
      %1074 = vst.msk [vmem:[#allocation2 + $0x158] sm:$0xff] %vm1030, %v1009
      %1075 = vst.msk [vmem:[#allocation2 + $0x160] sm:$0xff] %vm1030, %v1010
      %1076 = vst.msk [vmem:[#allocation2 + $0x168] sm:$0xff] %vm1030, %v1011
      %1077 = vst.msk [vmem:[#allocation2 + $0x170] sm:$0xff] %vm1030, %v1012
      %1078 = vst.msk [vmem:[#allocation2 + $0x178] sm:$0xff] %vm1030, %v1013
      %1079 = vst.msk [vmem:[#allocation2 + $0x180] sm:$0xff] %vm1030, %v1014
      %1080 = vst.msk [vmem:[#allocation2 + $0x188] sm:$0xff] %vm1030, %v1015
      %1081 = vst.msk [vmem:[#allocation2 + $0x190] sm:$0xff] %vm1030, %v1016
      %1082 = vst.msk [vmem:[#allocation2 + $0x198] sm:$0xff] %vm1030, %v1017
      %1083 = vst.msk [vmem:[#allocation2 + $0x1a0] sm:$0xff] %vm1030, %v1018
      %1084 = vst.msk [vmem:[#allocation2 + $0x1a8] sm:$0xff] %vm1030, %v1019
      %1085 = vst.msk [vmem:[#allocation2 + $0x1b0] sm:$0xff] %vm1030, %v1020
      %1086 = vst.msk [vmem:[#allocation2 + $0x1b8] sm:$0xff] %vm1030, %v1021
      %1087 = vst.msk [vmem:[#allocation2 + $0x1c0] sm:$0xff] %vm1030, %v1022
      %1088 = vst.msk [vmem:[#allocation2 + $0x1c8] sm:$0xff] %vm1030, %v1023
      %1089 = vst.msk [vmem:[#allocation2 + $0x1d0] sm:$0xff] %vm1030, %v1024
      %1090 = vst.msk [vmem:[#allocation2 + $0x1d8] sm:$0xff] %vm1030, %v1025
      %1091 = vst.msk [vmem:[#allocation2 + $0x1e0] sm:$0xff] %vm1030, %v1026
      %1092 = vst.msk [vmem:[#allocation2 + $0x1e8] sm:$0xff] %vm1030, %v1027
      %1093 = vst.msk [vmem:[#allocation2 + $0x1f0] sm:$0xff] %vm1030, %v1028
      %1094 = vst.msk [vmem:[#allocation2 + $0x1f8] sm:$0xff] %vm1030, %v1029
      %p1095 = scmp.eq.s32.totalorder %s19, 8
      // Predicated region
      $region37: #{fc_discriminator_forward.6} parent=31 // pred_check
        %p1096 = pneg %p1095
      $region38: #{fc_discriminator_forward.6} parent=31 // pred_check_branch
        %1098 = sbr.rel (%p1096) target = $region40
      $region39: #{fc_discriminator_forward.6} parent=31 // pred_region
        %v1099 = vld [vmem:[#allocation2] sm:$0xff]
        %v1100 = vld [vmem:[#allocation2 + $0x8] sm:$0xff]
        %v1101 = vld [vmem:[#allocation2 + $0x10] sm:$0xff]
        %v1102 = vld [vmem:[#allocation2 + $0x18] sm:$0xff]
        %v1103 = vld [vmem:[#allocation2 + $0x20] sm:$0xff]
        %v1104 = vld [vmem:[#allocation2 + $0x28] sm:$0xff]
        %v1105 = vld [vmem:[#allocation2 + $0x30] sm:$0xff]
        %v1106 = vld [vmem:[#allocation2 + $0x38] sm:$0xff]
        %v1107 = vld [vmem:[#allocation2 + $0x40] sm:$0xff]
        %v1108 = vld [vmem:[#allocation2 + $0x48] sm:$0xff]
        %v1109 = vld [vmem:[#allocation2 + $0x50] sm:$0xff]
        %v1110 = vld [vmem:[#allocation2 + $0x58] sm:$0xff]
        %v1111 = vld [vmem:[#allocation2 + $0x60] sm:$0xff]
        %v1112 = vld [vmem:[#allocation2 + $0x68] sm:$0xff]
        %v1113 = vld [vmem:[#allocation2 + $0x70] sm:$0xff]
        %v1114 = vld [vmem:[#allocation2 + $0x78] sm:$0xff]
        %v1115 = vld [vmem:[#allocation2 + $0x80] sm:$0xff]
        %v1116 = vld [vmem:[#allocation2 + $0x88] sm:$0xff]
        %v1117 = vld [vmem:[#allocation2 + $0x90] sm:$0xff]
        %v1118 = vld [vmem:[#allocation2 + $0x98] sm:$0xff]
        %v1119 = vld [vmem:[#allocation2 + $0xa0] sm:$0xff]
        %v1120 = vld [vmem:[#allocation2 + $0xa8] sm:$0xff]
        %v1121 = vld [vmem:[#allocation2 + $0xb0] sm:$0xff]
        %v1122 = vld [vmem:[#allocation2 + $0xb8] sm:$0xff]
        %v1123 = vld [vmem:[#allocation2 + $0xc0] sm:$0xff]
        %v1124 = vld [vmem:[#allocation2 + $0xc8] sm:$0xff]
        %v1125 = vld [vmem:[#allocation2 + $0xd0] sm:$0xff]
        %v1126 = vld [vmem:[#allocation2 + $0xd8] sm:$0xff]
        %v1127 = vld [vmem:[#allocation2 + $0xe0] sm:$0xff]
        %v1128 = vld [vmem:[#allocation2 + $0xe8] sm:$0xff]
        %v1129 = vld [vmem:[#allocation2 + $0xf0] sm:$0xff]
        %v1130 = vld [vmem:[#allocation2 + $0xf8] sm:$0xff]
        %v1131 = vld [vmem:[#allocation2 + $0x100] sm:$0xff]
        %v1132 = vld [vmem:[#allocation2 + $0x108] sm:$0xff]
        %v1133 = vld [vmem:[#allocation2 + $0x110] sm:$0xff]
        %v1134 = vld [vmem:[#allocation2 + $0x118] sm:$0xff]
        %v1135 = vld [vmem:[#allocation2 + $0x120] sm:$0xff]
        %v1136 = vld [vmem:[#allocation2 + $0x128] sm:$0xff]
        %v1137 = vld [vmem:[#allocation2 + $0x130] sm:$0xff]
        %v1138 = vld [vmem:[#allocation2 + $0x138] sm:$0xff]
        %v1139 = vld [vmem:[#allocation2 + $0x140] sm:$0xff]
        %v1140 = vld [vmem:[#allocation2 + $0x148] sm:$0xff]
        %v1141 = vld [vmem:[#allocation2 + $0x150] sm:$0xff]
        %v1142 = vld [vmem:[#allocation2 + $0x158] sm:$0xff]
        %v1143 = vld [vmem:[#allocation2 + $0x160] sm:$0xff]
        %v1144 = vld [vmem:[#allocation2 + $0x168] sm:$0xff]
        %v1145 = vld [vmem:[#allocation2 + $0x170] sm:$0xff]
        %v1146 = vld [vmem:[#allocation2 + $0x178] sm:$0xff]
        %v1147 = vld [vmem:[#allocation2 + $0x180] sm:$0xff]
        %v1148 = vld [vmem:[#allocation2 + $0x188] sm:$0xff]
        %v1149 = vld [vmem:[#allocation2 + $0x190] sm:$0xff]
        %v1150 = vld [vmem:[#allocation2 + $0x198] sm:$0xff]
        %v1151 = vld [vmem:[#allocation2 + $0x1a0] sm:$0xff]
        %v1152 = vld [vmem:[#allocation2 + $0x1a8] sm:$0xff]
        %v1153 = vld [vmem:[#allocation2 + $0x1b0] sm:$0xff]
        %v1154 = vld [vmem:[#allocation2 + $0x1b8] sm:$0xff]
        %v1155 = vld [vmem:[#allocation2 + $0x1c0] sm:$0xff]
        %v1156 = vld [vmem:[#allocation2 + $0x1c8] sm:$0xff]
        %v1157 = vld [vmem:[#allocation2 + $0x1d0] sm:$0xff]
        %v1158 = vld [vmem:[#allocation2 + $0x1d8] sm:$0xff]
        %v1159 = vld [vmem:[#allocation2 + $0x1e0] sm:$0xff]
        %v1160 = vld [vmem:[#allocation2 + $0x1e8] sm:$0xff]
        %v1161 = vld [vmem:[#allocation2 + $0x1f0] sm:$0xff]
        %v1162 = vld [vmem:[#allocation2 + $0x1f8] sm:$0xff]
        %v1163 = vld [vmem:[%s2] sm:$0x1]
        %v1165 = vlaneseq
        %v1166 = vshrl.u32 %v1165, 7
        %v1167 = vsub.s32 0, %v1166
        %v1168 = vrot.slane %v1163, %v1167
        %v1170 = vadd.f32 %v1099, %v1168
        %v1171 = vadd.f32 %v1100, %v1168
        %v1172 = vadd.f32 %v1101, %v1168
        %v1173 = vadd.f32 %v1102, %v1168
        %v1174 = vadd.f32 %v1103, %v1168
        %v1175 = vadd.f32 %v1104, %v1168
        %v1176 = vadd.f32 %v1105, %v1168
        %v1177 = vadd.f32 %v1106, %v1168
        %v1178 = vadd.f32 %v1107, %v1168
        %v1179 = vadd.f32 %v1108, %v1168
        %v1180 = vadd.f32 %v1109, %v1168
        %v1181 = vadd.f32 %v1110, %v1168
        %v1182 = vadd.f32 %v1111, %v1168
        %v1183 = vadd.f32 %v1112, %v1168
        %v1184 = vadd.f32 %v1113, %v1168
        %v1185 = vadd.f32 %v1114, %v1168
        %v1186 = vadd.f32 %v1115, %v1168
        %v1187 = vadd.f32 %v1116, %v1168
        %v1188 = vadd.f32 %v1117, %v1168
        %v1189 = vadd.f32 %v1118, %v1168
        %v1190 = vadd.f32 %v1119, %v1168
        %v1191 = vadd.f32 %v1120, %v1168
        %v1192 = vadd.f32 %v1121, %v1168
        %v1193 = vadd.f32 %v1122, %v1168
        %v1194 = vadd.f32 %v1123, %v1168
        %v1195 = vadd.f32 %v1124, %v1168
        %v1196 = vadd.f32 %v1125, %v1168
        %v1197 = vadd.f32 %v1126, %v1168
        %v1198 = vadd.f32 %v1127, %v1168
        %v1199 = vadd.f32 %v1128, %v1168
        %v1200 = vadd.f32 %v1129, %v1168
        %v1201 = vadd.f32 %v1130, %v1168
        %v1202 = vadd.f32 %v1131, %v1168
        %v1203 = vadd.f32 %v1132, %v1168
        %v1204 = vadd.f32 %v1133, %v1168
        %v1205 = vadd.f32 %v1134, %v1168
        %v1206 = vadd.f32 %v1135, %v1168
        %v1207 = vadd.f32 %v1136, %v1168
        %v1208 = vadd.f32 %v1137, %v1168
        %v1209 = vadd.f32 %v1138, %v1168
        %v1210 = vadd.f32 %v1139, %v1168
        %v1211 = vadd.f32 %v1140, %v1168
        %v1212 = vadd.f32 %v1141, %v1168
        %v1213 = vadd.f32 %v1142, %v1168
        %v1214 = vadd.f32 %v1143, %v1168
        %v1215 = vadd.f32 %v1144, %v1168
        %v1216 = vadd.f32 %v1145, %v1168
        %v1217 = vadd.f32 %v1146, %v1168
        %v1218 = vadd.f32 %v1147, %v1168
        %v1219 = vadd.f32 %v1148, %v1168
        %v1220 = vadd.f32 %v1149, %v1168
        %v1221 = vadd.f32 %v1150, %v1168
        %v1222 = vadd.f32 %v1151, %v1168
        %v1223 = vadd.f32 %v1152, %v1168
        %v1224 = vadd.f32 %v1153, %v1168
        %v1225 = vadd.f32 %v1154, %v1168
        %v1226 = vadd.f32 %v1155, %v1168
        %v1227 = vadd.f32 %v1156, %v1168
        %v1228 = vadd.f32 %v1157, %v1168
        %v1229 = vadd.f32 %v1158, %v1168
        %v1230 = vadd.f32 %v1159, %v1168
        %v1231 = vadd.f32 %v1160, %v1168
        %v1232 = vadd.f32 %v1161, %v1168
        %v1233 = vadd.f32 %v1162, %v1168
        %vm1234 = vcmp.ge.f32.partialorder %v1170, 0.0
        %vm1235 = vcmp.ge.f32.partialorder %v1171, 0.0
        %vm1236 = vcmp.ge.f32.partialorder %v1172, 0.0
        %vm1237 = vcmp.ge.f32.partialorder %v1173, 0.0
        %vm1238 = vcmp.ge.f32.partialorder %v1174, 0.0
        %vm1239 = vcmp.ge.f32.partialorder %v1175, 0.0
        %vm1240 = vcmp.ge.f32.partialorder %v1176, 0.0
        %vm1241 = vcmp.ge.f32.partialorder %v1177, 0.0
        %vm1242 = vcmp.ge.f32.partialorder %v1178, 0.0
        %vm1243 = vcmp.ge.f32.partialorder %v1179, 0.0
        %vm1244 = vcmp.ge.f32.partialorder %v1180, 0.0
        %vm1245 = vcmp.ge.f32.partialorder %v1181, 0.0
        %vm1246 = vcmp.ge.f32.partialorder %v1182, 0.0
        %vm1247 = vcmp.ge.f32.partialorder %v1183, 0.0
        %vm1248 = vcmp.ge.f32.partialorder %v1184, 0.0
        %vm1249 = vcmp.ge.f32.partialorder %v1185, 0.0
        %vm1250 = vcmp.ge.f32.partialorder %v1186, 0.0
        %vm1251 = vcmp.ge.f32.partialorder %v1187, 0.0
        %vm1252 = vcmp.ge.f32.partialorder %v1188, 0.0
        %vm1253 = vcmp.ge.f32.partialorder %v1189, 0.0
        %vm1254 = vcmp.ge.f32.partialorder %v1190, 0.0
        %vm1255 = vcmp.ge.f32.partialorder %v1191, 0.0
        %vm1256 = vcmp.ge.f32.partialorder %v1192, 0.0
        %vm1257 = vcmp.ge.f32.partialorder %v1193, 0.0
        %vm1258 = vcmp.ge.f32.partialorder %v1194, 0.0
        %vm1259 = vcmp.ge.f32.partialorder %v1195, 0.0
        %vm1260 = vcmp.ge.f32.partialorder %v1196, 0.0
        %vm1261 = vcmp.ge.f32.partialorder %v1197, 0.0
        %vm1262 = vcmp.ge.f32.partialorder %v1198, 0.0
        %vm1263 = vcmp.ge.f32.partialorder %v1199, 0.0
        %vm1264 = vcmp.ge.f32.partialorder %v1200, 0.0
        %vm1265 = vcmp.ge.f32.partialorder %v1201, 0.0
        %vm1266 = vcmp.ge.f32.partialorder %v1202, 0.0
        %vm1267 = vcmp.ge.f32.partialorder %v1203, 0.0
        %vm1268 = vcmp.ge.f32.partialorder %v1204, 0.0
        %vm1269 = vcmp.ge.f32.partialorder %v1205, 0.0
        %vm1270 = vcmp.ge.f32.partialorder %v1206, 0.0
        %vm1271 = vcmp.ge.f32.partialorder %v1207, 0.0
        %vm1272 = vcmp.ge.f32.partialorder %v1208, 0.0
        %vm1273 = vcmp.ge.f32.partialorder %v1209, 0.0
        %vm1274 = vcmp.ge.f32.partialorder %v1210, 0.0
        %vm1275 = vcmp.ge.f32.partialorder %v1211, 0.0
        %vm1276 = vcmp.ge.f32.partialorder %v1212, 0.0
        %vm1277 = vcmp.ge.f32.partialorder %v1213, 0.0
        %vm1278 = vcmp.ge.f32.partialorder %v1214, 0.0
        %vm1279 = vcmp.ge.f32.partialorder %v1215, 0.0
        %vm1280 = vcmp.ge.f32.partialorder %v1216, 0.0
        %vm1281 = vcmp.ge.f32.partialorder %v1217, 0.0
        %vm1282 = vcmp.ge.f32.partialorder %v1218, 0.0
        %vm1283 = vcmp.ge.f32.partialorder %v1219, 0.0
        %vm1284 = vcmp.ge.f32.partialorder %v1220, 0.0
        %vm1285 = vcmp.ge.f32.partialorder %v1221, 0.0
        %vm1286 = vcmp.ge.f32.partialorder %v1222, 0.0
        %vm1287 = vcmp.ge.f32.partialorder %v1223, 0.0
        %vm1288 = vcmp.ge.f32.partialorder %v1224, 0.0
        %vm1289 = vcmp.ge.f32.partialorder %v1225, 0.0
        %vm1290 = vcmp.ge.f32.partialorder %v1226, 0.0
        %vm1291 = vcmp.ge.f32.partialorder %v1227, 0.0
        %vm1292 = vcmp.ge.f32.partialorder %v1228, 0.0
        %vm1293 = vcmp.ge.f32.partialorder %v1229, 0.0
        %vm1294 = vcmp.ge.f32.partialorder %v1230, 0.0
        %vm1295 = vcmp.ge.f32.partialorder %v1231, 0.0
        %vm1296 = vcmp.ge.f32.partialorder %v1232, 0.0
        %vm1297 = vcmp.ge.f32.partialorder %v1233, 0.0
        %v1298 = vmul.f32 %v1170, 0.2
        %v1299 = vmul.f32 %v1171, 0.2
        %v1300 = vmul.f32 %v1172, 0.2
        %v1301 = vmul.f32 %v1173, 0.2
        %v1302 = vmul.f32 %v1174, 0.2
        %v1303 = vmul.f32 %v1175, 0.2
        %v1304 = vmul.f32 %v1176, 0.2
        %v1305 = vmul.f32 %v1177, 0.2
        %v1306 = vmul.f32 %v1178, 0.2
        %v1307 = vmul.f32 %v1179, 0.2
        %v1308 = vmul.f32 %v1180, 0.2
        %v1309 = vmul.f32 %v1181, 0.2
        %v1310 = vmul.f32 %v1182, 0.2
        %v1311 = vmul.f32 %v1183, 0.2
        %v1312 = vmul.f32 %v1184, 0.2
        %v1313 = vmul.f32 %v1185, 0.2
        %v1314 = vmul.f32 %v1186, 0.2
        %v1315 = vmul.f32 %v1187, 0.2
        %v1316 = vmul.f32 %v1188, 0.2
        %v1317 = vmul.f32 %v1189, 0.2
        %v1318 = vmul.f32 %v1190, 0.2
        %v1319 = vmul.f32 %v1191, 0.2
        %v1320 = vmul.f32 %v1192, 0.2
        %v1321 = vmul.f32 %v1193, 0.2
        %v1322 = vmul.f32 %v1194, 0.2
        %v1323 = vmul.f32 %v1195, 0.2
        %v1324 = vmul.f32 %v1196, 0.2
        %v1325 = vmul.f32 %v1197, 0.2
        %v1326 = vmul.f32 %v1198, 0.2
        %v1327 = vmul.f32 %v1199, 0.2
        %v1328 = vmul.f32 %v1200, 0.2
        %v1329 = vmul.f32 %v1201, 0.2
        %v1330 = vmul.f32 %v1202, 0.2
        %v1331 = vmul.f32 %v1203, 0.2
        %v1332 = vmul.f32 %v1204, 0.2
        %v1333 = vmul.f32 %v1205, 0.2
        %v1334 = vmul.f32 %v1206, 0.2
        %v1335 = vmul.f32 %v1207, 0.2
        %v1336 = vmul.f32 %v1208, 0.2
        %v1337 = vmul.f32 %v1209, 0.2
        %v1338 = vmul.f32 %v1210, 0.2
        %v1339 = vmul.f32 %v1211, 0.2
        %v1340 = vmul.f32 %v1212, 0.2
        %v1341 = vmul.f32 %v1213, 0.2
        %v1342 = vmul.f32 %v1214, 0.2
        %v1343 = vmul.f32 %v1215, 0.2
        %v1344 = vmul.f32 %v1216, 0.2
        %v1345 = vmul.f32 %v1217, 0.2
        %v1346 = vmul.f32 %v1218, 0.2
        %v1347 = vmul.f32 %v1219, 0.2
        %v1348 = vmul.f32 %v1220, 0.2
        %v1349 = vmul.f32 %v1221, 0.2
        %v1350 = vmul.f32 %v1222, 0.2
        %v1351 = vmul.f32 %v1223, 0.2
        %v1352 = vmul.f32 %v1224, 0.2
        %v1353 = vmul.f32 %v1225, 0.2
        %v1354 = vmul.f32 %v1226, 0.2
        %v1355 = vmul.f32 %v1227, 0.2
        %v1356 = vmul.f32 %v1228, 0.2
        %v1357 = vmul.f32 %v1229, 0.2
        %v1358 = vmul.f32 %v1230, 0.2
        %v1359 = vmul.f32 %v1231, 0.2
        %v1360 = vmul.f32 %v1232, 0.2
        %v1361 = vmul.f32 %v1233, 0.2
        %v1362 = vsel %vm1234, %v1170, %v1298
        %v1363 = vsel %vm1235, %v1171, %v1299
        %v1364 = vsel %vm1236, %v1172, %v1300
        %v1365 = vsel %vm1237, %v1173, %v1301
        %v1366 = vsel %vm1238, %v1174, %v1302
        %v1367 = vsel %vm1239, %v1175, %v1303
        %v1368 = vsel %vm1240, %v1176, %v1304
        %v1369 = vsel %vm1241, %v1177, %v1305
        %v1370 = vsel %vm1242, %v1178, %v1306
        %v1371 = vsel %vm1243, %v1179, %v1307
        %v1372 = vsel %vm1244, %v1180, %v1308
        %v1373 = vsel %vm1245, %v1181, %v1309
        %v1374 = vsel %vm1246, %v1182, %v1310
        %v1375 = vsel %vm1247, %v1183, %v1311
        %v1376 = vsel %vm1248, %v1184, %v1312
        %v1377 = vsel %vm1249, %v1185, %v1313
        %v1378 = vsel %vm1250, %v1186, %v1314
        %v1379 = vsel %vm1251, %v1187, %v1315
        %v1380 = vsel %vm1252, %v1188, %v1316
        %v1381 = vsel %vm1253, %v1189, %v1317
        %v1382 = vsel %vm1254, %v1190, %v1318
        %v1383 = vsel %vm1255, %v1191, %v1319
        %v1384 = vsel %vm1256, %v1192, %v1320
        %v1385 = vsel %vm1257, %v1193, %v1321
        %v1386 = vsel %vm1258, %v1194, %v1322
        %v1387 = vsel %vm1259, %v1195, %v1323
        %v1388 = vsel %vm1260, %v1196, %v1324
        %v1389 = vsel %vm1261, %v1197, %v1325
        %v1390 = vsel %vm1262, %v1198, %v1326
        %v1391 = vsel %vm1263, %v1199, %v1327
        %v1392 = vsel %vm1264, %v1200, %v1328
        %v1393 = vsel %vm1265, %v1201, %v1329
        %v1394 = vsel %vm1266, %v1202, %v1330
        %v1395 = vsel %vm1267, %v1203, %v1331
        %v1396 = vsel %vm1268, %v1204, %v1332
        %v1397 = vsel %vm1269, %v1205, %v1333
        %v1398 = vsel %vm1270, %v1206, %v1334
        %v1399 = vsel %vm1271, %v1207, %v1335
        %v1400 = vsel %vm1272, %v1208, %v1336
        %v1401 = vsel %vm1273, %v1209, %v1337
        %v1402 = vsel %vm1274, %v1210, %v1338
        %v1403 = vsel %vm1275, %v1211, %v1339
        %v1404 = vsel %vm1276, %v1212, %v1340
        %v1405 = vsel %vm1277, %v1213, %v1341
        %v1406 = vsel %vm1278, %v1214, %v1342
        %v1407 = vsel %vm1279, %v1215, %v1343
        %v1408 = vsel %vm1280, %v1216, %v1344
        %v1409 = vsel %vm1281, %v1217, %v1345
        %v1410 = vsel %vm1282, %v1218, %v1346
        %v1411 = vsel %vm1283, %v1219, %v1347
        %v1412 = vsel %vm1284, %v1220, %v1348
        %v1413 = vsel %vm1285, %v1221, %v1349
        %v1414 = vsel %vm1286, %v1222, %v1350
        %v1415 = vsel %vm1287, %v1223, %v1351
        %v1416 = vsel %vm1288, %v1224, %v1352
        %v1417 = vsel %vm1289, %v1225, %v1353
        %v1418 = vsel %vm1290, %v1226, %v1354
        %v1419 = vsel %vm1291, %v1227, %v1355
        %v1420 = vsel %vm1292, %v1228, %v1356
        %v1421 = vsel %vm1293, %v1229, %v1357
        %v1422 = vsel %vm1294, %v1230, %v1358
        %v1423 = vsel %vm1295, %v1231, %v1359
        %v1424 = vsel %vm1296, %v1232, %v1360
        %v1425 = vsel %vm1297, %v1233, %v1361
        %1426 = vst.msk [vmem:[%s215] sm:$0xff] %vm1030, %v1362
        %1427 = vst.msk [vmem:[%s215 + $0x8] sm:$0xff] %vm1030, %v1363
        %1428 = vst.msk [vmem:[%s215 + $0x10] sm:$0xff] %vm1030, %v1364
        %1429 = vst.msk [vmem:[%s215 + $0x18] sm:$0xff] %vm1030, %v1365
        %1430 = vst.msk [vmem:[%s215 + $0x20] sm:$0xff] %vm1030, %v1366
        %1431 = vst.msk [vmem:[%s215 + $0x28] sm:$0xff] %vm1030, %v1367
        %1432 = vst.msk [vmem:[%s215 + $0x30] sm:$0xff] %vm1030, %v1368
        %1433 = vst.msk [vmem:[%s215 + $0x38] sm:$0xff] %vm1030, %v1369
        %1434 = vst.msk [vmem:[%s215 + $0x40] sm:$0xff] %vm1030, %v1370
        %1435 = vst.msk [vmem:[%s215 + $0x48] sm:$0xff] %vm1030, %v1371
        %1436 = vst.msk [vmem:[%s215 + $0x50] sm:$0xff] %vm1030, %v1372
        %1437 = vst.msk [vmem:[%s215 + $0x58] sm:$0xff] %vm1030, %v1373
        %1438 = vst.msk [vmem:[%s215 + $0x60] sm:$0xff] %vm1030, %v1374
        %1439 = vst.msk [vmem:[%s215 + $0x68] sm:$0xff] %vm1030, %v1375
        %1440 = vst.msk [vmem:[%s215 + $0x70] sm:$0xff] %vm1030, %v1376
        %1441 = vst.msk [vmem:[%s215 + $0x78] sm:$0xff] %vm1030, %v1377
        %1442 = vst.msk [vmem:[%s215 + $0x80] sm:$0xff] %vm1030, %v1378
        %1443 = vst.msk [vmem:[%s215 + $0x88] sm:$0xff] %vm1030, %v1379
        %1444 = vst.msk [vmem:[%s215 + $0x90] sm:$0xff] %vm1030, %v1380
        %1445 = vst.msk [vmem:[%s215 + $0x98] sm:$0xff] %vm1030, %v1381
        %1446 = vst.msk [vmem:[%s215 + $0xa0] sm:$0xff] %vm1030, %v1382
        %1447 = vst.msk [vmem:[%s215 + $0xa8] sm:$0xff] %vm1030, %v1383
        %1448 = vst.msk [vmem:[%s215 + $0xb0] sm:$0xff] %vm1030, %v1384
        %1449 = vst.msk [vmem:[%s215 + $0xb8] sm:$0xff] %vm1030, %v1385
        %1450 = vst.msk [vmem:[%s215 + $0xc0] sm:$0xff] %vm1030, %v1386
        %1451 = vst.msk [vmem:[%s215 + $0xc8] sm:$0xff] %vm1030, %v1387
        %1452 = vst.msk [vmem:[%s215 + $0xd0] sm:$0xff] %vm1030, %v1388
        %1453 = vst.msk [vmem:[%s215 + $0xd8] sm:$0xff] %vm1030, %v1389
        %1454 = vst.msk [vmem:[%s215 + $0xe0] sm:$0xff] %vm1030, %v1390
        %1455 = vst.msk [vmem:[%s215 + $0xe8] sm:$0xff] %vm1030, %v1391
        %1456 = vst.msk [vmem:[%s215 + $0xf0] sm:$0xff] %vm1030, %v1392
        %1457 = vst.msk [vmem:[%s215 + $0xf8] sm:$0xff] %vm1030, %v1393
        %1458 = vst.msk [vmem:[%s215 + $0x100] sm:$0xff] %vm1030, %v1394
        %1459 = vst.msk [vmem:[%s215 + $0x108] sm:$0xff] %vm1030, %v1395
        %1460 = vst.msk [vmem:[%s215 + $0x110] sm:$0xff] %vm1030, %v1396
        %1461 = vst.msk [vmem:[%s215 + $0x118] sm:$0xff] %vm1030, %v1397
        %1462 = vst.msk [vmem:[%s215 + $0x120] sm:$0xff] %vm1030, %v1398
        %1463 = vst.msk [vmem:[%s215 + $0x128] sm:$0xff] %vm1030, %v1399
        %1464 = vst.msk [vmem:[%s215 + $0x130] sm:$0xff] %vm1030, %v1400
        %1465 = vst.msk [vmem:[%s215 + $0x138] sm:$0xff] %vm1030, %v1401
        %1466 = vst.msk [vmem:[%s215 + $0x140] sm:$0xff] %vm1030, %v1402
        %1467 = vst.msk [vmem:[%s215 + $0x148] sm:$0xff] %vm1030, %v1403
        %1468 = vst.msk [vmem:[%s215 + $0x150] sm:$0xff] %vm1030, %v1404
        %1469 = vst.msk [vmem:[%s215 + $0x158] sm:$0xff] %vm1030, %v1405
        %1470 = vst.msk [vmem:[%s215 + $0x160] sm:$0xff] %vm1030, %v1406
        %1471 = vst.msk [vmem:[%s215 + $0x168] sm:$0xff] %vm1030, %v1407
        %1472 = vst.msk [vmem:[%s215 + $0x170] sm:$0xff] %vm1030, %v1408
        %1473 = vst.msk [vmem:[%s215 + $0x178] sm:$0xff] %vm1030, %v1409
        %1474 = vst.msk [vmem:[%s215 + $0x180] sm:$0xff] %vm1030, %v1410
        %1475 = vst.msk [vmem:[%s215 + $0x188] sm:$0xff] %vm1030, %v1411
        %1476 = vst.msk [vmem:[%s215 + $0x190] sm:$0xff] %vm1030, %v1412
        %1477 = vst.msk [vmem:[%s215 + $0x198] sm:$0xff] %vm1030, %v1413
        %1478 = vst.msk [vmem:[%s215 + $0x1a0] sm:$0xff] %vm1030, %v1414
        %1479 = vst.msk [vmem:[%s215 + $0x1a8] sm:$0xff] %vm1030, %v1415
        %1480 = vst.msk [vmem:[%s215 + $0x1b0] sm:$0xff] %vm1030, %v1416
        %1481 = vst.msk [vmem:[%s215 + $0x1b8] sm:$0xff] %vm1030, %v1417
        %1482 = vst.msk [vmem:[%s215 + $0x1c0] sm:$0xff] %vm1030, %v1418
        %1483 = vst.msk [vmem:[%s215 + $0x1c8] sm:$0xff] %vm1030, %v1419
        %1484 = vst.msk [vmem:[%s215 + $0x1d0] sm:$0xff] %vm1030, %v1420
        %1485 = vst.msk [vmem:[%s215 + $0x1d8] sm:$0xff] %vm1030, %v1421
        %1486 = vst.msk [vmem:[%s215 + $0x1e0] sm:$0xff] %vm1030, %v1422
        %1487 = vst.msk [vmem:[%s215 + $0x1e8] sm:$0xff] %vm1030, %v1423
        %1488 = vst.msk [vmem:[%s215 + $0x1f0] sm:$0xff] %vm1030, %v1424
        %1489 = vst.msk [vmem:[%s215 + $0x1f8] sm:$0xff] %vm1030, %v1425
      $region40: #{fc_discriminator_forward.6} parent=31 // pred_fallthru
        _
      %s1490 = smul.u32 64, %s18
      %p1491 = scmp.lt.s32.totalorder %s1490, 255
      %s1492 = scalar_select %p1491, %s1490, 255
      %s1493 = smul.addr %s1492, 8
      %s1494 = scalar_lea.vmem %s3, %s1493
      // Predicated region
      $region41: #{fc_discriminator_forward.6} parent=31 // pred_check
        %p1495 = pneg %p119
      $region42: #{fc_discriminator_forward.6} parent=31 // pred_check_branch
        %1497 = sbr.rel (%p1495) target = $region44
      $region43: #{fc_discriminator_forward.6} parent=31 // pred_region
        %s1498 = smul.u32 64, %s18
      $region44: #{fc_discriminator_forward.6} parent=31 // pred_fallthru
        _
    $region32: #{fc_discriminator_forward.6} parent=5 // pred_fallthru
      _
    %p1499 = scmp.le.s32.totalorder 2, %s9
    // Predicated region
    $region45: #{fc_discriminator_forward.6} parent=5 // pred_check
      %p1500 = pneg %p1499
    $region46: #{fc_discriminator_forward.6} parent=5 // pred_check_branch
      %1502 = sbr.rel (%p1500) target = $region48
    $region47: #{fc_discriminator_forward.6} parent=5 // pred_region
      %s1503 = ssub.s32 %s9, 2
      // Predicated region
      $region49: #{fc_discriminator_forward.6} parent=47 // pred_check
        %p1504 = pneg %p125
      $region50: #{fc_discriminator_forward.6} parent=47 // pred_check_branch
        %1506 = sbr.rel (%p1504) target = $region52
      $region51: #{fc_discriminator_forward.6} parent=47 // pred_region
        %s1507 = smul.u32 64, %s20
        %p1508 = scmp.lt.s32.totalorder %s1507, 255
        %s1509 = scalar_select %p1508, %s1507, 255
        %s1510 = smul.addr %s1509, 8
        %s1511 = scalar_lea.vmem %s3, %s1510
      $region52: #{fc_discriminator_forward.6} parent=47 // pred_fallthru
        _
    $region48: #{fc_discriminator_forward.6} parent=5 // pred_fallthru
      _
  $region6: #{fc_discriminator_forward.6} parent=0 // loop_footer
    %s13 = sadd.s32 1, %s9
  $region7: #{fc_discriminator_forward.6} parent=0 // loop_footer_branch
    %8 = sbr.rel target = $region3
  $region8: #{fc_discriminator_forward.6} parent=0 // loop_exit
    _

// kernel: fc_discriminator_forward.7
$region0: #{fc_discriminator_forward.7}
  #allocation0 [shape = 'u32[]', space=smem, size = 0x4, offset = 0x4, fixed_abs, tag = 'smem constant byte address 0x4 - core index']
  #allocation1 [shape = 'u32[144,128]{1,0:T(1,128)}', space=vmem, size = 0x12000, scoped, tag = 'internal scratch']
  #allocation2 [shape = 'f32[392,32]{1,0:T(8,128)}', space=vmem, size = 0x31000, scoped, tag = 'scratch operand']
  %s0 = inlined_call_operand.vmem [shape: bf16[9,392,16], index: 0, kind: input, shape index: {}]
  %s1 = inlined_call_operand.vmem [shape: bf16[9,16,32], index: 1, kind: input, shape index: {}]
  %s2 = inlined_call_operand.vmem [shape: f32[1,32], index: 2, kind: input, shape index: {}]
  %s3 = inlined_call_operand.vmem [shape: f32[392,32], index: 3, kind: output, shape index: {}]
  %s4 = sld [smem:[#allocation0]]
  $region53: #{fc_discriminator_forward.7} parent=0
    _
  %s6 = ssub.s32 1, %s4
  %s7 = scalar_select 0, %s6, %s4
  loop: start=0, step=1, limit=11
  $region2: #{fc_discriminator_forward.7} parent=0 // loop_pre_header
    _
  $region3: #{fc_discriminator_forward.7} parent=0 // loop_header
    %s9 = sphi 0, %s13
    %p10 = scmp.ge.s32.totalorder %s9, 11
    %s16 = sphi 0, %s28
    %s17 = sphi 0, %s24
    %s18 = sphi 0, %s16
    %s19 = sphi 0, %s17
    %s20 = sphi 0, %s18
    %s21 = sphi 0, %s19
    %s33 = sphi 0, %s35
    %s36 = sphi 0, %s33
    %s37 = sphi 0, %s36
    %s53 = sphi 0, %s37
    %s59 = sphi 0, %s61
    %s62 = sphi 0, %s59
    %s63 = sphi 0, %s62
    %s79 = sphi 0, %s63
    %s83 = sphi 0, %s83
    %s85 = sphi 0, %s83
    %s86 = sphi 0, %s85
    %s100 = sphi 0, %s86
    %s106 = sphi 0, %s108
    %s109 = sphi 0, %s106
    %s110 = sphi 0, %s109
    %s126 = sphi 0, %s110
  $region4: #{fc_discriminator_forward.7} parent=0 // loop_header_branch
    %12 = sbr.rel (%p10) target = $region8
  $region5: #{fc_discriminator_forward.7} parent=0 // loop_body
    %s14 = ssub.s32 %s9, 1
    %s15 = ssub.s32 %s9, 2
    %s22 = sadd.s32 1, %s17
    %p23 = scmp.ge.s32.totalorder %s22, 9
    %s24 = scalar_select %p23, 0, %s22
    %s25 = sadd.s32 1, %s16
    %s26 = scalar_select %p23, %s25, %s16
    %p27 = scmp.ge.s32.totalorder %s26, 1
    %s28 = scalar_select %p27, 0, %s26
    %s29 = ssub.s32 %s17, %s24
    %s30 = ssub.s32 %s16, %s28
    %s31 = sor.u32 %s29, %s30
    %p32 = scmp.eq.s32.totalorder %s31, 0
    %s34 = sadd.s32 %s33, 1
    %s35 = scalar_select %p32, %s33, %s34
    %p38 = pneg %p32
    %p39 = scmp.eq.s32.totalorder %s9, 8
    %p40 = por %p38, %p39
    %p41 = scmp.ne.s32.totalorder %s33, %s36
    %p42 = scmp.eq.s32.totalorder %s9, 0
    %p43 = por %p41, %p42
    %p44 = scmp.ne.s32.totalorder %s33, %s36
    %p45 = scmp.eq.s32.totalorder %s14, 8
    %p46 = por %p44, %p45
    %p47 = scmp.ne.s32.totalorder %s36, %s37
    %p48 = scmp.eq.s32.totalorder %s14, 0
    %p49 = por %p47, %p48
    %p50 = scmp.ne.s32.totalorder %s36, %s37
    %p51 = scmp.eq.s32.totalorder %s15, 8
    %p52 = por %p50, %p51
    %p54 = scmp.ne.s32.totalorder %s37, %s53
    %p55 = scmp.eq.s32.totalorder %s15, 0
    %p56 = por %p54, %p55
    %s57 = ssub.s32 %s17, %s24
    %p58 = scmp.eq.s32.totalorder %s57, 0
    %s60 = sadd.s32 %s59, 1
    %s61 = scalar_select %p58, %s59, %s60
    %p64 = pneg %p58
    %p65 = scmp.eq.s32.totalorder %s9, 8
    %p66 = por %p64, %p65
    %p67 = scmp.ne.s32.totalorder %s59, %s62
    %p68 = scmp.eq.s32.totalorder %s9, 0
    %p69 = por %p67, %p68
    %p70 = scmp.ne.s32.totalorder %s59, %s62
    %p71 = scmp.eq.s32.totalorder %s14, 8
    %p72 = por %p70, %p71
    %p73 = scmp.ne.s32.totalorder %s62, %s63
    %p74 = scmp.eq.s32.totalorder %s14, 0
    %p75 = por %p73, %p74
    %p76 = scmp.ne.s32.totalorder %s62, %s63
    %p77 = scmp.eq.s32.totalorder %s15, 8
    %p78 = por %p76, %p77
    %p80 = scmp.ne.s32.totalorder %s63, %s79
    %p81 = scmp.eq.s32.totalorder %s15, 0
    %p82 = por %p80, %p81
    %s84 = sadd.s32 %s83, 1
    %p87 = scmp.eq.s32.totalorder %s9, 8
    %p88 = scmp.ne.s32.totalorder %s83, %s85
    %p89 = scmp.eq.s32.totalorder %s9, 0
    %p90 = por %p88, %p89
    %p91 = scmp.ne.s32.totalorder %s83, %s85
    %p92 = scmp.eq.s32.totalorder %s14, 8
    %p93 = por %p91, %p92
    %p94 = scmp.ne.s32.totalorder %s85, %s86
    %p95 = scmp.eq.s32.totalorder %s14, 0
    %p96 = por %p94, %p95
    %p97 = scmp.ne.s32.totalorder %s85, %s86
    %p98 = scmp.eq.s32.totalorder %s15, 8
    %p99 = por %p97, %p98
    %p101 = scmp.ne.s32.totalorder %s86, %s100
    %p102 = scmp.eq.s32.totalorder %s15, 0
    %p103 = por %p101, %p102
    %s104 = ssub.s32 %s16, %s28
    %p105 = scmp.eq.s32.totalorder %s104, 0
    %s107 = sadd.s32 %s106, 1
    %s108 = scalar_select %p105, %s106, %s107
    %p111 = pneg %p105
    %p112 = scmp.eq.s32.totalorder %s9, 8
    %p113 = por %p111, %p112
    %p114 = scmp.ne.s32.totalorder %s106, %s109
    %p115 = scmp.eq.s32.totalorder %s9, 0
    %p116 = por %p114, %p115
    %p117 = scmp.ne.s32.totalorder %s106, %s109
    %p118 = scmp.eq.s32.totalorder %s14, 8
    %p119 = por %p117, %p118
    %p120 = scmp.ne.s32.totalorder %s109, %s110
    %p121 = scmp.eq.s32.totalorder %s14, 0
    %p122 = por %p120, %p121
    %p123 = scmp.ne.s32.totalorder %s109, %s110
    %p124 = scmp.eq.s32.totalorder %s15, 8
    %p125 = por %p123, %p124
    %p127 = scmp.ne.s32.totalorder %s110, %s126
    %p128 = scmp.eq.s32.totalorder %s15, 0
    %p129 = por %p127, %p128
    %p130 = scmp.le.s32.totalorder 1, %s9
    %p131 = scmp.lt.s32.totalorder %s9, 10
    %p132 = pnand %p130, %p131
    %p133 = pneg %p132
    // Predicated region
    $region9: #{fc_discriminator_forward.7} parent=5 // pred_check
      _
    $region10: #{fc_discriminator_forward.7} parent=5 // pred_check_branch
      %135 = sbr.rel (%p132) target = $region12
    $region11: #{fc_discriminator_forward.7} parent=5 // pred_region
      %s136 = ssub.s32 %s9, 1
      // Predicated region
      $region13: #{fc_discriminator_forward.7} parent=11 // pred_check
        %p137 = pneg %p96
      $region14: #{fc_discriminator_forward.7} parent=11 // pred_check_branch
        %139 = sbr.rel (%p137) target = $region16
      $region15: #{fc_discriminator_forward.7} parent=11 // pred_region
        _
      $region16: #{fc_discriminator_forward.7} parent=11 // pred_fallthru
        _
    $region12: #{fc_discriminator_forward.7} parent=5 // pred_fallthru
      _
    %p140 = scmp.lt.s32.totalorder %s9, 9
    // Predicated region
    $region17: #{fc_discriminator_forward.7} parent=5 // pred_check
      %p141 = pneg %p140
    $region18: #{fc_discriminator_forward.7} parent=5 // pred_check_branch
      %143 = sbr.rel (%p141) target = $region20
    $region19: #{fc_discriminator_forward.7} parent=5 // pred_region
      // Predicated region
      $region21: #{fc_discriminator_forward.7} parent=19 // pred_check
        %p144 = pneg %p43
      $region22: #{fc_discriminator_forward.7} parent=19 // pred_check_branch
        %146 = sbr.rel (%p144) target = $region24
      $region23: #{fc_discriminator_forward.7} parent=19 // pred_region
        %s147 = smul.u32 49, %s16
        %p148 = scmp.lt.s32.totalorder %s17, 8
        %s149 = scalar_select %p148, %s17, 8
        %p150 = scmp.lt.s32.totalorder %s147, 48
        %s151 = scalar_select %p150, %s147, 48
        %s152 = smul.addr %s149, 49
        %s153 = sadd.s32 %s151, %s152
        %s154 = smul.addr %s153, 4
        %s155 = scalar_lea.vmem %s0, %s154
        %s156 = smul.u32 49, %s16
      $region24: #{fc_discriminator_forward.7} parent=19 // pred_fallthru
        _
      // Predicated region
      $region25: #{fc_discriminator_forward.7} parent=19 // pred_check
        %p157 = pneg %p69
      $region26: #{fc_discriminator_forward.7} parent=19 // pred_check_branch
        %159 = sbr.rel (%p157) target = $region28
      $region27: #{fc_discriminator_forward.7} parent=19 // pred_region
        %p160 = scmp.lt.s32.totalorder %s17, 8
        %s161 = scalar_select %p160, %s17, 8
        %s162 = smul.addr %s161, 2
        %s163 = smul.addr %s162, 4
        %s164 = scalar_lea.vmem %s1, %s163
      $region28: #{fc_discriminator_forward.7} parent=19 // pred_fallthru
        _
    $region20: #{fc_discriminator_forward.7} parent=5 // pred_fallthru
      _
    %p165 = scmp.le.s32.totalorder 1, %s9
    %p166 = scmp.lt.s32.totalorder %s9, 10
    %p167 = pnand %p165, %p166
    %p168 = pneg %p167
    // Predicated region
    $region29: #{fc_discriminator_forward.7} parent=5 // pred_check
      _
    $region30: #{fc_discriminator_forward.7} parent=5 // pred_check_branch
      %170 = sbr.rel (%p167) target = $region32
    $region31: #{fc_discriminator_forward.7} parent=5 // pred_region
      %s171 = ssub.s32 %s9, 1
      %s172 = smul.u32 49, %s18
      %p173 = scmp.lt.s32.totalorder %s19, 8
      %s174 = scalar_select %p173, %s19, 8
      %p175 = scmp.lt.s32.totalorder %s172, 48
      %s176 = scalar_select %p175, %s172, 48
      %s177 = smul.addr %s174, 49
      %s178 = sadd.s32 %s176, %s177
      %s179 = smul.addr %s178, 4
      %s180 = scalar_lea.vmem %s0, %s179
      %p181 = pneg %p49
      %p182 = pneg %p46
      %p183 = scmp.lt.s32.totalorder %s19, 8
      %s184 = scalar_select %p183, %s19, 8
      %s185 = smul.addr %s184, 2
      %s186 = smul.addr %s185, 4
      %s187 = scalar_lea.vmem %s1, %s186
      %p188 = pneg %p75
      %p189 = pneg %p72
      %p190 = pneg %p96
      %p191 = pneg %p93
      %p192 = pneg %p122
      %p193 = pneg %p119
      %s194 = smul.u32 49, %s18
      %p195 = scmp.lt.s32.totalorder %s194, 48
      %s196 = scalar_select %p195, %s194, 48
      %s197 = smul.addr %s196, 8
      %s198 = scalar_lea.vmem %s3, %s197
      %s199 = smul.u32 49, %s18
      %p200 = scmp.lt.s32.totalorder %s19, 8
      %s201 = scalar_select %p200, %s19, 8
      %p202 = scmp.lt.s32.totalorder %s199, 48
      %s203 = scalar_select %p202, %s199, 48
      %s204 = smul.addr %s201, 49
      %s205 = sadd.s32 %s203, %s204
      %s206 = smul.addr %s205, 4
      %s207 = scalar_lea.vmem %s0, %s206
      %s208 = smul.u32 49, %s18
      %p209 = scmp.lt.s32.totalorder %s19, 8
      %s210 = scalar_select %p209, %s19, 8
      %s211 = smul.addr %s210, 2
      %s212 = smul.addr %s211, 4
      %s213 = scalar_lea.vmem %s1, %s212
      %s214 = smul.u32 49, %s18
      %p215 = scmp.lt.s32.totalorder %s214, 48
      %s216 = scalar_select %p215, %s214, 48
      %s217 = smul.addr %s216, 8
      %s218 = scalar_lea.vmem %s3, %s217
      %s219 = smul.u32 49, %s18
      %p221 = scmp.eq.s32.totalorder %s19, 0
      // Predicated region
      $region33: #{fc_discriminator_forward.7} parent=31 // pred_check
        %p222 = pneg %p221
      $region34: #{fc_discriminator_forward.7} parent=31 // pred_check_branch
        %224 = sbr.rel (%p222) target = $region36
      $region35: #{fc_discriminator_forward.7} parent=31 // pred_region
        %vm225 = vcmask 261120
        %226 = vst.msk [vmem:[#allocation2] sm:$0xff] %vm225, 0.0
        %227 = vst.msk [vmem:[#allocation2 + $0x8] sm:$0xff] %vm225, 0.0
        %228 = vst.msk [vmem:[#allocation2 + $0x10] sm:$0xff] %vm225, 0.0
        %229 = vst.msk [vmem:[#allocation2 + $0x18] sm:$0xff] %vm225, 0.0
        %230 = vst.msk [vmem:[#allocation2 + $0x20] sm:$0xff] %vm225, 0.0
        %231 = vst.msk [vmem:[#allocation2 + $0x28] sm:$0xff] %vm225, 0.0
        %232 = vst.msk [vmem:[#allocation2 + $0x30] sm:$0xff] %vm225, 0.0
        %233 = vst.msk [vmem:[#allocation2 + $0x38] sm:$0xff] %vm225, 0.0
        %234 = vst.msk [vmem:[#allocation2 + $0x40] sm:$0xff] %vm225, 0.0
        %235 = vst.msk [vmem:[#allocation2 + $0x48] sm:$0xff] %vm225, 0.0
        %236 = vst.msk [vmem:[#allocation2 + $0x50] sm:$0xff] %vm225, 0.0
        %237 = vst.msk [vmem:[#allocation2 + $0x58] sm:$0xff] %vm225, 0.0
        %238 = vst.msk [vmem:[#allocation2 + $0x60] sm:$0xff] %vm225, 0.0
        %239 = vst.msk [vmem:[#allocation2 + $0x68] sm:$0xff] %vm225, 0.0
        %240 = vst.msk [vmem:[#allocation2 + $0x70] sm:$0xff] %vm225, 0.0
        %241 = vst.msk [vmem:[#allocation2 + $0x78] sm:$0xff] %vm225, 0.0
        %242 = vst.msk [vmem:[#allocation2 + $0x80] sm:$0xff] %vm225, 0.0
        %243 = vst.msk [vmem:[#allocation2 + $0x88] sm:$0xff] %vm225, 0.0
        %244 = vst.msk [vmem:[#allocation2 + $0x90] sm:$0xff] %vm225, 0.0
        %245 = vst.msk [vmem:[#allocation2 + $0x98] sm:$0xff] %vm225, 0.0
        %246 = vst.msk [vmem:[#allocation2 + $0xa0] sm:$0xff] %vm225, 0.0
        %247 = vst.msk [vmem:[#allocation2 + $0xa8] sm:$0xff] %vm225, 0.0
        %248 = vst.msk [vmem:[#allocation2 + $0xb0] sm:$0xff] %vm225, 0.0
        %249 = vst.msk [vmem:[#allocation2 + $0xb8] sm:$0xff] %vm225, 0.0
        %250 = vst.msk [vmem:[#allocation2 + $0xc0] sm:$0xff] %vm225, 0.0
        %251 = vst.msk [vmem:[#allocation2 + $0xc8] sm:$0xff] %vm225, 0.0
        %252 = vst.msk [vmem:[#allocation2 + $0xd0] sm:$0xff] %vm225, 0.0
        %253 = vst.msk [vmem:[#allocation2 + $0xd8] sm:$0xff] %vm225, 0.0
        %254 = vst.msk [vmem:[#allocation2 + $0xe0] sm:$0xff] %vm225, 0.0
        %255 = vst.msk [vmem:[#allocation2 + $0xe8] sm:$0xff] %vm225, 0.0
        %256 = vst.msk [vmem:[#allocation2 + $0xf0] sm:$0xff] %vm225, 0.0
        %257 = vst.msk [vmem:[#allocation2 + $0xf8] sm:$0xff] %vm225, 0.0
        %258 = vst.msk [vmem:[#allocation2 + $0x100] sm:$0xff] %vm225, 0.0
        %259 = vst.msk [vmem:[#allocation2 + $0x108] sm:$0xff] %vm225, 0.0
        %260 = vst.msk [vmem:[#allocation2 + $0x110] sm:$0xff] %vm225, 0.0
        %261 = vst.msk [vmem:[#allocation2 + $0x118] sm:$0xff] %vm225, 0.0
        %262 = vst.msk [vmem:[#allocation2 + $0x120] sm:$0xff] %vm225, 0.0
        %263 = vst.msk [vmem:[#allocation2 + $0x128] sm:$0xff] %vm225, 0.0
        %264 = vst.msk [vmem:[#allocation2 + $0x130] sm:$0xff] %vm225, 0.0
        %265 = vst.msk [vmem:[#allocation2 + $0x138] sm:$0xff] %vm225, 0.0
        %266 = vst.msk [vmem:[#allocation2 + $0x140] sm:$0xff] %vm225, 0.0
        %267 = vst.msk [vmem:[#allocation2 + $0x148] sm:$0xff] %vm225, 0.0
        %268 = vst.msk [vmem:[#allocation2 + $0x150] sm:$0xff] %vm225, 0.0
        %269 = vst.msk [vmem:[#allocation2 + $0x158] sm:$0xff] %vm225, 0.0
        %270 = vst.msk [vmem:[#allocation2 + $0x160] sm:$0xff] %vm225, 0.0
        %271 = vst.msk [vmem:[#allocation2 + $0x168] sm:$0xff] %vm225, 0.0
        %272 = vst.msk [vmem:[#allocation2 + $0x170] sm:$0xff] %vm225, 0.0
        %273 = vst.msk [vmem:[#allocation2 + $0x178] sm:$0xff] %vm225, 0.0
        %274 = vst.msk [vmem:[#allocation2 + $0x180] sm:$0xff] %vm225, 0.0
      $region36: #{fc_discriminator_forward.7} parent=31 // pred_fallthru
        _
      %v275 = vld [vmem:[#allocation2] sm:$0xff]
      %v276 = vld [vmem:[#allocation2 + $0x8] sm:$0xff]
      %v277 = vld [vmem:[#allocation2 + $0x10] sm:$0xff]
      %v278 = vld [vmem:[#allocation2 + $0x18] sm:$0xff]
      %v279 = vld [vmem:[#allocation2 + $0x20] sm:$0xff]
      %v280 = vld [vmem:[#allocation2 + $0x28] sm:$0xff]
      %v281 = vld [vmem:[#allocation2 + $0x30] sm:$0xff]
      %v282 = vld [vmem:[#allocation2 + $0x38] sm:$0xff]
      %v283 = vld [vmem:[#allocation2 + $0x40] sm:$0xff]
      %v284 = vld [vmem:[#allocation2 + $0x48] sm:$0xff]
      %v285 = vld [vmem:[#allocation2 + $0x50] sm:$0xff]
      %v286 = vld [vmem:[#allocation2 + $0x58] sm:$0xff]
      %v287 = vld [vmem:[#allocation2 + $0x60] sm:$0xff]
      %v288 = vld [vmem:[#allocation2 + $0x68] sm:$0xff]
      %v289 = vld [vmem:[#allocation2 + $0x70] sm:$0xff]
      %v290 = vld [vmem:[#allocation2 + $0x78] sm:$0xff]
      %v291 = vld [vmem:[#allocation2 + $0x80] sm:$0xff]
      %v292 = vld [vmem:[#allocation2 + $0x88] sm:$0xff]
      %v293 = vld [vmem:[#allocation2 + $0x90] sm:$0xff]
      %v294 = vld [vmem:[#allocation2 + $0x98] sm:$0xff]
      %v295 = vld [vmem:[#allocation2 + $0xa0] sm:$0xff]
      %v296 = vld [vmem:[#allocation2 + $0xa8] sm:$0xff]
      %v297 = vld [vmem:[#allocation2 + $0xb0] sm:$0xff]
      %v298 = vld [vmem:[#allocation2 + $0xb8] sm:$0xff]
      %v299 = vld [vmem:[#allocation2 + $0xc0] sm:$0xff]
      %v300 = vld [vmem:[#allocation2 + $0xc8] sm:$0xff]
      %v301 = vld [vmem:[#allocation2 + $0xd0] sm:$0xff]
      %v302 = vld [vmem:[#allocation2 + $0xd8] sm:$0xff]
      %v303 = vld [vmem:[#allocation2 + $0xe0] sm:$0xff]
      %v304 = vld [vmem:[#allocation2 + $0xe8] sm:$0xff]
      %v305 = vld [vmem:[#allocation2 + $0xf0] sm:$0xff]
      %v306 = vld [vmem:[#allocation2 + $0xf8] sm:$0xff]
      %v307 = vld [vmem:[#allocation2 + $0x100] sm:$0xff]
      %v308 = vld [vmem:[#allocation2 + $0x108] sm:$0xff]
      %v309 = vld [vmem:[#allocation2 + $0x110] sm:$0xff]
      %v310 = vld [vmem:[#allocation2 + $0x118] sm:$0xff]
      %v311 = vld [vmem:[#allocation2 + $0x120] sm:$0xff]
      %v312 = vld [vmem:[#allocation2 + $0x128] sm:$0xff]
      %v313 = vld [vmem:[#allocation2 + $0x130] sm:$0xff]
      %v314 = vld [vmem:[#allocation2 + $0x138] sm:$0xff]
      %v315 = vld [vmem:[#allocation2 + $0x140] sm:$0xff]
      %v316 = vld [vmem:[#allocation2 + $0x148] sm:$0xff]
      %v317 = vld [vmem:[#allocation2 + $0x150] sm:$0xff]
      %v318 = vld [vmem:[#allocation2 + $0x158] sm:$0xff]
      %v319 = vld [vmem:[#allocation2 + $0x160] sm:$0xff]
      %v320 = vld [vmem:[#allocation2 + $0x168] sm:$0xff]
      %v321 = vld [vmem:[#allocation2 + $0x170] sm:$0xff]
      %v322 = vld [vmem:[#allocation2 + $0x178] sm:$0xff]
      %v323 = vld [vmem:[#allocation2 + $0x180] sm:$0xff]
      %v324 = vld [vmem:[%s207] sm:$0xf]
      %v325 = vld [vmem:[%s207 + $0x4] sm:$0xf]
      %v326 = vld [vmem:[%s207 + $0x8] sm:$0xf]
      %v327 = vld [vmem:[%s207 + $0xc] sm:$0xf]
      %v328 = vld [vmem:[%s207 + $0x10] sm:$0xf]
      %v329 = vld [vmem:[%s207 + $0x14] sm:$0xf]
      %v330 = vld [vmem:[%s207 + $0x18] sm:$0xf]
      %v331 = vld [vmem:[%s207 + $0x1c] sm:$0xf]
      %v332 = vld [vmem:[%s207 + $0x20] sm:$0xf]
      %v333 = vld [vmem:[%s207 + $0x24] sm:$0xf]
      %v334 = vld [vmem:[%s207 + $0x28] sm:$0xf]
      %v335 = vld [vmem:[%s207 + $0x2c] sm:$0xf]
      %v336 = vld [vmem:[%s207 + $0x30] sm:$0xf]
      %v337 = vld [vmem:[%s207 + $0x34] sm:$0xf]
      %v338 = vld [vmem:[%s207 + $0x38] sm:$0xf]
      %v339 = vld [vmem:[%s207 + $0x3c] sm:$0xf]
      %v340 = vld [vmem:[%s207 + $0x40] sm:$0xf]
      %v341 = vld [vmem:[%s207 + $0x44] sm:$0xf]
      %v342 = vld [vmem:[%s207 + $0x48] sm:$0xf]
      %v343 = vld [vmem:[%s207 + $0x4c] sm:$0xf]
      %v344 = vld [vmem:[%s207 + $0x50] sm:$0xf]
      %v345 = vld [vmem:[%s207 + $0x54] sm:$0xf]
      %v346 = vld [vmem:[%s207 + $0x58] sm:$0xf]
      %v347 = vld [vmem:[%s207 + $0x5c] sm:$0xf]
      %v348 = vld [vmem:[%s207 + $0x60] sm:$0xf]
      %v349 = vld [vmem:[%s207 + $0x64] sm:$0xf]
      %v350 = vld [vmem:[%s207 + $0x68] sm:$0xf]
      %v351 = vld [vmem:[%s207 + $0x6c] sm:$0xf]
      %v352 = vld [vmem:[%s207 + $0x70] sm:$0xf]
      %v353 = vld [vmem:[%s207 + $0x74] sm:$0xf]
      %v354 = vld [vmem:[%s207 + $0x78] sm:$0xf]
      %v355 = vld [vmem:[%s207 + $0x7c] sm:$0xf]
      %v356 = vld [vmem:[%s207 + $0x80] sm:$0xf]
      %v357 = vld [vmem:[%s207 + $0x84] sm:$0xf]
      %v358 = vld [vmem:[%s207 + $0x88] sm:$0xf]
      %v359 = vld [vmem:[%s207 + $0x8c] sm:$0xf]
      %v360 = vld [vmem:[%s207 + $0x90] sm:$0xf]
      %v361 = vld [vmem:[%s207 + $0x94] sm:$0xf]
      %v362 = vld [vmem:[%s207 + $0x98] sm:$0xf]
      %v363 = vld [vmem:[%s207 + $0x9c] sm:$0xf]
      %v364 = vld [vmem:[%s207 + $0xa0] sm:$0xf]
      %v365 = vld [vmem:[%s207 + $0xa4] sm:$0xf]
      %v366 = vld [vmem:[%s207 + $0xa8] sm:$0xf]
      %v367 = vld [vmem:[%s207 + $0xac] sm:$0xf]
      %v368 = vld [vmem:[%s207 + $0xb0] sm:$0xf]
      %v369 = vld [vmem:[%s207 + $0xb4] sm:$0xf]
      %v370 = vld [vmem:[%s207 + $0xb8] sm:$0xf]
      %v371 = vld [vmem:[%s207 + $0xbc] sm:$0xf]
      %v372 = vld [vmem:[%s207 + $0xc0] sm:$0xf]
      %v373 = vld [vmem:[%s213] sm:$0xf]
      %v374 = vld [vmem:[%s213 + $0x4] sm:$0xf]
      %v424 = vunpack.c.l.b16 %v324
      %v425 = vunpack.c.l.b16 %v325
      %v426 = vunpack.c.l.b16 %v326
      %v427 = vunpack.c.l.b16 %v327
      %v428 = vunpack.c.l.b16 %v328
      %v429 = vunpack.c.l.b16 %v329
      %v430 = vunpack.c.l.b16 %v330
      %v431 = vunpack.c.l.b16 %v331
      %v432 = vunpack.c.l.b16 %v332
      %v433 = vunpack.c.l.b16 %v333
      %v434 = vunpack.c.l.b16 %v334
      %v435 = vunpack.c.l.b16 %v335
      %v436 = vunpack.c.l.b16 %v336
      %v437 = vunpack.c.l.b16 %v337
      %v438 = vunpack.c.l.b16 %v338
      %v439 = vunpack.c.l.b16 %v339
      %v440 = vunpack.c.l.b16 %v340
      %v441 = vunpack.c.l.b16 %v341
      %v442 = vunpack.c.l.b16 %v342
      %v443 = vunpack.c.l.b16 %v343
      %v444 = vunpack.c.l.b16 %v344
      %v445 = vunpack.c.l.b16 %v345
      %v446 = vunpack.c.l.b16 %v346
      %v447 = vunpack.c.l.b16 %v347
      %v448 = vunpack.c.l.b16 %v348
      %v449 = vunpack.c.l.b16 %v349
      %v450 = vunpack.c.l.b16 %v350
      %v451 = vunpack.c.l.b16 %v351
      %v452 = vunpack.c.l.b16 %v352
      %v453 = vunpack.c.l.b16 %v353
      %v454 = vunpack.c.l.b16 %v354
      %v455 = vunpack.c.l.b16 %v355
      %v456 = vunpack.c.l.b16 %v356
      %v457 = vunpack.c.l.b16 %v357
      %v458 = vunpack.c.l.b16 %v358
      %v459 = vunpack.c.l.b16 %v359
      %v460 = vunpack.c.l.b16 %v360
      %v461 = vunpack.c.l.b16 %v361
      %v462 = vunpack.c.l.b16 %v362
      %v463 = vunpack.c.l.b16 %v363
      %v464 = vunpack.c.l.b16 %v364
      %v465 = vunpack.c.l.b16 %v365
      %v466 = vunpack.c.l.b16 %v366
      %v467 = vunpack.c.l.b16 %v367
      %v468 = vunpack.c.l.b16 %v368
      %v469 = vunpack.c.l.b16 %v369
      %v470 = vunpack.c.l.b16 %v370
      %v471 = vunpack.c.l.b16 %v371
      %v472 = vunpack.c.l.b16 %v372
      %v473 = vpack.c.b16 %v425, %v424
      %v474 = vpack.c.b16 %v427, %v426
      %v475 = vpack.c.b16 %v429, %v428
      %v476 = vpack.c.b16 %v431, %v430
      %v477 = vpack.c.b16 %v433, %v432
      %v478 = vpack.c.b16 %v435, %v434
      %v479 = vpack.c.b16 %v437, %v436
      %v480 = vpack.c.b16 %v439, %v438
      %v481 = vpack.c.b16 %v441, %v440
      %v482 = vpack.c.b16 %v443, %v442
      %v483 = vpack.c.b16 %v445, %v444
      %v484 = vpack.c.b16 %v447, %v446
      %v485 = vpack.c.b16 %v449, %v448
      %v486 = vpack.c.b16 %v451, %v450
      %v487 = vpack.c.b16 %v453, %v452
      %v488 = vpack.c.b16 %v455, %v454
      %v489 = vpack.c.b16 %v457, %v456
      %v490 = vpack.c.b16 %v459, %v458
      %v491 = vpack.c.b16 %v461, %v460
      %v492 = vpack.c.b16 %v463, %v462
      %v493 = vpack.c.b16 %v465, %v464
      %v494 = vpack.c.b16 %v467, %v466
      %v495 = vpack.c.b16 %v469, %v468
      %v496 = vpack.c.b16 %v471, %v470
      %v497 = vpack.c.b16 %v472, %v472
      %v500 = vunpack.c.l.b16 %v373
      %v501 = vunpack.c.l.b16 %v374
      %v502 = vpack.c.b16 %v501, %v500
      %vm504 = vcmask 130048
      %v506 = vsel %vm504, %v473, 0
      %v509 = vsel %vm504, %v474, 0
      %v512 = vsel %vm504, %v475, 0
      %v515 = vsel %vm504, %v476, 0
      %v518 = vsel %vm504, %v477, 0
      %v521 = vsel %vm504, %v478, 0
      %v524 = vsel %vm504, %v479, 0
      %v527 = vsel %vm504, %v480, 0
      %v530 = vsel %vm504, %v481, 0
      %v533 = vsel %vm504, %v482, 0
      %v536 = vsel %vm504, %v483, 0
      %v539 = vsel %vm504, %v484, 0
      %v542 = vsel %vm504, %v485, 0
      %v545 = vsel %vm504, %v486, 0
      %v548 = vsel %vm504, %v487, 0
      %v551 = vsel %vm504, %v488, 0
      %v554 = vsel %vm504, %v489, 0
      %v557 = vsel %vm504, %v490, 0
      %v560 = vsel %vm504, %v491, 0
      %v563 = vsel %vm504, %v492, 0
      %v566 = vsel %vm504, %v493, 0
      %v569 = vsel %vm504, %v494, 0
      %v572 = vsel %vm504, %v495, 0
      %v575 = vsel %vm504, %v496, 0
      %v578 = vsel %vm504, %v497, 0
      %580 = vmatprep.subr.bf16.mxu0 0
      %581 = vmatpush1.bf16.msra.mxu0 %v502
      %582 = vmatprep.subr.bf16.mxu0 0
      %583 = vmatpush1.bf16.msra.mxu0 0
      %584 = vmatprep.subr.bf16.mxu0 0
      %585 = vmatpush1.bf16.msra.mxu0 0
      %586 = vmatprep.subr.bf16.mxu0 0
      %587 = vmatpush1.bf16.msra.mxu0 0
      %588 = vmatprep.subr.bf16.mxu0 0
      %589 = vmatpush1.bf16.msra.mxu0 0
      %590 = vmatprep.subr.bf16.mxu0 0
      %591 = vmatpush1.bf16.msra.mxu0 0
      %592 = vmatprep.subr.bf16.mxu0 0
      %593 = vmatpush1.bf16.msra.mxu0 0
      %594 = vmatprep.subr.bf16.mxu0 0
      %595 = vmatpush1.bf16.msra.mxu0 0
      %596 = vmatprep.subr.bf16.mxu0 0
      %597 = vmatpush1.bf16.msra.mxu0 0
      %598 = vmatprep.subr.bf16.mxu0 0
      %599 = vmatpush1.bf16.msra.mxu0 0
      %600 = vmatprep.subr.bf16.mxu0 0
      %601 = vmatpush1.bf16.msra.mxu0 0
      %602 = vmatprep.subr.bf16.mxu0 0
      %603 = vmatpush1.bf16.msra.mxu0 0
      %604 = vmatprep.subr.bf16.mxu0 0
      %605 = vmatpush1.bf16.msra.mxu0 0
      %606 = vmatprep.subr.bf16.mxu0 0
      %607 = vmatpush1.bf16.msra.mxu0 0
      %608 = vmatprep.subr.bf16.mxu0 0
      %609 = vmatpush1.bf16.msra.mxu0 0
      %610 = vmatprep.subr.bf16.mxu0 0
      %611 = vmatpush1.bf16.msra.mxu0 0
      %612 = vmatprep.mubr.bf16.mxu0 0
      %613 = vmatmul.mubr.bf16.gmra.mrb[0].mxu0 %v506
      %v614 = vpop.f32.mrb[0].mxu0
      %v615 = vadd.f32 0.0, %v614
      %v616 = vpop.f32.mrb[0].mxu0
      %v617 = vpop.f32.mrb[0].mxu0
      %v618 = vadd.f32 0.0, %v617
      %v619 = vpop.f32.mrb[0].mxu0
      %620 = vmatprep.mubr.bf16.mxu0 0
      %621 = vmatmul.mubr.bf16.gmra.mrb[0].mxu0 %v509
      %v622 = vpop.f32.mrb[0].mxu0
      %v623 = vadd.f32 0.0, %v622
      %v624 = vpop.f32.mrb[0].mxu0
      %v625 = vpop.f32.mrb[0].mxu0
      %v626 = vadd.f32 0.0, %v625
      %v627 = vpop.f32.mrb[0].mxu0
      %628 = vmatprep.mubr.bf16.mxu0 0
      %629 = vmatmul.mubr.bf16.gmra.mrb[0].mxu0 %v512
      %v630 = vpop.f32.mrb[0].mxu0
      %v631 = vadd.f32 0.0, %v630
      %v632 = vpop.f32.mrb[0].mxu0
      %v633 = vpop.f32.mrb[0].mxu0
      %v634 = vadd.f32 0.0, %v633
      %v635 = vpop.f32.mrb[0].mxu0
      %636 = vmatprep.mubr.bf16.mxu0 0
      %637 = vmatmul.mubr.bf16.gmra.mrb[0].mxu0 %v515
      %v638 = vpop.f32.mrb[0].mxu0
      %v639 = vadd.f32 0.0, %v638
      %v640 = vpop.f32.mrb[0].mxu0
      %v641 = vpop.f32.mrb[0].mxu0
      %v642 = vadd.f32 0.0, %v641
      %v643 = vpop.f32.mrb[0].mxu0
      %644 = vmatprep.mubr.bf16.mxu0 0
      %645 = vmatmul.mubr.bf16.gmra.mrb[0].mxu0 %v518
      %v646 = vpop.f32.mrb[0].mxu0
      %v647 = vadd.f32 0.0, %v646
      %v648 = vpop.f32.mrb[0].mxu0
      %v649 = vpop.f32.mrb[0].mxu0
      %v650 = vadd.f32 0.0, %v649
      %v651 = vpop.f32.mrb[0].mxu0
      %652 = vmatprep.mubr.bf16.mxu0 0
      %653 = vmatmul.mubr.bf16.gmra.mrb[0].mxu0 %v521
      %v654 = vpop.f32.mrb[0].mxu0
      %v655 = vadd.f32 0.0, %v654
      %v656 = vpop.f32.mrb[0].mxu0
      %v657 = vpop.f32.mrb[0].mxu0
      %v658 = vadd.f32 0.0, %v657
      %v659 = vpop.f32.mrb[0].mxu0
      %660 = vmatprep.mubr.bf16.mxu0 0
      %661 = vmatmul.mubr.bf16.gmra.mrb[0].mxu0 %v524
      %v662 = vpop.f32.mrb[0].mxu0
      %v663 = vadd.f32 0.0, %v662
      %v664 = vpop.f32.mrb[0].mxu0
      %v665 = vpop.f32.mrb[0].mxu0
      %v666 = vadd.f32 0.0, %v665
      %v667 = vpop.f32.mrb[0].mxu0
      %668 = vmatprep.mubr.bf16.mxu0 0
      %669 = vmatmul.mubr.bf16.gmra.mrb[0].mxu0 %v527
      %v670 = vpop.f32.mrb[0].mxu0
      %v671 = vadd.f32 0.0, %v670
      %v672 = vpop.f32.mrb[0].mxu0
      %v673 = vpop.f32.mrb[0].mxu0
      %v674 = vadd.f32 0.0, %v673
      %v675 = vpop.f32.mrb[0].mxu0
      %676 = vmatprep.mubr.bf16.mxu0 0
      %677 = vmatmul.mubr.bf16.gmra.mrb[0].mxu0 %v530
      %v678 = vpop.f32.mrb[0].mxu0
      %v679 = vadd.f32 0.0, %v678
      %v680 = vpop.f32.mrb[0].mxu0
      %v681 = vpop.f32.mrb[0].mxu0
      %v682 = vadd.f32 0.0, %v681
      %v683 = vpop.f32.mrb[0].mxu0
      %684 = vmatprep.mubr.bf16.mxu0 0
      %685 = vmatmul.mubr.bf16.gmra.mrb[0].mxu0 %v533
      %v686 = vpop.f32.mrb[0].mxu0
      %v687 = vadd.f32 0.0, %v686
      %v688 = vpop.f32.mrb[0].mxu0
      %v689 = vpop.f32.mrb[0].mxu0
      %v690 = vadd.f32 0.0, %v689
      %v691 = vpop.f32.mrb[0].mxu0
      %692 = vmatprep.mubr.bf16.mxu0 0
      %693 = vmatmul.mubr.bf16.gmra.mrb[0].mxu0 %v536
      %v694 = vpop.f32.mrb[0].mxu0
      %v695 = vadd.f32 0.0, %v694
      %v696 = vpop.f32.mrb[0].mxu0
      %v697 = vpop.f32.mrb[0].mxu0
      %v698 = vadd.f32 0.0, %v697
      %v699 = vpop.f32.mrb[0].mxu0
      %700 = vmatprep.mubr.bf16.mxu0 0
      %701 = vmatmul.mubr.bf16.gmra.mrb[0].mxu0 %v539
      %v702 = vpop.f32.mrb[0].mxu0
      %v703 = vadd.f32 0.0, %v702
      %v704 = vpop.f32.mrb[0].mxu0
      %v705 = vpop.f32.mrb[0].mxu0
      %v706 = vadd.f32 0.0, %v705
      %v707 = vpop.f32.mrb[0].mxu0
      %708 = vmatprep.mubr.bf16.mxu0 0
      %709 = vmatmul.mubr.bf16.gmra.mrb[0].mxu0 %v542
      %v710 = vpop.f32.mrb[0].mxu0
      %v711 = vadd.f32 0.0, %v710
      %v712 = vpop.f32.mrb[0].mxu0
      %v713 = vpop.f32.mrb[0].mxu0
      %v714 = vadd.f32 0.0, %v713
      %v715 = vpop.f32.mrb[0].mxu0
      %716 = vmatprep.mubr.bf16.mxu0 0
      %717 = vmatmul.mubr.bf16.gmra.mrb[0].mxu0 %v545
      %v718 = vpop.f32.mrb[0].mxu0
      %v719 = vadd.f32 0.0, %v718
      %v720 = vpop.f32.mrb[0].mxu0
      %v721 = vpop.f32.mrb[0].mxu0
      %v722 = vadd.f32 0.0, %v721
      %v723 = vpop.f32.mrb[0].mxu0
      %724 = vmatprep.mubr.bf16.mxu0 0
      %725 = vmatmul.mubr.bf16.gmra.mrb[0].mxu0 %v548
      %v726 = vpop.f32.mrb[0].mxu0
      %v727 = vadd.f32 0.0, %v726
      %v728 = vpop.f32.mrb[0].mxu0
      %v729 = vpop.f32.mrb[0].mxu0
      %v730 = vadd.f32 0.0, %v729
      %v731 = vpop.f32.mrb[0].mxu0
      %732 = vmatprep.mubr.bf16.mxu0 0
      %733 = vmatmul.mubr.bf16.gmra.mrb[0].mxu0 %v551
      %v734 = vpop.f32.mrb[0].mxu0
      %v735 = vadd.f32 0.0, %v734
      %v736 = vpop.f32.mrb[0].mxu0
      %v737 = vpop.f32.mrb[0].mxu0
      %v738 = vadd.f32 0.0, %v737
      %v739 = vpop.f32.mrb[0].mxu0
      %740 = vmatprep.mubr.bf16.mxu0 0
      %741 = vmatmul.mubr.bf16.gmra.mrb[0].mxu0 %v554
      %v742 = vpop.f32.mrb[0].mxu0
      %v743 = vadd.f32 0.0, %v742
      %v744 = vpop.f32.mrb[0].mxu0
      %v745 = vpop.f32.mrb[0].mxu0
      %v746 = vadd.f32 0.0, %v745
      %v747 = vpop.f32.mrb[0].mxu0
      %748 = vmatprep.mubr.bf16.mxu0 0
      %749 = vmatmul.mubr.bf16.gmra.mrb[0].mxu0 %v557
      %v750 = vpop.f32.mrb[0].mxu0
      %v751 = vadd.f32 0.0, %v750
      %v752 = vpop.f32.mrb[0].mxu0
      %v753 = vpop.f32.mrb[0].mxu0
      %v754 = vadd.f32 0.0, %v753
      %v755 = vpop.f32.mrb[0].mxu0
      %756 = vmatprep.mubr.bf16.mxu0 0
      %757 = vmatmul.mubr.bf16.gmra.mrb[0].mxu0 %v560
      %v758 = vpop.f32.mrb[0].mxu0
      %v759 = vadd.f32 0.0, %v758
      %v760 = vpop.f32.mrb[0].mxu0
      %v761 = vpop.f32.mrb[0].mxu0
      %v762 = vadd.f32 0.0, %v761
      %v763 = vpop.f32.mrb[0].mxu0
      %764 = vmatprep.mubr.bf16.mxu0 0
      %765 = vmatmul.mubr.bf16.gmra.mrb[0].mxu0 %v563
      %v766 = vpop.f32.mrb[0].mxu0
      %v767 = vadd.f32 0.0, %v766
      %v768 = vpop.f32.mrb[0].mxu0
      %v769 = vpop.f32.mrb[0].mxu0
      %v770 = vadd.f32 0.0, %v769
      %v771 = vpop.f32.mrb[0].mxu0
      %772 = vmatprep.mubr.bf16.mxu0 0
      %773 = vmatmul.mubr.bf16.gmra.mrb[0].mxu0 %v566
      %v774 = vpop.f32.mrb[0].mxu0
      %v775 = vadd.f32 0.0, %v774
      %v776 = vpop.f32.mrb[0].mxu0
      %v777 = vpop.f32.mrb[0].mxu0
      %v778 = vadd.f32 0.0, %v777
      %v779 = vpop.f32.mrb[0].mxu0
      %780 = vmatprep.mubr.bf16.mxu0 0
      %781 = vmatmul.mubr.bf16.gmra.mrb[0].mxu0 %v569
      %v782 = vpop.f32.mrb[0].mxu0
      %v783 = vadd.f32 0.0, %v782
      %v784 = vpop.f32.mrb[0].mxu0
      %v785 = vpop.f32.mrb[0].mxu0
      %v786 = vadd.f32 0.0, %v785
      %v787 = vpop.f32.mrb[0].mxu0
      %788 = vmatprep.mubr.bf16.mxu0 0
      %789 = vmatmul.mubr.bf16.gmra.mrb[0].mxu0 %v572
      %v790 = vpop.f32.mrb[0].mxu0
      %v791 = vadd.f32 0.0, %v790
      %v792 = vpop.f32.mrb[0].mxu0
      %v793 = vpop.f32.mrb[0].mxu0
      %v794 = vadd.f32 0.0, %v793
      %v795 = vpop.f32.mrb[0].mxu0
      %796 = vmatprep.mubr.bf16.mxu0 0
      %797 = vmatmul.mubr.bf16.gmra.mrb[0].mxu0 %v575
      %v798 = vpop.f32.mrb[0].mxu0
      %v799 = vadd.f32 0.0, %v798
      %v800 = vpop.f32.mrb[0].mxu0
      %v801 = vpop.f32.mrb[0].mxu0
      %v802 = vadd.f32 0.0, %v801
      %v803 = vpop.f32.mrb[0].mxu0
      %804 = vmatprep.mubr.bf16.mxu0 0
      %805 = vmatmul.mubr.bf16.gmra.mrb[0].mxu0 %v578
      %v806 = vpop.f32.mrb[0].mxu0
      %v807 = vadd.f32 0.0, %v806
      %v808 = vpop.f32.mrb[0].mxu0
      %v809 = vpop.f32.mrb[0].mxu0
      %v810 = vpop.f32.mrb[0].mxu0
      %811 = vdwg.mxu0
      %v812 = vadd.f32 %v275, %v615
      %v813 = vadd.f32 %v276, %v618
      %v814 = vadd.f32 %v277, %v623
      %v815 = vadd.f32 %v278, %v626
      %v816 = vadd.f32 %v279, %v631
      %v817 = vadd.f32 %v280, %v634
      %v818 = vadd.f32 %v281, %v639
      %v819 = vadd.f32 %v282, %v642
      %v820 = vadd.f32 %v283, %v647
      %v821 = vadd.f32 %v284, %v650
      %v822 = vadd.f32 %v285, %v655
      %v823 = vadd.f32 %v286, %v658
      %v824 = vadd.f32 %v287, %v663
      %v825 = vadd.f32 %v288, %v666
      %v826 = vadd.f32 %v289, %v671
      %v827 = vadd.f32 %v290, %v674
      %v828 = vadd.f32 %v291, %v679
      %v829 = vadd.f32 %v292, %v682
      %v830 = vadd.f32 %v293, %v687
      %v831 = vadd.f32 %v294, %v690
      %v832 = vadd.f32 %v295, %v695
      %v833 = vadd.f32 %v296, %v698
      %v834 = vadd.f32 %v297, %v703
      %v835 = vadd.f32 %v298, %v706
      %v836 = vadd.f32 %v299, %v711
      %v837 = vadd.f32 %v300, %v714
      %v838 = vadd.f32 %v301, %v719
      %v839 = vadd.f32 %v302, %v722
      %v840 = vadd.f32 %v303, %v727
      %v841 = vadd.f32 %v304, %v730
      %v842 = vadd.f32 %v305, %v735
      %v843 = vadd.f32 %v306, %v738
      %v844 = vadd.f32 %v307, %v743
      %v845 = vadd.f32 %v308, %v746
      %v846 = vadd.f32 %v309, %v751
      %v847 = vadd.f32 %v310, %v754
      %v848 = vadd.f32 %v311, %v759
      %v849 = vadd.f32 %v312, %v762
      %v850 = vadd.f32 %v313, %v767
      %v851 = vadd.f32 %v314, %v770
      %v852 = vadd.f32 %v315, %v775
      %v853 = vadd.f32 %v316, %v778
      %v854 = vadd.f32 %v317, %v783
      %v855 = vadd.f32 %v318, %v786
      %v856 = vadd.f32 %v319, %v791
      %v857 = vadd.f32 %v320, %v794
      %v858 = vadd.f32 %v321, %v799
      %v859 = vadd.f32 %v322, %v802
      %v860 = vadd.f32 %v323, %v807
      %vm861 = vcmask 261120
      %862 = vst.msk [vmem:[#allocation2] sm:$0xff] %vm861, %v812
      %863 = vst.msk [vmem:[#allocation2 + $0x8] sm:$0xff] %vm861, %v813
      %864 = vst.msk [vmem:[#allocation2 + $0x10] sm:$0xff] %vm861, %v814
      %865 = vst.msk [vmem:[#allocation2 + $0x18] sm:$0xff] %vm861, %v815
      %866 = vst.msk [vmem:[#allocation2 + $0x20] sm:$0xff] %vm861, %v816
      %867 = vst.msk [vmem:[#allocation2 + $0x28] sm:$0xff] %vm861, %v817
      %868 = vst.msk [vmem:[#allocation2 + $0x30] sm:$0xff] %vm861, %v818
      %869 = vst.msk [vmem:[#allocation2 + $0x38] sm:$0xff] %vm861, %v819
      %870 = vst.msk [vmem:[#allocation2 + $0x40] sm:$0xff] %vm861, %v820
      %871 = vst.msk [vmem:[#allocation2 + $0x48] sm:$0xff] %vm861, %v821
      %872 = vst.msk [vmem:[#allocation2 + $0x50] sm:$0xff] %vm861, %v822
      %873 = vst.msk [vmem:[#allocation2 + $0x58] sm:$0xff] %vm861, %v823
      %874 = vst.msk [vmem:[#allocation2 + $0x60] sm:$0xff] %vm861, %v824
      %875 = vst.msk [vmem:[#allocation2 + $0x68] sm:$0xff] %vm861, %v825
      %876 = vst.msk [vmem:[#allocation2 + $0x70] sm:$0xff] %vm861, %v826
      %877 = vst.msk [vmem:[#allocation2 + $0x78] sm:$0xff] %vm861, %v827
      %878 = vst.msk [vmem:[#allocation2 + $0x80] sm:$0xff] %vm861, %v828
      %879 = vst.msk [vmem:[#allocation2 + $0x88] sm:$0xff] %vm861, %v829
      %880 = vst.msk [vmem:[#allocation2 + $0x90] sm:$0xff] %vm861, %v830
      %881 = vst.msk [vmem:[#allocation2 + $0x98] sm:$0xff] %vm861, %v831
      %882 = vst.msk [vmem:[#allocation2 + $0xa0] sm:$0xff] %vm861, %v832
      %883 = vst.msk [vmem:[#allocation2 + $0xa8] sm:$0xff] %vm861, %v833
      %884 = vst.msk [vmem:[#allocation2 + $0xb0] sm:$0xff] %vm861, %v834
      %885 = vst.msk [vmem:[#allocation2 + $0xb8] sm:$0xff] %vm861, %v835
      %886 = vst.msk [vmem:[#allocation2 + $0xc0] sm:$0xff] %vm861, %v836
      %887 = vst.msk [vmem:[#allocation2 + $0xc8] sm:$0xff] %vm861, %v837
      %888 = vst.msk [vmem:[#allocation2 + $0xd0] sm:$0xff] %vm861, %v838
      %889 = vst.msk [vmem:[#allocation2 + $0xd8] sm:$0xff] %vm861, %v839
      %890 = vst.msk [vmem:[#allocation2 + $0xe0] sm:$0xff] %vm861, %v840
      %891 = vst.msk [vmem:[#allocation2 + $0xe8] sm:$0xff] %vm861, %v841
      %892 = vst.msk [vmem:[#allocation2 + $0xf0] sm:$0xff] %vm861, %v842
      %893 = vst.msk [vmem:[#allocation2 + $0xf8] sm:$0xff] %vm861, %v843
      %894 = vst.msk [vmem:[#allocation2 + $0x100] sm:$0xff] %vm861, %v844
      %895 = vst.msk [vmem:[#allocation2 + $0x108] sm:$0xff] %vm861, %v845
      %896 = vst.msk [vmem:[#allocation2 + $0x110] sm:$0xff] %vm861, %v846
      %897 = vst.msk [vmem:[#allocation2 + $0x118] sm:$0xff] %vm861, %v847
      %898 = vst.msk [vmem:[#allocation2 + $0x120] sm:$0xff] %vm861, %v848
      %899 = vst.msk [vmem:[#allocation2 + $0x128] sm:$0xff] %vm861, %v849
      %900 = vst.msk [vmem:[#allocation2 + $0x130] sm:$0xff] %vm861, %v850
      %901 = vst.msk [vmem:[#allocation2 + $0x138] sm:$0xff] %vm861, %v851
      %902 = vst.msk [vmem:[#allocation2 + $0x140] sm:$0xff] %vm861, %v852
      %903 = vst.msk [vmem:[#allocation2 + $0x148] sm:$0xff] %vm861, %v853
      %904 = vst.msk [vmem:[#allocation2 + $0x150] sm:$0xff] %vm861, %v854
      %905 = vst.msk [vmem:[#allocation2 + $0x158] sm:$0xff] %vm861, %v855
      %906 = vst.msk [vmem:[#allocation2 + $0x160] sm:$0xff] %vm861, %v856
      %907 = vst.msk [vmem:[#allocation2 + $0x168] sm:$0xff] %vm861, %v857
      %908 = vst.msk [vmem:[#allocation2 + $0x170] sm:$0xff] %vm861, %v858
      %909 = vst.msk [vmem:[#allocation2 + $0x178] sm:$0xff] %vm861, %v859
      %910 = vst.msk [vmem:[#allocation2 + $0x180] sm:$0xff] %vm861, %v860
      %p911 = scmp.eq.s32.totalorder %s19, 8
      // Predicated region
      $region37: #{fc_discriminator_forward.7} parent=31 // pred_check
        %p912 = pneg %p911
      $region38: #{fc_discriminator_forward.7} parent=31 // pred_check_branch
        %914 = sbr.rel (%p912) target = $region40
      $region39: #{fc_discriminator_forward.7} parent=31 // pred_region
        %v915 = vld [vmem:[#allocation2] sm:$0xff]
        %v916 = vld [vmem:[#allocation2 + $0x8] sm:$0xff]
        %v917 = vld [vmem:[#allocation2 + $0x10] sm:$0xff]
        %v918 = vld [vmem:[#allocation2 + $0x18] sm:$0xff]
        %v919 = vld [vmem:[#allocation2 + $0x20] sm:$0xff]
        %v920 = vld [vmem:[#allocation2 + $0x28] sm:$0xff]
        %v921 = vld [vmem:[#allocation2 + $0x30] sm:$0xff]
        %v922 = vld [vmem:[#allocation2 + $0x38] sm:$0xff]
        %v923 = vld [vmem:[#allocation2 + $0x40] sm:$0xff]
        %v924 = vld [vmem:[#allocation2 + $0x48] sm:$0xff]
        %v925 = vld [vmem:[#allocation2 + $0x50] sm:$0xff]
        %v926 = vld [vmem:[#allocation2 + $0x58] sm:$0xff]
        %v927 = vld [vmem:[#allocation2 + $0x60] sm:$0xff]
        %v928 = vld [vmem:[#allocation2 + $0x68] sm:$0xff]
        %v929 = vld [vmem:[#allocation2 + $0x70] sm:$0xff]
        %v930 = vld [vmem:[#allocation2 + $0x78] sm:$0xff]
        %v931 = vld [vmem:[#allocation2 + $0x80] sm:$0xff]
        %v932 = vld [vmem:[#allocation2 + $0x88] sm:$0xff]
        %v933 = vld [vmem:[#allocation2 + $0x90] sm:$0xff]
        %v934 = vld [vmem:[#allocation2 + $0x98] sm:$0xff]
        %v935 = vld [vmem:[#allocation2 + $0xa0] sm:$0xff]
        %v936 = vld [vmem:[#allocation2 + $0xa8] sm:$0xff]
        %v937 = vld [vmem:[#allocation2 + $0xb0] sm:$0xff]
        %v938 = vld [vmem:[#allocation2 + $0xb8] sm:$0xff]
        %v939 = vld [vmem:[#allocation2 + $0xc0] sm:$0xff]
        %v940 = vld [vmem:[#allocation2 + $0xc8] sm:$0xff]
        %v941 = vld [vmem:[#allocation2 + $0xd0] sm:$0xff]
        %v942 = vld [vmem:[#allocation2 + $0xd8] sm:$0xff]
        %v943 = vld [vmem:[#allocation2 + $0xe0] sm:$0xff]
        %v944 = vld [vmem:[#allocation2 + $0xe8] sm:$0xff]
        %v945 = vld [vmem:[#allocation2 + $0xf0] sm:$0xff]
        %v946 = vld [vmem:[#allocation2 + $0xf8] sm:$0xff]
        %v947 = vld [vmem:[#allocation2 + $0x100] sm:$0xff]
        %v948 = vld [vmem:[#allocation2 + $0x108] sm:$0xff]
        %v949 = vld [vmem:[#allocation2 + $0x110] sm:$0xff]
        %v950 = vld [vmem:[#allocation2 + $0x118] sm:$0xff]
        %v951 = vld [vmem:[#allocation2 + $0x120] sm:$0xff]
        %v952 = vld [vmem:[#allocation2 + $0x128] sm:$0xff]
        %v953 = vld [vmem:[#allocation2 + $0x130] sm:$0xff]
        %v954 = vld [vmem:[#allocation2 + $0x138] sm:$0xff]
        %v955 = vld [vmem:[#allocation2 + $0x140] sm:$0xff]
        %v956 = vld [vmem:[#allocation2 + $0x148] sm:$0xff]
        %v957 = vld [vmem:[#allocation2 + $0x150] sm:$0xff]
        %v958 = vld [vmem:[#allocation2 + $0x158] sm:$0xff]
        %v959 = vld [vmem:[#allocation2 + $0x160] sm:$0xff]
        %v960 = vld [vmem:[#allocation2 + $0x168] sm:$0xff]
        %v961 = vld [vmem:[#allocation2 + $0x170] sm:$0xff]
        %v962 = vld [vmem:[#allocation2 + $0x178] sm:$0xff]
        %v963 = vld [vmem:[#allocation2 + $0x180] sm:$0xff]
        %v964 = vld [vmem:[%s2] sm:$0x1]
        %v966 = vlaneseq
        %v967 = vshrl.u32 %v966, 7
        %v968 = vsub.s32 0, %v967
        %v969 = vrot.slane %v964, %v968
        %v971 = vadd.f32 %v915, %v969
        %v972 = vadd.f32 %v916, %v969
        %v973 = vadd.f32 %v917, %v969
        %v974 = vadd.f32 %v918, %v969
        %v975 = vadd.f32 %v919, %v969
        %v976 = vadd.f32 %v920, %v969
        %v977 = vadd.f32 %v921, %v969
        %v978 = vadd.f32 %v922, %v969
        %v979 = vadd.f32 %v923, %v969
        %v980 = vadd.f32 %v924, %v969
        %v981 = vadd.f32 %v925, %v969
        %v982 = vadd.f32 %v926, %v969
        %v983 = vadd.f32 %v927, %v969
        %v984 = vadd.f32 %v928, %v969
        %v985 = vadd.f32 %v929, %v969
        %v986 = vadd.f32 %v930, %v969
        %v987 = vadd.f32 %v931, %v969
        %v988 = vadd.f32 %v932, %v969
        %v989 = vadd.f32 %v933, %v969
        %v990 = vadd.f32 %v934, %v969
        %v991 = vadd.f32 %v935, %v969
        %v992 = vadd.f32 %v936, %v969
        %v993 = vadd.f32 %v937, %v969
        %v994 = vadd.f32 %v938, %v969
        %v995 = vadd.f32 %v939, %v969
        %v996 = vadd.f32 %v940, %v969
        %v997 = vadd.f32 %v941, %v969
        %v998 = vadd.f32 %v942, %v969
        %v999 = vadd.f32 %v943, %v969
        %v1000 = vadd.f32 %v944, %v969
        %v1001 = vadd.f32 %v945, %v969
        %v1002 = vadd.f32 %v946, %v969
        %v1003 = vadd.f32 %v947, %v969
        %v1004 = vadd.f32 %v948, %v969
        %v1005 = vadd.f32 %v949, %v969
        %v1006 = vadd.f32 %v950, %v969
        %v1007 = vadd.f32 %v951, %v969
        %v1008 = vadd.f32 %v952, %v969
        %v1009 = vadd.f32 %v953, %v969
        %v1010 = vadd.f32 %v954, %v969
        %v1011 = vadd.f32 %v955, %v969
        %v1012 = vadd.f32 %v956, %v969
        %v1013 = vadd.f32 %v957, %v969
        %v1014 = vadd.f32 %v958, %v969
        %v1015 = vadd.f32 %v959, %v969
        %v1016 = vadd.f32 %v960, %v969
        %v1017 = vadd.f32 %v961, %v969
        %v1018 = vadd.f32 %v962, %v969
        %v1019 = vadd.f32 %v963, %v969
        %vm1020 = vcmp.ge.f32.partialorder %v971, 0.0
        %vm1021 = vcmp.ge.f32.partialorder %v972, 0.0
        %vm1022 = vcmp.ge.f32.partialorder %v973, 0.0
        %vm1023 = vcmp.ge.f32.partialorder %v974, 0.0
        %vm1024 = vcmp.ge.f32.partialorder %v975, 0.0
        %vm1025 = vcmp.ge.f32.partialorder %v976, 0.0
        %vm1026 = vcmp.ge.f32.partialorder %v977, 0.0
        %vm1027 = vcmp.ge.f32.partialorder %v978, 0.0
        %vm1028 = vcmp.ge.f32.partialorder %v979, 0.0
        %vm1029 = vcmp.ge.f32.partialorder %v980, 0.0
        %vm1030 = vcmp.ge.f32.partialorder %v981, 0.0
        %vm1031 = vcmp.ge.f32.partialorder %v982, 0.0
        %vm1032 = vcmp.ge.f32.partialorder %v983, 0.0
        %vm1033 = vcmp.ge.f32.partialorder %v984, 0.0
        %vm1034 = vcmp.ge.f32.partialorder %v985, 0.0
        %vm1035 = vcmp.ge.f32.partialorder %v986, 0.0
        %vm1036 = vcmp.ge.f32.partialorder %v987, 0.0
        %vm1037 = vcmp.ge.f32.partialorder %v988, 0.0
        %vm1038 = vcmp.ge.f32.partialorder %v989, 0.0
        %vm1039 = vcmp.ge.f32.partialorder %v990, 0.0
        %vm1040 = vcmp.ge.f32.partialorder %v991, 0.0
        %vm1041 = vcmp.ge.f32.partialorder %v992, 0.0
        %vm1042 = vcmp.ge.f32.partialorder %v993, 0.0
        %vm1043 = vcmp.ge.f32.partialorder %v994, 0.0
        %vm1044 = vcmp.ge.f32.partialorder %v995, 0.0
        %vm1045 = vcmp.ge.f32.partialorder %v996, 0.0
        %vm1046 = vcmp.ge.f32.partialorder %v997, 0.0
        %vm1047 = vcmp.ge.f32.partialorder %v998, 0.0
        %vm1048 = vcmp.ge.f32.partialorder %v999, 0.0
        %vm1049 = vcmp.ge.f32.partialorder %v1000, 0.0
        %vm1050 = vcmp.ge.f32.partialorder %v1001, 0.0
        %vm1051 = vcmp.ge.f32.partialorder %v1002, 0.0
        %vm1052 = vcmp.ge.f32.partialorder %v1003, 0.0
        %vm1053 = vcmp.ge.f32.partialorder %v1004, 0.0
        %vm1054 = vcmp.ge.f32.partialorder %v1005, 0.0
        %vm1055 = vcmp.ge.f32.partialorder %v1006, 0.0
        %vm1056 = vcmp.ge.f32.partialorder %v1007, 0.0
        %vm1057 = vcmp.ge.f32.partialorder %v1008, 0.0
        %vm1058 = vcmp.ge.f32.partialorder %v1009, 0.0
        %vm1059 = vcmp.ge.f32.partialorder %v1010, 0.0
        %vm1060 = vcmp.ge.f32.partialorder %v1011, 0.0
        %vm1061 = vcmp.ge.f32.partialorder %v1012, 0.0
        %vm1062 = vcmp.ge.f32.partialorder %v1013, 0.0
        %vm1063 = vcmp.ge.f32.partialorder %v1014, 0.0
        %vm1064 = vcmp.ge.f32.partialorder %v1015, 0.0
        %vm1065 = vcmp.ge.f32.partialorder %v1016, 0.0
        %vm1066 = vcmp.ge.f32.partialorder %v1017, 0.0
        %vm1067 = vcmp.ge.f32.partialorder %v1018, 0.0
        %vm1068 = vcmp.ge.f32.partialorder %v1019, 0.0
        %v1069 = vmul.f32 %v971, 0.2
        %v1070 = vmul.f32 %v972, 0.2
        %v1071 = vmul.f32 %v973, 0.2
        %v1072 = vmul.f32 %v974, 0.2
        %v1073 = vmul.f32 %v975, 0.2
        %v1074 = vmul.f32 %v976, 0.2
        %v1075 = vmul.f32 %v977, 0.2
        %v1076 = vmul.f32 %v978, 0.2
        %v1077 = vmul.f32 %v979, 0.2
        %v1078 = vmul.f32 %v980, 0.2
        %v1079 = vmul.f32 %v981, 0.2
        %v1080 = vmul.f32 %v982, 0.2
        %v1081 = vmul.f32 %v983, 0.2
        %v1082 = vmul.f32 %v984, 0.2
        %v1083 = vmul.f32 %v985, 0.2
        %v1084 = vmul.f32 %v986, 0.2
        %v1085 = vmul.f32 %v987, 0.2
        %v1086 = vmul.f32 %v988, 0.2
        %v1087 = vmul.f32 %v989, 0.2
        %v1088 = vmul.f32 %v990, 0.2
        %v1089 = vmul.f32 %v991, 0.2
        %v1090 = vmul.f32 %v992, 0.2
        %v1091 = vmul.f32 %v993, 0.2
        %v1092 = vmul.f32 %v994, 0.2
        %v1093 = vmul.f32 %v995, 0.2
        %v1094 = vmul.f32 %v996, 0.2
        %v1095 = vmul.f32 %v997, 0.2
        %v1096 = vmul.f32 %v998, 0.2
        %v1097 = vmul.f32 %v999, 0.2
        %v1098 = vmul.f32 %v1000, 0.2
        %v1099 = vmul.f32 %v1001, 0.2
        %v1100 = vmul.f32 %v1002, 0.2
        %v1101 = vmul.f32 %v1003, 0.2
        %v1102 = vmul.f32 %v1004, 0.2
        %v1103 = vmul.f32 %v1005, 0.2
        %v1104 = vmul.f32 %v1006, 0.2
        %v1105 = vmul.f32 %v1007, 0.2
        %v1106 = vmul.f32 %v1008, 0.2
        %v1107 = vmul.f32 %v1009, 0.2
        %v1108 = vmul.f32 %v1010, 0.2
        %v1109 = vmul.f32 %v1011, 0.2
        %v1110 = vmul.f32 %v1012, 0.2
        %v1111 = vmul.f32 %v1013, 0.2
        %v1112 = vmul.f32 %v1014, 0.2
        %v1113 = vmul.f32 %v1015, 0.2
        %v1114 = vmul.f32 %v1016, 0.2
        %v1115 = vmul.f32 %v1017, 0.2
        %v1116 = vmul.f32 %v1018, 0.2
        %v1117 = vmul.f32 %v1019, 0.2
        %v1118 = vsel %vm1020, %v971, %v1069
        %v1119 = vsel %vm1021, %v972, %v1070
        %v1120 = vsel %vm1022, %v973, %v1071
        %v1121 = vsel %vm1023, %v974, %v1072
        %v1122 = vsel %vm1024, %v975, %v1073
        %v1123 = vsel %vm1025, %v976, %v1074
        %v1124 = vsel %vm1026, %v977, %v1075
        %v1125 = vsel %vm1027, %v978, %v1076
        %v1126 = vsel %vm1028, %v979, %v1077
        %v1127 = vsel %vm1029, %v980, %v1078
        %v1128 = vsel %vm1030, %v981, %v1079
        %v1129 = vsel %vm1031, %v982, %v1080
        %v1130 = vsel %vm1032, %v983, %v1081
        %v1131 = vsel %vm1033, %v984, %v1082
        %v1132 = vsel %vm1034, %v985, %v1083
        %v1133 = vsel %vm1035, %v986, %v1084
        %v1134 = vsel %vm1036, %v987, %v1085
        %v1135 = vsel %vm1037, %v988, %v1086
        %v1136 = vsel %vm1038, %v989, %v1087
        %v1137 = vsel %vm1039, %v990, %v1088
        %v1138 = vsel %vm1040, %v991, %v1089
        %v1139 = vsel %vm1041, %v992, %v1090
        %v1140 = vsel %vm1042, %v993, %v1091
        %v1141 = vsel %vm1043, %v994, %v1092
        %v1142 = vsel %vm1044, %v995, %v1093
        %v1143 = vsel %vm1045, %v996, %v1094
        %v1144 = vsel %vm1046, %v997, %v1095
        %v1145 = vsel %vm1047, %v998, %v1096
        %v1146 = vsel %vm1048, %v999, %v1097
        %v1147 = vsel %vm1049, %v1000, %v1098
        %v1148 = vsel %vm1050, %v1001, %v1099
        %v1149 = vsel %vm1051, %v1002, %v1100
        %v1150 = vsel %vm1052, %v1003, %v1101
        %v1151 = vsel %vm1053, %v1004, %v1102
        %v1152 = vsel %vm1054, %v1005, %v1103
        %v1153 = vsel %vm1055, %v1006, %v1104
        %v1154 = vsel %vm1056, %v1007, %v1105
        %v1155 = vsel %vm1057, %v1008, %v1106
        %v1156 = vsel %vm1058, %v1009, %v1107
        %v1157 = vsel %vm1059, %v1010, %v1108
        %v1158 = vsel %vm1060, %v1011, %v1109
        %v1159 = vsel %vm1061, %v1012, %v1110
        %v1160 = vsel %vm1062, %v1013, %v1111
        %v1161 = vsel %vm1063, %v1014, %v1112
        %v1162 = vsel %vm1064, %v1015, %v1113
        %v1163 = vsel %vm1065, %v1016, %v1114
        %v1164 = vsel %vm1066, %v1017, %v1115
        %v1165 = vsel %vm1067, %v1018, %v1116
        %v1166 = vsel %vm1068, %v1019, %v1117
        %1167 = vst.msk [vmem:[%s218] sm:$0xff] %vm861, %v1118
        %1168 = vst.msk [vmem:[%s218 + $0x8] sm:$0xff] %vm861, %v1119
        %1169 = vst.msk [vmem:[%s218 + $0x10] sm:$0xff] %vm861, %v1120
        %1170 = vst.msk [vmem:[%s218 + $0x18] sm:$0xff] %vm861, %v1121
        %1171 = vst.msk [vmem:[%s218 + $0x20] sm:$0xff] %vm861, %v1122
        %1172 = vst.msk [vmem:[%s218 + $0x28] sm:$0xff] %vm861, %v1123
        %1173 = vst.msk [vmem:[%s218 + $0x30] sm:$0xff] %vm861, %v1124
        %1174 = vst.msk [vmem:[%s218 + $0x38] sm:$0xff] %vm861, %v1125
        %1175 = vst.msk [vmem:[%s218 + $0x40] sm:$0xff] %vm861, %v1126
        %1176 = vst.msk [vmem:[%s218 + $0x48] sm:$0xff] %vm861, %v1127
        %1177 = vst.msk [vmem:[%s218 + $0x50] sm:$0xff] %vm861, %v1128
        %1178 = vst.msk [vmem:[%s218 + $0x58] sm:$0xff] %vm861, %v1129
        %1179 = vst.msk [vmem:[%s218 + $0x60] sm:$0xff] %vm861, %v1130
        %1180 = vst.msk [vmem:[%s218 + $0x68] sm:$0xff] %vm861, %v1131
        %1181 = vst.msk [vmem:[%s218 + $0x70] sm:$0xff] %vm861, %v1132
        %1182 = vst.msk [vmem:[%s218 + $0x78] sm:$0xff] %vm861, %v1133
        %1183 = vst.msk [vmem:[%s218 + $0x80] sm:$0xff] %vm861, %v1134
        %1184 = vst.msk [vmem:[%s218 + $0x88] sm:$0xff] %vm861, %v1135
        %1185 = vst.msk [vmem:[%s218 + $0x90] sm:$0xff] %vm861, %v1136
        %1186 = vst.msk [vmem:[%s218 + $0x98] sm:$0xff] %vm861, %v1137
        %1187 = vst.msk [vmem:[%s218 + $0xa0] sm:$0xff] %vm861, %v1138
        %1188 = vst.msk [vmem:[%s218 + $0xa8] sm:$0xff] %vm861, %v1139
        %1189 = vst.msk [vmem:[%s218 + $0xb0] sm:$0xff] %vm861, %v1140
        %1190 = vst.msk [vmem:[%s218 + $0xb8] sm:$0xff] %vm861, %v1141
        %1191 = vst.msk [vmem:[%s218 + $0xc0] sm:$0xff] %vm861, %v1142
        %1192 = vst.msk [vmem:[%s218 + $0xc8] sm:$0xff] %vm861, %v1143
        %1193 = vst.msk [vmem:[%s218 + $0xd0] sm:$0xff] %vm861, %v1144
        %1194 = vst.msk [vmem:[%s218 + $0xd8] sm:$0xff] %vm861, %v1145
        %1195 = vst.msk [vmem:[%s218 + $0xe0] sm:$0xff] %vm861, %v1146
        %1196 = vst.msk [vmem:[%s218 + $0xe8] sm:$0xff] %vm861, %v1147
        %1197 = vst.msk [vmem:[%s218 + $0xf0] sm:$0xff] %vm861, %v1148
        %1198 = vst.msk [vmem:[%s218 + $0xf8] sm:$0xff] %vm861, %v1149
        %1199 = vst.msk [vmem:[%s218 + $0x100] sm:$0xff] %vm861, %v1150
        %1200 = vst.msk [vmem:[%s218 + $0x108] sm:$0xff] %vm861, %v1151
        %1201 = vst.msk [vmem:[%s218 + $0x110] sm:$0xff] %vm861, %v1152
        %1202 = vst.msk [vmem:[%s218 + $0x118] sm:$0xff] %vm861, %v1153
        %1203 = vst.msk [vmem:[%s218 + $0x120] sm:$0xff] %vm861, %v1154
        %1204 = vst.msk [vmem:[%s218 + $0x128] sm:$0xff] %vm861, %v1155
        %1205 = vst.msk [vmem:[%s218 + $0x130] sm:$0xff] %vm861, %v1156
        %1206 = vst.msk [vmem:[%s218 + $0x138] sm:$0xff] %vm861, %v1157
        %1207 = vst.msk [vmem:[%s218 + $0x140] sm:$0xff] %vm861, %v1158
        %1208 = vst.msk [vmem:[%s218 + $0x148] sm:$0xff] %vm861, %v1159
        %1209 = vst.msk [vmem:[%s218 + $0x150] sm:$0xff] %vm861, %v1160
        %1210 = vst.msk [vmem:[%s218 + $0x158] sm:$0xff] %vm861, %v1161
        %1211 = vst.msk [vmem:[%s218 + $0x160] sm:$0xff] %vm861, %v1162
        %1212 = vst.msk [vmem:[%s218 + $0x168] sm:$0xff] %vm861, %v1163
        %1213 = vst.msk [vmem:[%s218 + $0x170] sm:$0xff] %vm861, %v1164
        %1214 = vst.msk [vmem:[%s218 + $0x178] sm:$0xff] %vm861, %v1165
        %1215 = vst.msk [vmem:[%s218 + $0x180] sm:$0xff] %vm861, %v1166
      $region40: #{fc_discriminator_forward.7} parent=31 // pred_fallthru
        _
      %s1216 = smul.u32 49, %s18
      %p1217 = scmp.lt.s32.totalorder %s1216, 48
      %s1218 = scalar_select %p1217, %s1216, 48
      %s1219 = smul.addr %s1218, 8
      %s1220 = scalar_lea.vmem %s3, %s1219
      // Predicated region
      $region41: #{fc_discriminator_forward.7} parent=31 // pred_check
        %p1221 = pneg %p119
      $region42: #{fc_discriminator_forward.7} parent=31 // pred_check_branch
        %1223 = sbr.rel (%p1221) target = $region44
      $region43: #{fc_discriminator_forward.7} parent=31 // pred_region
        %s1224 = smul.u32 49, %s18
      $region44: #{fc_discriminator_forward.7} parent=31 // pred_fallthru
        _
      // Predicated region
      $region45: #{fc_discriminator_forward.7} parent=31 // pred_check
        %p1225 = pneg %p119
      $region46: #{fc_discriminator_forward.7} parent=31 // pred_check_branch
        %1227 = sbr.rel (%p1225) target = $region48
      $region47: #{fc_discriminator_forward.7} parent=31 // pred_region
        %s1228 = smul.u32 49, %s18
        %p1229 = scmp.lt.s32.totalorder %s1228, 48
        %s1230 = scalar_select %p1229, %s1228, 48
        %s1231 = smul.addr %s1230, 8
        %s1232 = scalar_lea.vmem %s3, %s1231
      $region48: #{fc_discriminator_forward.7} parent=31 // pred_fallthru
        _
    $region32: #{fc_discriminator_forward.7} parent=5 // pred_fallthru
      _
    %p1233 = scmp.le.s32.totalorder 2, %s9
    // Predicated region
    $region49: #{fc_discriminator_forward.7} parent=5 // pred_check
      %p1234 = pneg %p1233
    $region50: #{fc_discriminator_forward.7} parent=5 // pred_check_branch
      %1236 = sbr.rel (%p1234) target = $region52
    $region51: #{fc_discriminator_forward.7} parent=5 // pred_region
      %s1237 = ssub.s32 %s9, 2
    $region52: #{fc_discriminator_forward.7} parent=5 // pred_fallthru
      _
  $region6: #{fc_discriminator_forward.7} parent=0 // loop_footer
    %s13 = sadd.s32 1, %s9
  $region7: #{fc_discriminator_forward.7} parent=0 // loop_footer_branch
    %8 = sbr.rel target = $region3
  $region8: #{fc_discriminator_forward.7} parent=0 // loop_exit
    _

// kernel: fc_discriminator_forward.9
$region0: #{fc_discriminator_forward.9}
  #allocation0 [shape = 'u32[]', space=smem, size = 0x4, offset = 0x4, fixed_abs, tag = 'smem constant byte address 0x4 - core index']
  #allocation1 [shape = 'u32[144,128]{1,0:T(1,128)}', space=vmem, size = 0x12000, scoped, tag = 'internal scratch']
  %s0 = inlined_call_operand.vmem [shape: f32[2,7,7,64], index: 0, kind: input, shape index: {}]
  %s1 = inlined_call_operand.vmem [shape: f32[2,1,1,64], index: 1, kind: output, shape index: {}]
  %s2 = sld [smem:[#allocation0]]
  $region37: #{fc_discriminator_forward.9} parent=0
    _
  %s4 = ssub.s32 1, %s2
  %s5 = scalar_select 0, %s4, %s2
  loop: start=0, step=1, limit=4
  $region2: #{fc_discriminator_forward.9} parent=0 // loop_pre_header
    _
  $region3: #{fc_discriminator_forward.9} parent=0 // loop_header
    %s7 = sphi 0, %s11
    %p8 = scmp.ge.s32.totalorder %s7, 4
    %s14 = sphi 0, %s26
    %s15 = sphi 0, %s22
    %s16 = sphi 0, %s14
    %s17 = sphi 0, %s15
    %s18 = sphi 0, %s16
    %s19 = sphi 0, %s17
    %s31 = sphi 0, %s33
    %s34 = sphi 0, %s31
    %s35 = sphi 0, %s34
    %s51 = sphi 0, %s35
    %s59 = sphi 0, %s61
    %s62 = sphi 0, %s59
    %s63 = sphi 0, %s62
    %s79 = sphi 0, %s63
  $region4: #{fc_discriminator_forward.9} parent=0 // loop_header_branch
    %10 = sbr.rel (%p8) target = $region8
  $region5: #{fc_discriminator_forward.9} parent=0 // loop_body
    %s12 = ssub.s32 %s7, 1
    %s13 = ssub.s32 %s7, 2
    %s20 = sadd.s32 1, %s15
    %p21 = scmp.ge.s32.totalorder %s20, 1
    %s22 = scalar_select %p21, 0, %s20
    %s23 = sadd.s32 1, %s14
    %s24 = scalar_select %p21, %s23, %s14
    %p25 = scmp.ge.s32.totalorder %s24, 2
    %s26 = scalar_select %p25, 0, %s24
    %s27 = ssub.s32 %s14, %s26
    %s28 = ssub.s32 %s15, %s22
    %s29 = sor.u32 %s27, %s28
    %p30 = scmp.eq.s32.totalorder %s29, 0
    %s32 = sadd.s32 %s31, 1
    %s33 = scalar_select %p30, %s31, %s32
    %p36 = pneg %p30
    %p37 = scmp.eq.s32.totalorder %s7, 1
    %p38 = por %p36, %p37
    %p39 = scmp.ne.s32.totalorder %s31, %s34
    %p40 = scmp.eq.s32.totalorder %s7, 0
    %p41 = por %p39, %p40
    %p42 = scmp.ne.s32.totalorder %s31, %s34
    %p43 = scmp.eq.s32.totalorder %s12, 1
    %p44 = por %p42, %p43
    %p45 = scmp.ne.s32.totalorder %s34, %s35
    %p46 = scmp.eq.s32.totalorder %s12, 0
    %p47 = por %p45, %p46
    %p48 = scmp.ne.s32.totalorder %s34, %s35
    %p49 = scmp.eq.s32.totalorder %s13, 1
    %p50 = por %p48, %p49
    %p52 = scmp.ne.s32.totalorder %s35, %s51
    %p53 = scmp.eq.s32.totalorder %s13, 0
    %p54 = por %p52, %p53
    %s55 = ssub.s32 %s14, %s26
    %s56 = ssub.s32 %s15, %s22
    %s57 = sor.u32 %s55, %s56
    %p58 = scmp.eq.s32.totalorder %s57, 0
    %s60 = sadd.s32 %s59, 1
    %s61 = scalar_select %p58, %s59, %s60
    %p64 = pneg %p58
    %p65 = scmp.eq.s32.totalorder %s7, 1
    %p66 = por %p64, %p65
    %p67 = scmp.ne.s32.totalorder %s59, %s62
    %p68 = scmp.eq.s32.totalorder %s7, 0
    %p69 = por %p67, %p68
    %p70 = scmp.ne.s32.totalorder %s59, %s62
    %p71 = scmp.eq.s32.totalorder %s12, 1
    %p72 = por %p70, %p71
    %p73 = scmp.ne.s32.totalorder %s62, %s63
    %p74 = scmp.eq.s32.totalorder %s12, 0
    %p75 = por %p73, %p74
    %p76 = scmp.ne.s32.totalorder %s62, %s63
    %p77 = scmp.eq.s32.totalorder %s13, 1
    %p78 = por %p76, %p77
    %p80 = scmp.ne.s32.totalorder %s63, %s79
    %p81 = scmp.eq.s32.totalorder %s13, 0
    %p82 = por %p80, %p81
    %p83 = scmp.le.s32.totalorder 1, %s7
    %p84 = scmp.lt.s32.totalorder %s7, 3
    %p85 = pnand %p83, %p84
    %p86 = pneg %p85
    // Predicated region
    $region9: #{fc_discriminator_forward.9} parent=5 // pred_check
      _
    $region10: #{fc_discriminator_forward.9} parent=5 // pred_check_branch
      %88 = sbr.rel (%p85) target = $region12
    $region11: #{fc_discriminator_forward.9} parent=5 // pred_region
      %s89 = ssub.s32 %s7, 1
    $region12: #{fc_discriminator_forward.9} parent=5 // pred_fallthru
      _
    %p90 = scmp.lt.s32.totalorder %s7, 2
    // Predicated region
    $region13: #{fc_discriminator_forward.9} parent=5 // pred_check
      %p91 = pneg %p90
    $region14: #{fc_discriminator_forward.9} parent=5 // pred_check_branch
      %93 = sbr.rel (%p91) target = $region16
    $region15: #{fc_discriminator_forward.9} parent=5 // pred_region
      // Predicated region
      $region17: #{fc_discriminator_forward.9} parent=15 // pred_check
        %p94 = pneg %p41
      $region18: #{fc_discriminator_forward.9} parent=15 // pred_check_branch
        %96 = sbr.rel (%p94) target = $region20
      $region19: #{fc_discriminator_forward.9} parent=15 // pred_region
        %s97 = smul.u32 7, %s15
        %p98 = scmp.lt.s32.totalorder %s14, 1
        %s99 = scalar_select %p98, %s14, 1
        %p100 = scmp.lt.s32.totalorder %s97, 6
        %s101 = scalar_select %p100, %s97, 6
        %s102 = smul.addr %s99, 7
        %s103 = sadd.s32 %s101, %s102
        %s104 = smul.addr %s103, 8
        %s105 = scalar_lea.vmem %s0, %s104
        %s106 = smul.u32 7, %s15
      $region20: #{fc_discriminator_forward.9} parent=15 // pred_fallthru
        _
    $region16: #{fc_discriminator_forward.9} parent=5 // pred_fallthru
      _
    %p107 = scmp.le.s32.totalorder 1, %s7
    %p108 = scmp.lt.s32.totalorder %s7, 3
    %p109 = pnand %p107, %p108
    %p110 = pneg %p109
    // Predicated region
    $region21: #{fc_discriminator_forward.9} parent=5 // pred_check
      _
    $region22: #{fc_discriminator_forward.9} parent=5 // pred_check_branch
      %112 = sbr.rel (%p109) target = $region24
    $region23: #{fc_discriminator_forward.9} parent=5 // pred_region
      %s113 = ssub.s32 %s7, 1
      %s114 = smul.u32 7, %s17
      %p115 = scmp.lt.s32.totalorder %s16, 1
      %s116 = scalar_select %p115, %s16, 1
      %p117 = scmp.lt.s32.totalorder %s114, 6
      %s118 = scalar_select %p117, %s114, 6
      %s119 = smul.addr %s116, 7
      %s120 = sadd.s32 %s118, %s119
      %s121 = smul.addr %s120, 8
      %s122 = scalar_lea.vmem %s0, %s121
      %p123 = pneg %p47
      %p124 = pneg %p44
      %p125 = pneg %p75
      %p126 = pneg %p72
      %p127 = scmp.lt.s32.totalorder %s16, 1
      %s128 = scalar_select %p127, %s16, 1
      %p129 = scmp.lt.s32.totalorder %s17, 0
      %s130 = scalar_select %p129, %s17, 0
      %s131 = sadd.s32 %s130, %s128
      %s132 = scalar_lea.vmem %s1, %s131
      %s133 = smul.u32 7, %s17
      %p134 = scmp.lt.s32.totalorder %s16, 1
      %s135 = scalar_select %p134, %s16, 1
      %p136 = scmp.lt.s32.totalorder %s133, 6
      %s137 = scalar_select %p136, %s133, 6
      %s138 = smul.addr %s135, 7
      %s139 = sadd.s32 %s137, %s138
      %s140 = smul.addr %s139, 8
      %s141 = scalar_lea.vmem %s0, %s140
      %s142 = smul.u32 7, %s17
      %p143 = scmp.lt.s32.totalorder %s16, 1
      %s144 = scalar_select %p143, %s16, 1
      %p145 = scmp.lt.s32.totalorder %s17, 0
      %s146 = scalar_select %p145, %s17, 0
      %s147 = sadd.s32 %s146, %s144
      %s148 = scalar_lea.vmem %s1, %s147
      %v149 = vld [vmem:[%s141] sm:$0x7f]
      %v150 = vld [vmem:[%s141 + $0x8] sm:$0x7f]
      %v151 = vld [vmem:[%s141 + $0x10] sm:$0x7f]
      %v152 = vld [vmem:[%s141 + $0x18] sm:$0x7f]
      %v153 = vld [vmem:[%s141 + $0x20] sm:$0x7f]
      %v154 = vld [vmem:[%s141 + $0x28] sm:$0x7f]
      %v155 = vld [vmem:[%s141 + $0x30] sm:$0x7f]
      %vm156 = vcmask 522240
      %v157 = vsel %vm156, %v149, 0.0
      %v158 = vsel %vm156, %v150, 0.0
      %v159 = vadd.f32 %v157, %v158
      %v160 = vsel %vm156, %v151, 0.0
      %v161 = vadd.f32 %v159, %v160
      %v162 = vsel %vm156, %v152, 0.0
      %v163 = vadd.f32 %v161, %v162
      %v164 = vsel %vm156, %v153, 0.0
      %v165 = vadd.f32 %v163, %v164
      %v166 = vsel %vm156, %v154, 0.0
      %v167 = vadd.f32 %v165, %v166
      %v168 = vsel %vm156, %v155, 0.0
      %v169 = vadd.f32 %v167, %v168
      %v170 = vrot.slane %v169, 4
      %v171 = vadd.f32 %v169, %v170
      %v172 = vrot.slane %v171, 2
      %v173 = vadd.f32 %v171, %v172
      %v174 = vrot.slane %v173, 1
      %v175 = vadd.f32 %v173, %v174
      %v176 = vmul.f32 %v175, 0.020408163
      %vm177 = vcmask 516096
      %178 = vst.msk [vmem:[%s148] sm:$0x1] %vm177, %v176
      %p179 = scmp.lt.s32.totalorder %s16, 1
      %s180 = scalar_select %p179, %s16, 1
      %p181 = scmp.lt.s32.totalorder %s17, 0
      %s182 = scalar_select %p181, %s17, 0
      %s183 = sadd.s32 %s182, %s180
      %s184 = scalar_lea.vmem %s1, %s183
      // Predicated region
      $region25: #{fc_discriminator_forward.9} parent=23 // pred_check
        %p185 = pneg %p72
      $region26: #{fc_discriminator_forward.9} parent=23 // pred_check_branch
        %187 = sbr.rel (%p185) target = $region28
      $region27: #{fc_discriminator_forward.9} parent=23 // pred_region
        _
      $region28: #{fc_discriminator_forward.9} parent=23 // pred_fallthru
        _
    $region24: #{fc_discriminator_forward.9} parent=5 // pred_fallthru
      _
    %p188 = scmp.le.s32.totalorder 2, %s7
    // Predicated region
    $region29: #{fc_discriminator_forward.9} parent=5 // pred_check
      %p189 = pneg %p188
    $region30: #{fc_discriminator_forward.9} parent=5 // pred_check_branch
      %191 = sbr.rel (%p189) target = $region32
    $region31: #{fc_discriminator_forward.9} parent=5 // pred_region
      %s192 = ssub.s32 %s7, 2
      // Predicated region
      $region33: #{fc_discriminator_forward.9} parent=31 // pred_check
        %p193 = pneg %p78
      $region34: #{fc_discriminator_forward.9} parent=31 // pred_check_branch
        %195 = sbr.rel (%p193) target = $region36
      $region35: #{fc_discriminator_forward.9} parent=31 // pred_region
        %p196 = scmp.lt.s32.totalorder %s18, 1
        %s197 = scalar_select %p196, %s18, 1
        %p198 = scmp.lt.s32.totalorder %s19, 0
        %s199 = scalar_select %p198, %s19, 0
        %s200 = sadd.s32 %s199, %s197
        %s201 = scalar_lea.vmem %s1, %s200
      $region36: #{fc_discriminator_forward.9} parent=31 // pred_fallthru
        _
    $region32: #{fc_discriminator_forward.9} parent=5 // pred_fallthru
      _
  $region6: #{fc_discriminator_forward.9} parent=0 // loop_footer
    %s11 = sadd.s32 1, %s7
  $region7: #{fc_discriminator_forward.9} parent=0 // loop_footer_branch
    %6 = sbr.rel target = $region3
  $region8: #{fc_discriminator_forward.9} parent=0 // loop_exit
    _

// kernel: fc_discriminator_forward.8
$region0: #{fc_discriminator_forward.8}
  #allocation0 [shape = 'u32[]', space=smem, size = 0x4, offset = 0x4, fixed_abs, tag = 'smem constant byte address 0x4 - core index']
  #allocation1 [shape = 'u32[144,128]{1,0:T(1,128)}', space=vmem, size = 0x12000, scoped, tag = 'internal scratch']
  #allocation2 [shape = 'f32[104,64]{1,0:T(8,128)}', space=vmem, size = 0xd000, scoped, tag = 'scratch operand']
  %s0 = inlined_call_operand.vmem [shape: bf16[9,104,32], index: 0, kind: input, shape index: {}]
  %s1 = inlined_call_operand.vmem [shape: bf16[9,32,64], index: 1, kind: input, shape index: {}]
  %s2 = inlined_call_operand.vmem [shape: f32[1,64], index: 2, kind: input, shape index: {}]
  %s3 = inlined_call_operand.vmem [shape: f32[104,64], index: 3, kind: output, shape index: {}]
  %s4 = sld [smem:[#allocation0]]
  $region53: #{fc_discriminator_forward.8} parent=0
    _
  %s6 = ssub.s32 1, %s4
  %s7 = scalar_select 0, %s6, %s4
  loop: start=0, step=1, limit=11
  $region2: #{fc_discriminator_forward.8} parent=0 // loop_pre_header
    _
  $region3: #{fc_discriminator_forward.8} parent=0 // loop_header
    %s9 = sphi 0, %s13
    %p10 = scmp.ge.s32.totalorder %s9, 11
    %s16 = sphi 0, %s28
    %s17 = sphi 0, %s24
    %s18 = sphi 0, %s16
    %s19 = sphi 0, %s17
    %s20 = sphi 0, %s18
    %s21 = sphi 0, %s19
    %s33 = sphi 0, %s35
    %s36 = sphi 0, %s33
    %s37 = sphi 0, %s36
    %s53 = sphi 0, %s37
    %s59 = sphi 0, %s61
    %s62 = sphi 0, %s59
    %s63 = sphi 0, %s62
    %s79 = sphi 0, %s63
    %s83 = sphi 0, %s83
    %s85 = sphi 0, %s83
    %s86 = sphi 0, %s85
    %s100 = sphi 0, %s86
    %s106 = sphi 0, %s108
    %s109 = sphi 0, %s106
    %s110 = sphi 0, %s109
    %s126 = sphi 0, %s110
  $region4: #{fc_discriminator_forward.8} parent=0 // loop_header_branch
    %12 = sbr.rel (%p10) target = $region8
  $region5: #{fc_discriminator_forward.8} parent=0 // loop_body
    %s14 = ssub.s32 %s9, 1
    %s15 = ssub.s32 %s9, 2
    %s22 = sadd.s32 1, %s17
    %p23 = scmp.ge.s32.totalorder %s22, 9
    %s24 = scalar_select %p23, 0, %s22
    %s25 = sadd.s32 1, %s16
    %s26 = scalar_select %p23, %s25, %s16
    %p27 = scmp.ge.s32.totalorder %s26, 1
    %s28 = scalar_select %p27, 0, %s26
    %s29 = ssub.s32 %s17, %s24
    %s30 = ssub.s32 %s16, %s28
    %s31 = sor.u32 %s29, %s30
    %p32 = scmp.eq.s32.totalorder %s31, 0
    %s34 = sadd.s32 %s33, 1
    %s35 = scalar_select %p32, %s33, %s34
    %p38 = pneg %p32
    %p39 = scmp.eq.s32.totalorder %s9, 8
    %p40 = por %p38, %p39
    %p41 = scmp.ne.s32.totalorder %s33, %s36
    %p42 = scmp.eq.s32.totalorder %s9, 0
    %p43 = por %p41, %p42
    %p44 = scmp.ne.s32.totalorder %s33, %s36
    %p45 = scmp.eq.s32.totalorder %s14, 8
    %p46 = por %p44, %p45
    %p47 = scmp.ne.s32.totalorder %s36, %s37
    %p48 = scmp.eq.s32.totalorder %s14, 0
    %p49 = por %p47, %p48
    %p50 = scmp.ne.s32.totalorder %s36, %s37
    %p51 = scmp.eq.s32.totalorder %s15, 8
    %p52 = por %p50, %p51
    %p54 = scmp.ne.s32.totalorder %s37, %s53
    %p55 = scmp.eq.s32.totalorder %s15, 0
    %p56 = por %p54, %p55
    %s57 = ssub.s32 %s17, %s24
    %p58 = scmp.eq.s32.totalorder %s57, 0
    %s60 = sadd.s32 %s59, 1
    %s61 = scalar_select %p58, %s59, %s60
    %p64 = pneg %p58
    %p65 = scmp.eq.s32.totalorder %s9, 8
    %p66 = por %p64, %p65
    %p67 = scmp.ne.s32.totalorder %s59, %s62
    %p68 = scmp.eq.s32.totalorder %s9, 0
    %p69 = por %p67, %p68
    %p70 = scmp.ne.s32.totalorder %s59, %s62
    %p71 = scmp.eq.s32.totalorder %s14, 8
    %p72 = por %p70, %p71
    %p73 = scmp.ne.s32.totalorder %s62, %s63
    %p74 = scmp.eq.s32.totalorder %s14, 0
    %p75 = por %p73, %p74
    %p76 = scmp.ne.s32.totalorder %s62, %s63
    %p77 = scmp.eq.s32.totalorder %s15, 8
    %p78 = por %p76, %p77
    %p80 = scmp.ne.s32.totalorder %s63, %s79
    %p81 = scmp.eq.s32.totalorder %s15, 0
    %p82 = por %p80, %p81
    %s84 = sadd.s32 %s83, 1
    %p87 = scmp.eq.s32.totalorder %s9, 8
    %p88 = scmp.ne.s32.totalorder %s83, %s85
    %p89 = scmp.eq.s32.totalorder %s9, 0
    %p90 = por %p88, %p89
    %p91 = scmp.ne.s32.totalorder %s83, %s85
    %p92 = scmp.eq.s32.totalorder %s14, 8
    %p93 = por %p91, %p92
    %p94 = scmp.ne.s32.totalorder %s85, %s86
    %p95 = scmp.eq.s32.totalorder %s14, 0
    %p96 = por %p94, %p95
    %p97 = scmp.ne.s32.totalorder %s85, %s86
    %p98 = scmp.eq.s32.totalorder %s15, 8
    %p99 = por %p97, %p98
    %p101 = scmp.ne.s32.totalorder %s86, %s100
    %p102 = scmp.eq.s32.totalorder %s15, 0
    %p103 = por %p101, %p102
    %s104 = ssub.s32 %s16, %s28
    %p105 = scmp.eq.s32.totalorder %s104, 0
    %s107 = sadd.s32 %s106, 1
    %s108 = scalar_select %p105, %s106, %s107
    %p111 = pneg %p105
    %p112 = scmp.eq.s32.totalorder %s9, 8
    %p113 = por %p111, %p112
    %p114 = scmp.ne.s32.totalorder %s106, %s109
    %p115 = scmp.eq.s32.totalorder %s9, 0
    %p116 = por %p114, %p115
    %p117 = scmp.ne.s32.totalorder %s106, %s109
    %p118 = scmp.eq.s32.totalorder %s14, 8
    %p119 = por %p117, %p118
    %p120 = scmp.ne.s32.totalorder %s109, %s110
    %p121 = scmp.eq.s32.totalorder %s14, 0
    %p122 = por %p120, %p121
    %p123 = scmp.ne.s32.totalorder %s109, %s110
    %p124 = scmp.eq.s32.totalorder %s15, 8
    %p125 = por %p123, %p124
    %p127 = scmp.ne.s32.totalorder %s110, %s126
    %p128 = scmp.eq.s32.totalorder %s15, 0
    %p129 = por %p127, %p128
    %p130 = scmp.le.s32.totalorder 1, %s9
    %p131 = scmp.lt.s32.totalorder %s9, 10
    %p132 = pnand %p130, %p131
    %p133 = pneg %p132
    // Predicated region
    $region9: #{fc_discriminator_forward.8} parent=5 // pred_check
      _
    $region10: #{fc_discriminator_forward.8} parent=5 // pred_check_branch
      %135 = sbr.rel (%p132) target = $region12
    $region11: #{fc_discriminator_forward.8} parent=5 // pred_region
      %s136 = ssub.s32 %s9, 1
      // Predicated region
      $region13: #{fc_discriminator_forward.8} parent=11 // pred_check
        %p137 = pneg %p96
      $region14: #{fc_discriminator_forward.8} parent=11 // pred_check_branch
        %139 = sbr.rel (%p137) target = $region16
      $region15: #{fc_discriminator_forward.8} parent=11 // pred_region
        _
      $region16: #{fc_discriminator_forward.8} parent=11 // pred_fallthru
        _
    $region12: #{fc_discriminator_forward.8} parent=5 // pred_fallthru
      _
    %p140 = scmp.lt.s32.totalorder %s9, 9
    // Predicated region
    $region17: #{fc_discriminator_forward.8} parent=5 // pred_check
      %p141 = pneg %p140
    $region18: #{fc_discriminator_forward.8} parent=5 // pred_check_branch
      %143 = sbr.rel (%p141) target = $region20
    $region19: #{fc_discriminator_forward.8} parent=5 // pred_region
      // Predicated region
      $region21: #{fc_discriminator_forward.8} parent=19 // pred_check
        %p144 = pneg %p43
      $region22: #{fc_discriminator_forward.8} parent=19 // pred_check_branch
        %146 = sbr.rel (%p144) target = $region24
      $region23: #{fc_discriminator_forward.8} parent=19 // pred_region
        %s147 = smul.u32 13, %s16
        %p148 = scmp.lt.s32.totalorder %s17, 8
        %s149 = scalar_select %p148, %s17, 8
        %p150 = scmp.lt.s32.totalorder %s147, 12
        %s151 = scalar_select %p150, %s147, 12
        %s152 = smul.addr %s149, 13
        %s153 = sadd.s32 %s151, %s152
        %s154 = smul.addr %s153, 4
        %s155 = scalar_lea.vmem %s0, %s154
        %s156 = smul.u32 13, %s16
      $region24: #{fc_discriminator_forward.8} parent=19 // pred_fallthru
        _
      // Predicated region
      $region25: #{fc_discriminator_forward.8} parent=19 // pred_check
        %p157 = pneg %p69
      $region26: #{fc_discriminator_forward.8} parent=19 // pred_check_branch
        %159 = sbr.rel (%p157) target = $region28
      $region27: #{fc_discriminator_forward.8} parent=19 // pred_region
        %p160 = scmp.lt.s32.totalorder %s17, 8
        %s161 = scalar_select %p160, %s17, 8
        %s162 = smul.addr %s161, 4
        %s163 = smul.addr %s162, 4
        %s164 = scalar_lea.vmem %s1, %s163
      $region28: #{fc_discriminator_forward.8} parent=19 // pred_fallthru
        _
    $region20: #{fc_discriminator_forward.8} parent=5 // pred_fallthru
      _
    %p165 = scmp.le.s32.totalorder 1, %s9
    %p166 = scmp.lt.s32.totalorder %s9, 10
    %p167 = pnand %p165, %p166
    %p168 = pneg %p167
    // Predicated region
    $region29: #{fc_discriminator_forward.8} parent=5 // pred_check
      _
    $region30: #{fc_discriminator_forward.8} parent=5 // pred_check_branch
      %170 = sbr.rel (%p167) target = $region32
    $region31: #{fc_discriminator_forward.8} parent=5 // pred_region
      %s171 = ssub.s32 %s9, 1
      %s172 = smul.u32 13, %s18
      %p173 = scmp.lt.s32.totalorder %s19, 8
      %s174 = scalar_select %p173, %s19, 8
      %p175 = scmp.lt.s32.totalorder %s172, 12
      %s176 = scalar_select %p175, %s172, 12
      %s177 = smul.addr %s174, 13
      %s178 = sadd.s32 %s176, %s177
      %s179 = smul.addr %s178, 4
      %s180 = scalar_lea.vmem %s0, %s179
      %p181 = pneg %p49
      %p182 = pneg %p46
      %p183 = scmp.lt.s32.totalorder %s19, 8
      %s184 = scalar_select %p183, %s19, 8
      %s185 = smul.addr %s184, 4
      %s186 = smul.addr %s185, 4
      %s187 = scalar_lea.vmem %s1, %s186
      %p188 = pneg %p75
      %p189 = pneg %p72
      %p190 = pneg %p96
      %p191 = pneg %p93
      %p192 = pneg %p122
      %p193 = pneg %p119
      %s194 = smul.u32 13, %s18
      %p195 = scmp.lt.s32.totalorder %s194, 12
      %s196 = scalar_select %p195, %s194, 12
      %s197 = smul.addr %s196, 8
      %s198 = scalar_lea.vmem %s3, %s197
      %s199 = smul.u32 13, %s18
      %p200 = scmp.lt.s32.totalorder %s19, 8
      %s201 = scalar_select %p200, %s19, 8
      %p202 = scmp.lt.s32.totalorder %s199, 12
      %s203 = scalar_select %p202, %s199, 12
      %s204 = smul.addr %s201, 13
      %s205 = sadd.s32 %s203, %s204
      %s206 = smul.addr %s205, 4
      %s207 = scalar_lea.vmem %s0, %s206
      %s208 = smul.u32 13, %s18
      %p209 = scmp.lt.s32.totalorder %s19, 8
      %s210 = scalar_select %p209, %s19, 8
      %s211 = smul.addr %s210, 4
      %s212 = smul.addr %s211, 4
      %s213 = scalar_lea.vmem %s1, %s212
      %s214 = smul.u32 13, %s18
      %p215 = scmp.lt.s32.totalorder %s214, 12
      %s216 = scalar_select %p215, %s214, 12
      %s217 = smul.addr %s216, 8
      %s218 = scalar_lea.vmem %s3, %s217
      %s219 = smul.u32 13, %s18
      %p221 = scmp.eq.s32.totalorder %s19, 0
      // Predicated region
      $region33: #{fc_discriminator_forward.8} parent=31 // pred_check
        %p222 = pneg %p221
      $region34: #{fc_discriminator_forward.8} parent=31 // pred_check_branch
        %224 = sbr.rel (%p222) target = $region36
      $region35: #{fc_discriminator_forward.8} parent=31 // pred_region
        %vm225 = vcmask 523264
        %226 = vst.msk [vmem:[#allocation2] sm:$0xff] %vm225, 0.0
        %227 = vst.msk [vmem:[#allocation2 + $0x8] sm:$0xff] %vm225, 0.0
        %228 = vst.msk [vmem:[#allocation2 + $0x10] sm:$0xff] %vm225, 0.0
        %229 = vst.msk [vmem:[#allocation2 + $0x18] sm:$0xff] %vm225, 0.0
        %230 = vst.msk [vmem:[#allocation2 + $0x20] sm:$0xff] %vm225, 0.0
        %231 = vst.msk [vmem:[#allocation2 + $0x28] sm:$0xff] %vm225, 0.0
        %232 = vst.msk [vmem:[#allocation2 + $0x30] sm:$0xff] %vm225, 0.0
        %233 = vst.msk [vmem:[#allocation2 + $0x38] sm:$0xff] %vm225, 0.0
        %234 = vst.msk [vmem:[#allocation2 + $0x40] sm:$0xff] %vm225, 0.0
        %235 = vst.msk [vmem:[#allocation2 + $0x48] sm:$0xff] %vm225, 0.0
        %236 = vst.msk [vmem:[#allocation2 + $0x50] sm:$0xff] %vm225, 0.0
        %237 = vst.msk [vmem:[#allocation2 + $0x58] sm:$0xff] %vm225, 0.0
        %238 = vst.msk [vmem:[#allocation2 + $0x60] sm:$0xff] %vm225, 0.0
      $region36: #{fc_discriminator_forward.8} parent=31 // pred_fallthru
        _
      %v239 = vld [vmem:[#allocation2] sm:$0xff]
      %v240 = vld [vmem:[#allocation2 + $0x8] sm:$0xff]
      %v241 = vld [vmem:[#allocation2 + $0x10] sm:$0xff]
      %v242 = vld [vmem:[#allocation2 + $0x18] sm:$0xff]
      %v243 = vld [vmem:[#allocation2 + $0x20] sm:$0xff]
      %v244 = vld [vmem:[#allocation2 + $0x28] sm:$0xff]
      %v245 = vld [vmem:[#allocation2 + $0x30] sm:$0xff]
      %v246 = vld [vmem:[#allocation2 + $0x38] sm:$0xff]
      %v247 = vld [vmem:[#allocation2 + $0x40] sm:$0xff]
      %v248 = vld [vmem:[#allocation2 + $0x48] sm:$0xff]
      %v249 = vld [vmem:[#allocation2 + $0x50] sm:$0xff]
      %v250 = vld [vmem:[#allocation2 + $0x58] sm:$0xff]
      %v251 = vld [vmem:[#allocation2 + $0x60] sm:$0xff]
      %v252 = vld [vmem:[%s207] sm:$0xf]
      %v253 = vld [vmem:[%s207 + $0x4] sm:$0xf]
      %v254 = vld [vmem:[%s207 + $0x8] sm:$0xf]
      %v255 = vld [vmem:[%s207 + $0xc] sm:$0xf]
      %v256 = vld [vmem:[%s207 + $0x10] sm:$0xf]
      %v257 = vld [vmem:[%s207 + $0x14] sm:$0xf]
      %v258 = vld [vmem:[%s207 + $0x18] sm:$0xf]
      %v259 = vld [vmem:[%s207 + $0x1c] sm:$0xf]
      %v260 = vld [vmem:[%s207 + $0x20] sm:$0xf]
      %v261 = vld [vmem:[%s207 + $0x24] sm:$0xf]
      %v262 = vld [vmem:[%s207 + $0x28] sm:$0xf]
      %v263 = vld [vmem:[%s207 + $0x2c] sm:$0xf]
      %v264 = vld [vmem:[%s207 + $0x30] sm:$0xf]
      %v265 = vld [vmem:[%s213] sm:$0xf]
      %v266 = vld [vmem:[%s213 + $0x4] sm:$0xf]
      %v267 = vld [vmem:[%s213 + $0x8] sm:$0xf]
      %v268 = vld [vmem:[%s213 + $0xc] sm:$0xf]
      %v282 = vunpack.c.l.b16 %v252
      %v283 = vunpack.c.l.b16 %v253
      %v284 = vunpack.c.l.b16 %v254
      %v285 = vunpack.c.l.b16 %v255
      %v286 = vunpack.c.l.b16 %v256
      %v287 = vunpack.c.l.b16 %v257
      %v288 = vunpack.c.l.b16 %v258
      %v289 = vunpack.c.l.b16 %v259
      %v290 = vunpack.c.l.b16 %v260
      %v291 = vunpack.c.l.b16 %v261
      %v292 = vunpack.c.l.b16 %v262
      %v293 = vunpack.c.l.b16 %v263
      %v294 = vunpack.c.l.b16 %v264
      %v295 = vpack.c.b16 %v283, %v282
      %v296 = vpack.c.b16 %v285, %v284
      %v297 = vpack.c.b16 %v287, %v286
      %v298 = vpack.c.b16 %v289, %v288
      %v299 = vpack.c.b16 %v291, %v290
      %v300 = vpack.c.b16 %v293, %v292
      %v301 = vpack.c.b16 %v294, %v294
      %v306 = vunpack.c.l.b16 %v265
      %v307 = vunpack.c.l.b16 %v266
      %v308 = vunpack.c.l.b16 %v267
      %v309 = vunpack.c.l.b16 %v268
      %v310 = vpack.c.b16 %v307, %v306
      %v311 = vpack.c.b16 %v309, %v308
      %vm314 = vcmask 261120
      %v316 = vsel %vm314, %v295, 0
      %v319 = vsel %vm314, %v296, 0
      %v322 = vsel %vm314, %v297, 0
      %v325 = vsel %vm314, %v298, 0
      %v328 = vsel %vm314, %v299, 0
      %v331 = vsel %vm314, %v300, 0
      %v334 = vsel %vm314, %v301, 0
      %336 = vmatprep.subr.bf16.mxu0 0
      %337 = vmatpush1.bf16.msra.mxu0 %v310
      %338 = vmatprep.subr.bf16.mxu0 0
      %339 = vmatpush1.bf16.msra.mxu0 %v311
      %340 = vmatprep.subr.bf16.mxu0 0
      %341 = vmatpush1.bf16.msra.mxu0 0
      %342 = vmatprep.subr.bf16.mxu0 0
      %343 = vmatpush1.bf16.msra.mxu0 0
      %344 = vmatprep.subr.bf16.mxu0 0
      %345 = vmatpush1.bf16.msra.mxu0 0
      %346 = vmatprep.subr.bf16.mxu0 0
      %347 = vmatpush1.bf16.msra.mxu0 0
      %348 = vmatprep.subr.bf16.mxu0 0
      %349 = vmatpush1.bf16.msra.mxu0 0
      %350 = vmatprep.subr.bf16.mxu0 0
      %351 = vmatpush1.bf16.msra.mxu0 0
      %352 = vmatprep.subr.bf16.mxu0 0
      %353 = vmatpush1.bf16.msra.mxu0 0
      %354 = vmatprep.subr.bf16.mxu0 0
      %355 = vmatpush1.bf16.msra.mxu0 0
      %356 = vmatprep.subr.bf16.mxu0 0
      %357 = vmatpush1.bf16.msra.mxu0 0
      %358 = vmatprep.subr.bf16.mxu0 0
      %359 = vmatpush1.bf16.msra.mxu0 0
      %360 = vmatprep.subr.bf16.mxu0 0
      %361 = vmatpush1.bf16.msra.mxu0 0
      %362 = vmatprep.subr.bf16.mxu0 0
      %363 = vmatpush1.bf16.msra.mxu0 0
      %364 = vmatprep.subr.bf16.mxu0 0
      %365 = vmatpush1.bf16.msra.mxu0 0
      %366 = vmatprep.subr.bf16.mxu0 0
      %367 = vmatpush1.bf16.msra.mxu0 0
      %368 = vmatprep.mubr.bf16.mxu0 0
      %369 = vmatmul.mubr.bf16.gmra.mrb[0].mxu0 %v316
      %v370 = vpop.f32.mrb[0].mxu0
      %v371 = vadd.f32 0.0, %v370
      %v372 = vpop.f32.mrb[0].mxu0
      %v373 = vpop.f32.mrb[0].mxu0
      %v374 = vadd.f32 0.0, %v373
      %v375 = vpop.f32.mrb[0].mxu0
      %376 = vmatprep.mubr.bf16.mxu0 0
      %377 = vmatmul.mubr.bf16.gmra.mrb[0].mxu0 %v319
      %v378 = vpop.f32.mrb[0].mxu0
      %v379 = vadd.f32 0.0, %v378
      %v380 = vpop.f32.mrb[0].mxu0
      %v381 = vpop.f32.mrb[0].mxu0
      %v382 = vadd.f32 0.0, %v381
      %v383 = vpop.f32.mrb[0].mxu0
      %384 = vmatprep.mubr.bf16.mxu0 0
      %385 = vmatmul.mubr.bf16.gmra.mrb[0].mxu0 %v322
      %v386 = vpop.f32.mrb[0].mxu0
      %v387 = vadd.f32 0.0, %v386
      %v388 = vpop.f32.mrb[0].mxu0
      %v389 = vpop.f32.mrb[0].mxu0
      %v390 = vadd.f32 0.0, %v389
      %v391 = vpop.f32.mrb[0].mxu0
      %392 = vmatprep.mubr.bf16.mxu0 0
      %393 = vmatmul.mubr.bf16.gmra.mrb[0].mxu0 %v325
      %v394 = vpop.f32.mrb[0].mxu0
      %v395 = vadd.f32 0.0, %v394
      %v396 = vpop.f32.mrb[0].mxu0
      %v397 = vpop.f32.mrb[0].mxu0
      %v398 = vadd.f32 0.0, %v397
      %v399 = vpop.f32.mrb[0].mxu0
      %400 = vmatprep.mubr.bf16.mxu0 0
      %401 = vmatmul.mubr.bf16.gmra.mrb[0].mxu0 %v328
      %v402 = vpop.f32.mrb[0].mxu0
      %v403 = vadd.f32 0.0, %v402
      %v404 = vpop.f32.mrb[0].mxu0
      %v405 = vpop.f32.mrb[0].mxu0
      %v406 = vadd.f32 0.0, %v405
      %v407 = vpop.f32.mrb[0].mxu0
      %408 = vmatprep.mubr.bf16.mxu0 0
      %409 = vmatmul.mubr.bf16.gmra.mrb[0].mxu0 %v331
      %v410 = vpop.f32.mrb[0].mxu0
      %v411 = vadd.f32 0.0, %v410
      %v412 = vpop.f32.mrb[0].mxu0
      %v413 = vpop.f32.mrb[0].mxu0
      %v414 = vadd.f32 0.0, %v413
      %v415 = vpop.f32.mrb[0].mxu0
      %416 = vmatprep.mubr.bf16.mxu0 0
      %417 = vmatmul.mubr.bf16.gmra.mrb[0].mxu0 %v334
      %v418 = vpop.f32.mrb[0].mxu0
      %v419 = vadd.f32 0.0, %v418
      %v420 = vpop.f32.mrb[0].mxu0
      %v421 = vpop.f32.mrb[0].mxu0
      %v422 = vpop.f32.mrb[0].mxu0
      %423 = vdwg.mxu0
      %v424 = vadd.f32 %v239, %v371
      %v425 = vadd.f32 %v240, %v374
      %v426 = vadd.f32 %v241, %v379
      %v427 = vadd.f32 %v242, %v382
      %v428 = vadd.f32 %v243, %v387
      %v429 = vadd.f32 %v244, %v390
      %v430 = vadd.f32 %v245, %v395
      %v431 = vadd.f32 %v246, %v398
      %v432 = vadd.f32 %v247, %v403
      %v433 = vadd.f32 %v248, %v406
      %v434 = vadd.f32 %v249, %v411
      %v435 = vadd.f32 %v250, %v414
      %v436 = vadd.f32 %v251, %v419
      %vm437 = vcmask 523264
      %438 = vst.msk [vmem:[#allocation2] sm:$0xff] %vm437, %v424
      %439 = vst.msk [vmem:[#allocation2 + $0x8] sm:$0xff] %vm437, %v425
      %440 = vst.msk [vmem:[#allocation2 + $0x10] sm:$0xff] %vm437, %v426
      %441 = vst.msk [vmem:[#allocation2 + $0x18] sm:$0xff] %vm437, %v427
      %442 = vst.msk [vmem:[#allocation2 + $0x20] sm:$0xff] %vm437, %v428
      %443 = vst.msk [vmem:[#allocation2 + $0x28] sm:$0xff] %vm437, %v429
      %444 = vst.msk [vmem:[#allocation2 + $0x30] sm:$0xff] %vm437, %v430
      %445 = vst.msk [vmem:[#allocation2 + $0x38] sm:$0xff] %vm437, %v431
      %446 = vst.msk [vmem:[#allocation2 + $0x40] sm:$0xff] %vm437, %v432
      %447 = vst.msk [vmem:[#allocation2 + $0x48] sm:$0xff] %vm437, %v433
      %448 = vst.msk [vmem:[#allocation2 + $0x50] sm:$0xff] %vm437, %v434
      %449 = vst.msk [vmem:[#allocation2 + $0x58] sm:$0xff] %vm437, %v435
      %450 = vst.msk [vmem:[#allocation2 + $0x60] sm:$0xff] %vm437, %v436
      %p451 = scmp.eq.s32.totalorder %s19, 8
      // Predicated region
      $region37: #{fc_discriminator_forward.8} parent=31 // pred_check
        %p452 = pneg %p451
      $region38: #{fc_discriminator_forward.8} parent=31 // pred_check_branch
        %454 = sbr.rel (%p452) target = $region40
      $region39: #{fc_discriminator_forward.8} parent=31 // pred_region
        %v455 = vld [vmem:[#allocation2] sm:$0xff]
        %v456 = vld [vmem:[#allocation2 + $0x8] sm:$0xff]
        %v457 = vld [vmem:[#allocation2 + $0x10] sm:$0xff]
        %v458 = vld [vmem:[#allocation2 + $0x18] sm:$0xff]
        %v459 = vld [vmem:[#allocation2 + $0x20] sm:$0xff]
        %v460 = vld [vmem:[#allocation2 + $0x28] sm:$0xff]
        %v461 = vld [vmem:[#allocation2 + $0x30] sm:$0xff]
        %v462 = vld [vmem:[#allocation2 + $0x38] sm:$0xff]
        %v463 = vld [vmem:[#allocation2 + $0x40] sm:$0xff]
        %v464 = vld [vmem:[#allocation2 + $0x48] sm:$0xff]
        %v465 = vld [vmem:[#allocation2 + $0x50] sm:$0xff]
        %v466 = vld [vmem:[#allocation2 + $0x58] sm:$0xff]
        %v467 = vld [vmem:[#allocation2 + $0x60] sm:$0xff]
        %v468 = vld [vmem:[%s2] sm:$0x1]
        %v470 = vlaneseq
        %v471 = vshrl.u32 %v470, 7
        %v472 = vsub.s32 0, %v471
        %v473 = vrot.slane %v468, %v472
        %v475 = vadd.f32 %v455, %v473
        %v476 = vadd.f32 %v456, %v473
        %v477 = vadd.f32 %v457, %v473
        %v478 = vadd.f32 %v458, %v473
        %v479 = vadd.f32 %v459, %v473
        %v480 = vadd.f32 %v460, %v473
        %v481 = vadd.f32 %v461, %v473
        %v482 = vadd.f32 %v462, %v473
        %v483 = vadd.f32 %v463, %v473
        %v484 = vadd.f32 %v464, %v473
        %v485 = vadd.f32 %v465, %v473
        %v486 = vadd.f32 %v466, %v473
        %v487 = vadd.f32 %v467, %v473
        %vm488 = vcmp.ge.f32.partialorder %v475, 0.0
        %vm489 = vcmp.ge.f32.partialorder %v476, 0.0
        %vm490 = vcmp.ge.f32.partialorder %v477, 0.0
        %vm491 = vcmp.ge.f32.partialorder %v478, 0.0
        %vm492 = vcmp.ge.f32.partialorder %v479, 0.0
        %vm493 = vcmp.ge.f32.partialorder %v480, 0.0
        %vm494 = vcmp.ge.f32.partialorder %v481, 0.0
        %vm495 = vcmp.ge.f32.partialorder %v482, 0.0
        %vm496 = vcmp.ge.f32.partialorder %v483, 0.0
        %vm497 = vcmp.ge.f32.partialorder %v484, 0.0
        %vm498 = vcmp.ge.f32.partialorder %v485, 0.0
        %vm499 = vcmp.ge.f32.partialorder %v486, 0.0
        %vm500 = vcmp.ge.f32.partialorder %v487, 0.0
        %v501 = vmul.f32 %v475, 0.2
        %v502 = vmul.f32 %v476, 0.2
        %v503 = vmul.f32 %v477, 0.2
        %v504 = vmul.f32 %v478, 0.2
        %v505 = vmul.f32 %v479, 0.2
        %v506 = vmul.f32 %v480, 0.2
        %v507 = vmul.f32 %v481, 0.2
        %v508 = vmul.f32 %v482, 0.2
        %v509 = vmul.f32 %v483, 0.2
        %v510 = vmul.f32 %v484, 0.2
        %v511 = vmul.f32 %v485, 0.2
        %v512 = vmul.f32 %v486, 0.2
        %v513 = vmul.f32 %v487, 0.2
        %v514 = vsel %vm488, %v475, %v501
        %v515 = vsel %vm489, %v476, %v502
        %v516 = vsel %vm490, %v477, %v503
        %v517 = vsel %vm491, %v478, %v504
        %v518 = vsel %vm492, %v479, %v505
        %v519 = vsel %vm493, %v480, %v506
        %v520 = vsel %vm494, %v481, %v507
        %v521 = vsel %vm495, %v482, %v508
        %v522 = vsel %vm496, %v483, %v509
        %v523 = vsel %vm497, %v484, %v510
        %v524 = vsel %vm498, %v485, %v511
        %v525 = vsel %vm499, %v486, %v512
        %v526 = vsel %vm500, %v487, %v513
        %527 = vst.msk [vmem:[%s218] sm:$0xff] %vm437, %v514
        %528 = vst.msk [vmem:[%s218 + $0x8] sm:$0xff] %vm437, %v515
        %529 = vst.msk [vmem:[%s218 + $0x10] sm:$0xff] %vm437, %v516
        %530 = vst.msk [vmem:[%s218 + $0x18] sm:$0xff] %vm437, %v517
        %531 = vst.msk [vmem:[%s218 + $0x20] sm:$0xff] %vm437, %v518
        %532 = vst.msk [vmem:[%s218 + $0x28] sm:$0xff] %vm437, %v519
        %533 = vst.msk [vmem:[%s218 + $0x30] sm:$0xff] %vm437, %v520
        %534 = vst.msk [vmem:[%s218 + $0x38] sm:$0xff] %vm437, %v521
        %535 = vst.msk [vmem:[%s218 + $0x40] sm:$0xff] %vm437, %v522
        %536 = vst.msk [vmem:[%s218 + $0x48] sm:$0xff] %vm437, %v523
        %537 = vst.msk [vmem:[%s218 + $0x50] sm:$0xff] %vm437, %v524
        %538 = vst.msk [vmem:[%s218 + $0x58] sm:$0xff] %vm437, %v525
        %539 = vst.msk [vmem:[%s218 + $0x60] sm:$0xff] %vm437, %v526
      $region40: #{fc_discriminator_forward.8} parent=31 // pred_fallthru
        _
      %s540 = smul.u32 13, %s18
      %p541 = scmp.lt.s32.totalorder %s540, 12
      %s542 = scalar_select %p541, %s540, 12
      %s543 = smul.addr %s542, 8
      %s544 = scalar_lea.vmem %s3, %s543
      // Predicated region
      $region41: #{fc_discriminator_forward.8} parent=31 // pred_check
        %p545 = pneg %p119
      $region42: #{fc_discriminator_forward.8} parent=31 // pred_check_branch
        %547 = sbr.rel (%p545) target = $region44
      $region43: #{fc_discriminator_forward.8} parent=31 // pred_region
        %s548 = smul.u32 13, %s18
      $region44: #{fc_discriminator_forward.8} parent=31 // pred_fallthru
        _
      // Predicated region
      $region45: #{fc_discriminator_forward.8} parent=31 // pred_check
        %p549 = pneg %p119
      $region46: #{fc_discriminator_forward.8} parent=31 // pred_check_branch
        %551 = sbr.rel (%p549) target = $region48
      $region47: #{fc_discriminator_forward.8} parent=31 // pred_region
        %s552 = smul.u32 13, %s18
        %p553 = scmp.lt.s32.totalorder %s552, 12
        %s554 = scalar_select %p553, %s552, 12
        %s555 = smul.addr %s554, 8
        %s556 = scalar_lea.vmem %s3, %s555
      $region48: #{fc_discriminator_forward.8} parent=31 // pred_fallthru
        _
    $region32: #{fc_discriminator_forward.8} parent=5 // pred_fallthru
      _
    %p557 = scmp.le.s32.totalorder 2, %s9
    // Predicated region
    $region49: #{fc_discriminator_forward.8} parent=5 // pred_check
      %p558 = pneg %p557
    $region50: #{fc_discriminator_forward.8} parent=5 // pred_check_branch
      %560 = sbr.rel (%p558) target = $region52
    $region51: #{fc_discriminator_forward.8} parent=5 // pred_region
      %s561 = ssub.s32 %s9, 2
    $region52: #{fc_discriminator_forward.8} parent=5 // pred_fallthru
      _
  $region6: #{fc_discriminator_forward.8} parent=0 // loop_footer
    %s13 = sadd.s32 1, %s9
  $region7: #{fc_discriminator_forward.8} parent=0 // loop_footer_branch
    %8 = sbr.rel target = $region3
  $region8: #{fc_discriminator_forward.8} parent=0 // loop_exit
    _

</llo_original>
